<compile_context>
chip_gen: v5e
topology: v5e:2x2
jax: 0.10.0
libtpu: 0.0.40
codegen_flags: <defaults>
</compile_context>

<pallas_src>
from functools import partial

import numpy as np
import jax
import jax.numpy as jnp
from jax import lax
from jax.experimental import pallas as pl
from jax.experimental.pallas import tpu as pltpu

# Problem sizes (ss_1.shape[1] is the data channel count in the original
# script; we pick a small deterministic value).
N, C_IN, C_MID, C_OUT = 2, 128, 64, 4
H = W = 8
K = 3                      # 3x3 kernels
C_OUT_PAD = 128            # pad conv-2 output channels to a full lane width


def decoder_kernel(p1_ref, w1_ref, w2_ref, o_ref, *, n, h, w):
    """Fused conv1 (deep-K matmul) -> LeakyReLU(0.01) -> conv2 (9 taps).

    p1_ref : (n*(h+2)*(w+2), 9*C_IN)  bf16  conv-1 im2col over the padded
             output grid; border rows are all-zero (built in the wrapper).
    w1_ref : (9*C_IN, C_MID)          bf16
    w2_ref : (9, C_MID, C_OUT_PAD)    bf16  (output channels zero-padded)
    o_ref  : (n*h*w, C_OUT_PAD)       f32   (lane-dense store)
    """
    # ---- Conv 1: single deep-K MXU matmul, f32 accumulation ----------------
    hid = jnp.dot(p1_ref[...], w1_ref[...], preferred_element_type=jnp.float32)

    # ---- LeakyReLU (PyTorch default negative_slope = 0.01) -----------------
    hid = jnp.where(hid > 0, hid, 0.01 * hid)

    # Rows live on the padded (h+2, w+2) grid with zero border rows, so this
    # is already the zero-padded hidden activation -> no VMEM scratch needed.
    hp = hid.astype(jnp.bfloat16).reshape(n, h + 2, w + 2, C_MID)

    # ---- Conv 2: 9 shifted taps, accumulated in f32 ------------------------
    acc = jnp.zeros((n * h * w, C_OUT_PAD), jnp.float32)
    for kw in range(K):                       # slice W first: only 2 misaligned slices
        hw = hp[:, :, kw:kw + w, :]           # (n, h+2, w, C_MID)
        for kh in range(K):                   # kh slice is along an untiled major dim
            tap = hw[:, kh:kh + h, :, :].reshape(n * h * w, C_MID)
            acc = acc + jnp.dot(tap, w2_ref[kh * K + kw],
                                preferred_element_type=jnp.float32)

    o_ref[...] = acc                          # (128, 128) unmasked f32 store


def _tconv_w_flipped(w_t):
    """ConvTranspose2d weight (Cin, Cout, 3, 3) -> (3, 3, Cin, Cout), spatially
    flipped (tconv with stride=1, padding=1 == 'same' correlation with the
    flipped kernel; Cin stays the contraction axis)."""
    return jnp.transpose(jnp.flip(w_t, axis=(2, 3)), (2, 3, 0, 1))


def decoder_forward(x_nchw, w1_t, w2_t):
    """x_nchw: (N, 128, H, W) float32. Returns (N, C_OUT, H, W) float32."""
    n, c_in, h, w = x_nchw.shape
    hp_, wp_ = h + 2, w + 2

    # NCHW -> NHWC (channels on lanes), bf16 for the MXU, pad spatial by 1.
    x_nhwc = jnp.transpose(x_nchw, (0, 2, 3, 1)).astype(jnp.bfloat16)
    x_pad = jnp.pad(x_nhwc, ((0, 0), (1, 1), (1, 1), (0, 0)))

    # Conv-1 im2col over the interior, then zero-pad spatially by one so the
    # kernel's conv-1 output is directly the zero-padded hidden activation.
    taps = [x_pad[:, kh:kh + h, kw:kw + w, :]
            for kh in range(K) for kw in range(K)]
    p1 = jnp.concatenate(taps, axis=-1)                    # (n, h, w, 9*C_IN)
    p1 = jnp.pad(p1, ((0, 0), (1, 1), (1, 1), (0, 0)))     # (n, h+2, w+2, 9*C_IN)
    p1 = p1.reshape(n * hp_ * wp_, K * K * c_in)

    w1m = _tconv_w_flipped(w1_t).reshape(K * K * c_in, C_MID).astype(jnp.bfloat16)
    w2m = _tconv_w_flipped(w2_t).reshape(K * K, C_MID, C_OUT)
    w2m = jnp.pad(w2m, ((0, 0), (0, 0), (0, C_OUT_PAD - C_OUT))).astype(jnp.bfloat16)

    out_flat = pl.pallas_call(
        partial(decoder_kernel, n=n, h=h, w=w),
        out_shape=jax.ShapeDtypeStruct((n * h * w, C_OUT_PAD), jnp.float32),
        grid_spec=pltpu.PrefetchScalarGridSpec(
            num_scalar_prefetch=0,
            grid=(1,),
            in_specs=[
                pl.BlockSpec((n * hp_ * wp_, K * K * c_in), lambda i: (0, 0)),
                pl.BlockSpec((K * K * c_in, C_MID), lambda i: (0, 0)),
                pl.BlockSpec((K * K, C_MID, C_OUT_PAD), lambda i: (0, 0, 0)),
            ],
            out_specs=pl.BlockSpec((n * h * w, C_OUT_PAD), lambda i: (0, 0)),
        ),
        compiler_params=pltpu.CompilerParams(
            dimension_semantics=("arbitrary",)),
    )(p1, w1m, w2m)

    out = out_flat[:, :C_OUT].reshape(n, h, w, C_OUT)
    return jnp.transpose(out, (0, 3, 1, 2))                # back to NCHW


def decoder_reference(x_nchw, w1_t, w2_t):
    """Pure-JAX reference (f32 math on identically bf16-quantized inputs)."""
    q = lambda a: a.astype(jnp.bfloat16).astype(jnp.float32)

    def tconv_as_conv(x, w_t):
        # conv weight (Cout, Cin, kh, kw) = flip(w_t) with channel axes swapped
        w_conv = jnp.transpose(jnp.flip(w_t, axis=(2, 3)), (1, 0, 2, 3))
        return lax.conv_general_dilated(
            x, w_conv, window_strides=(1, 1), padding="SAME",
            dimension_numbers=("NCHW", "OIHW", "NCHW"))

    hid = tconv_as_conv(q(x_nchw), q(w1_t))
    hid = jnp.where(hid > 0, hid, 0.01 * hid)
    return tconv_as_conv(q(hid), q(w2_t))


if __name__ == "__main__":
    key = jax.random.PRNGKey(0)
    kx, k1, k2 = jax.random.split(key, 3)

    # Deterministic synthetic parameters (ConvTranspose2d weight layout:
    # (in_channels, out_channels, kH, kW)); Kaiming-ish scaling.
    x = jax.random.normal(kx, (N, C_IN, H, W), dtype=jnp.float32)
    w1_t = jax.random.normal(k1, (C_IN, C_MID, K, K), jnp.float32) * (
        1.0 / np.sqrt(C_IN * K * K))
    w2_t = jax.random.normal(k2, (C_MID, C_OUT, K, K), jnp.float32) * (
        1.0 / np.sqrt(C_MID * K * K))

    fwd = jax.jit(decoder_forward)
    out = jax.block_until_ready(fwd(x, w1_t, w2_t))

    ref = jax.block_until_ready(decoder_reference(x, w1_t, w2_t))
    assert out.shape == (N, C_OUT, H, W), out.shape
    np.testing.assert_allclose(np.asarray(out), np.asarray(ref),
                               rtol=1e-2, atol=1e-2)

    print("KERNEL_OK")
</pallas_src>

<mosaic_0001>
module attributes {stable_mosaic.version = 11 : i64} {
  func.func @decoder_kernel(%arg0: i32, %arg1: memref<200x1152xbf16, #tpu.memory_space<vmem>>, %arg2: memref<1152x64xbf16, #tpu.memory_space<vmem>>, %arg3: memref<9x64x128xbf16, #tpu.memory_space<vmem>>, %arg4: memref<128x128xf32, #tpu.memory_space<vmem>>) attributes {dimension_semantics = [#tpu.dimension_semantics<arbitrary>], iteration_bounds = array<i64: 1>, scalar_prefetch = 0 : i64, scratch_operands = 0 : i64, tpu.core_type = #tpu.core_type<tc>, window_params = [{pipeline_mode = #tpu.pipeline_mode<synchronous>, transform_indices = @transform_0, window_bounds = array<i64: 200, 1152>}, {pipeline_mode = #tpu.pipeline_mode<synchronous>, transform_indices = @transform_1, window_bounds = array<i64: 1152, 64>}, {pipeline_mode = #tpu.pipeline_mode<synchronous>, transform_indices = @transform_2, window_bounds = array<i64: 9, 64, 128>}, {pipeline_mode = #tpu.pipeline_mode<synchronous>, transform_indices = @transform_3, window_bounds = array<i64: 128, 128>}]} {
    %c0 = arith.constant 0 : index
    %c0_0 = arith.constant 0 : index
    %0 = vector.load %arg1[%c0, %c0_0] : memref<200x1152xbf16, #tpu.memory_space<vmem>>, vector<200x1152xbf16>
    %c0_1 = arith.constant 0 : index
    %c0_2 = arith.constant 0 : index
    %1 = vector.load %arg2[%c0_1, %c0_2] : memref<1152x64xbf16, #tpu.memory_space<vmem>>, vector<1152x64xbf16>
    %cst = arith.constant dense<0.000000e+00> : vector<200x64xf32>
    %2 = tpu.matmul %0, %1, %cst {dimension_numbers = #tpu.dot_dimension_numbers<[1], [0], [0], [1], [0, 0, 1, 1], [], []>} : vector<200x1152xbf16>, vector<1152x64xbf16>, vector<200x64xf32> -> vector<200x64xf32>
    %cst_3 = arith.constant 0.000000e+00 : f32
    %3 = vector.broadcast %cst_3 : f32 to vector<200x64xf32>
    %4 = arith.cmpf ogt, %2, %3 : vector<200x64xf32>
    %cst_4 = arith.constant 0.00999999977 : f32
    %5 = vector.broadcast %cst_4 : f32 to vector<200x64xf32>
    %6 = arith.mulf %5, %2 : vector<200x64xf32>
    %7 = arith.select %4, %2, %6 : vector<200x64xi1>, vector<200x64xf32>
    %8 = arith.truncf %7 : vector<200x64xf32> to vector<200x64xbf16>
    %9 = vector.shape_cast %8 : vector<200x64xbf16> to vector<2x10x10x64xbf16>
    %cst_5 = arith.constant 0.000000e+00 : f32
    %10 = vector.broadcast %cst_5 : f32 to vector<128x128xf32>
    %11 = vector.extract_strided_slice %9 {offsets = [0, 0, 0, 0], sizes = [2, 10, 8, 64], strides = [1, 1, 1, 1]} : vector<2x10x10x64xbf16> to vector<2x10x8x64xbf16>
    %12 = vector.extract_strided_slice %11 {offsets = [0, 0, 0, 0], sizes = [2, 8, 8, 64], strides = [1, 1, 1, 1]} : vector<2x10x8x64xbf16> to vector<2x8x8x64xbf16>
    %13 = vector.shape_cast %12 : vector<2x8x8x64xbf16> to vector<128x64xbf16>
    %c0_6 = arith.constant 0 : index
    %c0_7 = arith.constant 0 : index
    %c0_8 = arith.constant 0 : index
    %14 = vector.load %arg3[%c0_6, %c0_7, %c0_8] : memref<9x64x128xbf16, #tpu.memory_space<vmem>>, vector<1x64x128xbf16>
    %15 = vector.shape_cast %14 : vector<1x64x128xbf16> to vector<64x128xbf16>
    %cst_9 = arith.constant dense<0.000000e+00> : vector<128x128xf32>
    %16 = tpu.matmul %13, %15, %cst_9 {dimension_numbers = #tpu.dot_dimension_numbers<[1], [0], [0], [1], [0, 0, 1, 1], [], []>} : vector<128x64xbf16>, vector<64x128xbf16>, vector<128x128xf32> -> vector<128x128xf32>
    %17 = arith.addf %10, %16 : vector<128x128xf32>
    %18 = vector.extract_strided_slice %11 {offsets = [0, 1, 0, 0], sizes = [2, 8, 8, 64], strides = [1, 1, 1, 1]} : vector<2x10x8x64xbf16> to vector<2x8x8x64xbf16>
    %19 = vector.shape_cast %18 : vector<2x8x8x64xbf16> to vector<128x64xbf16>
    %c3 = arith.constant 3 : index
    %c0_10 = arith.constant 0 : index
    %c0_11 = arith.constant 0 : index
    %20 = vector.load %arg3[%c3, %c0_10, %c0_11] : memref<9x64x128xbf16, #tpu.memory_space<vmem>>, vector<1x64x128xbf16>
    %21 = vector.shape_cast %20 : vector<1x64x128xbf16> to vector<64x128xbf16>
    %cst_12 = arith.constant dense<0.000000e+00> : vector<128x128xf32>
    %22 = tpu.matmul %19, %21, %cst_12 {dimension_numbers = #tpu.dot_dimension_numbers<[1], [0], [0], [1], [0, 0, 1, 1], [], []>} : vector<128x64xbf16>, vector<64x128xbf16>, vector<128x128xf32> -> vector<128x128xf32>
    %23 = arith.addf %17, %22 : vector<128x128xf32>
    %24 = vector.extract_strided_slice %11 {offsets = [0, 2, 0, 0], sizes = [2, 8, 8, 64], strides = [1, 1, 1, 1]} : vector<2x10x8x64xbf16> to vector<2x8x8x64xbf16>
    %25 = vector.shape_cast %24 : vector<2x8x8x64xbf16> to vector<128x64xbf16>
    %c6 = arith.constant 6 : index
    %c0_13 = arith.constant 0 : index
    %c0_14 = arith.constant 0 : index
    %26 = vector.load %arg3[%c6, %c0_13, %c0_14] : memref<9x64x128xbf16, #tpu.memory_space<vmem>>, vector<1x64x128xbf16>
    %27 = vector.shape_cast %26 : vector<1x64x128xbf16> to vector<64x128xbf16>
    %cst_15 = arith.constant dense<0.000000e+00> : vector<128x128xf32>
    %28 = tpu.matmul %25, %27, %cst_15 {dimension_numbers = #tpu.dot_dimension_numbers<[1], [0], [0], [1], [0, 0, 1, 1], [], []>} : vector<128x64xbf16>, vector<64x128xbf16>, vector<128x128xf32> -> vector<128x128xf32>
    %29 = arith.addf %23, %28 : vector<128x128xf32>
    %30 = vector.extract_strided_slice %9 {offsets = [0, 0, 1, 0], sizes = [2, 10, 8, 64], strides = [1, 1, 1, 1]} : vector<2x10x10x64xbf16> to vector<2x10x8x64xbf16>
    %31 = vector.extract_strided_slice %30 {offsets = [0, 0, 0, 0], sizes = [2, 8, 8, 64], strides = [1, 1, 1, 1]} : vector<2x10x8x64xbf16> to vector<2x8x8x64xbf16>
    %32 = vector.shape_cast %31 : vector<2x8x8x64xbf16> to vector<128x64xbf16>
    %c1 = arith.constant 1 : index
    %c0_16 = arith.constant 0 : index
    %c0_17 = arith.constant 0 : index
    %33 = vector.load %arg3[%c1, %c0_16, %c0_17] : memref<9x64x128xbf16, #tpu.memory_space<vmem>>, vector<1x64x128xbf16>
    %34 = vector.shape_cast %33 : vector<1x64x128xbf16> to vector<64x128xbf16>
    %cst_18 = arith.constant dense<0.000000e+00> : vector<128x128xf32>
    %35 = tpu.matmul %32, %34, %cst_18 {dimension_numbers = #tpu.dot_dimension_numbers<[1], [0], [0], [1], [0, 0, 1, 1], [], []>} : vector<128x64xbf16>, vector<64x128xbf16>, vector<128x128xf32> -> vector<128x128xf32>
    %36 = arith.addf %29, %35 : vector<128x128xf32>
    %37 = vector.extract_strided_slice %30 {offsets = [0, 1, 0, 0], sizes = [2, 8, 8, 64], strides = [1, 1, 1, 1]} : vector<2x10x8x64xbf16> to vector<2x8x8x64xbf16>
    %38 = vector.shape_cast %37 : vector<2x8x8x64xbf16> to vector<128x64xbf16>
    %c4 = arith.constant 4 : index
    %c0_19 = arith.constant 0 : index
    %c0_20 = arith.constant 0 : index
    %39 = vector.load %arg3[%c4, %c0_19, %c0_20] : memref<9x64x128xbf16, #tpu.memory_space<vmem>>, vector<1x64x128xbf16>
    %40 = vector.shape_cast %39 : vector<1x64x128xbf16> to vector<64x128xbf16>
    %cst_21 = arith.constant dense<0.000000e+00> : vector<128x128xf32>
    %41 = tpu.matmul %38, %40, %cst_21 {dimension_numbers = #tpu.dot_dimension_numbers<[1], [0], [0], [1], [0, 0, 1, 1], [], []>} : vector<128x64xbf16>, vector<64x128xbf16>, vector<128x128xf32> -> vector<128x128xf32>
    %42 = arith.addf %36, %41 : vector<128x128xf32>
    %43 = vector.extract_strided_slice %30 {offsets = [0, 2, 0, 0], sizes = [2, 8, 8, 64], strides = [1, 1, 1, 1]} : vector<2x10x8x64xbf16> to vector<2x8x8x64xbf16>
    %44 = vector.shape_cast %43 : vector<2x8x8x64xbf16> to vector<128x64xbf16>
    %c7 = arith.constant 7 : index
    %c0_22 = arith.constant 0 : index
    %c0_23 = arith.constant 0 : index
    %45 = vector.load %arg3[%c7, %c0_22, %c0_23] : memref<9x64x128xbf16, #tpu.memory_space<vmem>>, vector<1x64x128xbf16>
    %46 = vector.shape_cast %45 : vector<1x64x128xbf16> to vector<64x128xbf16>
    %cst_24 = arith.constant dense<0.000000e+00> : vector<128x128xf32>
    %47 = tpu.matmul %44, %46, %cst_24 {dimension_numbers = #tpu.dot_dimension_numbers<[1], [0], [0], [1], [0, 0, 1, 1], [], []>} : vector<128x64xbf16>, vector<64x128xbf16>, vector<128x128xf32> -> vector<128x128xf32>
    %48 = arith.addf %42, %47 : vector<128x128xf32>
    %49 = vector.extract_strided_slice %9 {offsets = [0, 0, 2, 0], sizes = [2, 10, 8, 64], strides = [1, 1, 1, 1]} : vector<2x10x10x64xbf16> to vector<2x10x8x64xbf16>
    %50 = vector.extract_strided_slice %49 {offsets = [0, 0, 0, 0], sizes = [2, 8, 8, 64], strides = [1, 1, 1, 1]} : vector<2x10x8x64xbf16> to vector<2x8x8x64xbf16>
    %51 = vector.shape_cast %50 : vector<2x8x8x64xbf16> to vector<128x64xbf16>
    %c2 = arith.constant 2 : index
    %c0_25 = arith.constant 0 : index
    %c0_26 = arith.constant 0 : index
    %52 = vector.load %arg3[%c2, %c0_25, %c0_26] : memref<9x64x128xbf16, #tpu.memory_space<vmem>>, vector<1x64x128xbf16>
    %53 = vector.shape_cast %52 : vector<1x64x128xbf16> to vector<64x128xbf16>
    %cst_27 = arith.constant dense<0.000000e+00> : vector<128x128xf32>
    %54 = tpu.matmul %51, %53, %cst_27 {dimension_numbers = #tpu.dot_dimension_numbers<[1], [0], [0], [1], [0, 0, 1, 1], [], []>} : vector<128x64xbf16>, vector<64x128xbf16>, vector<128x128xf32> -> vector<128x128xf32>
    %55 = arith.addf %48, %54 : vector<128x128xf32>
    %56 = vector.extract_strided_slice %49 {offsets = [0, 1, 0, 0], sizes = [2, 8, 8, 64], strides = [1, 1, 1, 1]} : vector<2x10x8x64xbf16> to vector<2x8x8x64xbf16>
    %57 = vector.shape_cast %56 : vector<2x8x8x64xbf16> to vector<128x64xbf16>
    %c5 = arith.constant 5 : index
    %c0_28 = arith.constant 0 : index
    %c0_29 = arith.constant 0 : index
    %58 = vector.load %arg3[%c5, %c0_28, %c0_29] : memref<9x64x128xbf16, #tpu.memory_space<vmem>>, vector<1x64x128xbf16>
    %59 = vector.shape_cast %58 : vector<1x64x128xbf16> to vector<64x128xbf16>
    %cst_30 = arith.constant dense<0.000000e+00> : vector<128x128xf32>
    %60 = tpu.matmul %57, %59, %cst_30 {dimension_numbers = #tpu.dot_dimension_numbers<[1], [0], [0], [1], [0, 0, 1, 1], [], []>} : vector<128x64xbf16>, vector<64x128xbf16>, vector<128x128xf32> -> vector<128x128xf32>
    %61 = arith.addf %55, %60 : vector<128x128xf32>
    %62 = vector.extract_strided_slice %49 {offsets = [0, 2, 0, 0], sizes = [2, 8, 8, 64], strides = [1, 1, 1, 1]} : vector<2x10x8x64xbf16> to vector<2x8x8x64xbf16>
    %63 = vector.shape_cast %62 : vector<2x8x8x64xbf16> to vector<128x64xbf16>
    %c8 = arith.constant 8 : index
    %c0_31 = arith.constant 0 : index
    %c0_32 = arith.constant 0 : index
    %64 = vector.load %arg3[%c8, %c0_31, %c0_32] : memref<9x64x128xbf16, #tpu.memory_space<vmem>>, vector<1x64x128xbf16>
    %65 = vector.shape_cast %64 : vector<1x64x128xbf16> to vector<64x128xbf16>
    %cst_33 = arith.constant dense<0.000000e+00> : vector<128x128xf32>
    %66 = tpu.matmul %63, %65, %cst_33 {dimension_numbers = #tpu.dot_dimension_numbers<[1], [0], [0], [1], [0, 0, 1, 1], [], []>} : vector<128x64xbf16>, vector<64x128xbf16>, vector<128x128xf32> -> vector<128x128xf32>
    %67 = arith.addf %61, %66 : vector<128x128xf32>
    %c0_34 = arith.constant 0 : index
    %c0_35 = arith.constant 0 : index
    %68 = vector.load %arg4[%c0_34, %c0_35] : memref<128x128xf32, #tpu.memory_space<vmem>>, vector<128x128xf32>
    tpu.vector_store %arg4[%c0_34, %c0_35], %67 {strides = array<i32>} : memref<128x128xf32, #tpu.memory_space<vmem>>, vector<128x128xf32>,
    return
  }
  func.func @transform_0(%arg0: i32) -> (i32, i32) {
    %c0_i32 = arith.constant 0 : i32
    %c0_i32_0 = arith.constant 0 : i32
    %c0_i32_1 = arith.constant 0 : i32
    return %c0_i32, %c0_i32_0 : i32, i32
  }
  func.func @transform_1(%arg0: i32) -> (i32, i32) {
    %c0_i32 = arith.constant 0 : i32
    %c0_i32_0 = arith.constant 0 : i32
    %c0_i32_1 = arith.constant 0 : i32
    return %c0_i32, %c0_i32_0 : i32, i32
  }
  func.func @transform_2(%arg0: i32) -> (i32, i32, i32) {
    %c0_i32 = arith.constant 0 : i32
    %c0_i32_0 = arith.constant 0 : i32
    %c0_i32_1 = arith.constant 0 : i32
    %c0_i32_2 = arith.constant 0 : i32
    return %c0_i32, %c0_i32_0, %c0_i32_1 : i32, i32, i32
  }
  func.func @transform_3(%arg0: i32) -> (i32, i32) {
    %c0_i32 = arith.constant 0 : i32
    %c0_i32_0 = arith.constant 0 : i32
    %c0_i32_1 = arith.constant 0 : i32
    return %c0_i32, %c0_i32_0 : i32, i32
  }
}

</mosaic_0001>

<llo_original>
// kernel: decoder_forward.1
$region0: #{decoder_forward.1}
  #allocation0 [shape = 'u32[]', space=smem, size = 0x4, offset = 0x4, fixed_abs, tag = 'smem constant byte address 0x4 - core index']
  #allocation1 [shape = 'u32[72,128]{1,0:T(1,128)}', space=vmem, size = 0x9000, scoped, tag = 'internal scratch']
  %s0 = inlined_call_operand.vmem [shape: bf16[200,1152], index: 0, kind: input, shape index: {}]
  %s1 = inlined_call_operand.vmem [shape: bf16[1152,64], index: 1, kind: input, shape index: {}]
  %s2 = inlined_call_operand.vmem [shape: bf16[9,64,128], index: 2, kind: input, shape index: {}]
  %s3 = inlined_call_operand.vmem [shape: f32[128,128], index: 3, kind: output, shape index: {}]
  %s4 = sld [smem:[#allocation0]]
  $region22: #{decoder_forward.1} parent=0
    _
  %s6 = ssub.s32 1, %s4
  %s7 = scalar_select 0, %s6, %s4
  // Predicated region
  $region2: #{decoder_forward.1} parent=0 // pred_check
    _
  $region3: #{decoder_forward.1} parent=0 // pred_check_branch
    %9 = sbr.rel (0) target = $region5
  $region4: #{decoder_forward.1} parent=0 // pred_region
    _
  $region5: #{decoder_forward.1} parent=0 // pred_fallthru
    _
  // Predicated region
  $region6: #{decoder_forward.1} parent=0 // pred_check
    _
  $region7: #{decoder_forward.1} parent=0 // pred_check_branch
    %11 = sbr.rel (0) target = $region9
  $region8: #{decoder_forward.1} parent=0 // pred_region
    _
  $region9: #{decoder_forward.1} parent=0 // pred_fallthru
    _
  // Predicated region
  $region10: #{decoder_forward.1} parent=0 // pred_check
    _
  $region11: #{decoder_forward.1} parent=0 // pred_check_branch
    %13 = sbr.rel (0) target = $region13
  $region12: #{decoder_forward.1} parent=0 // pred_region
    _
  $region13: #{decoder_forward.1} parent=0 // pred_fallthru
    _
  %v15 = vld [vmem:[%s0] sm:$0xff]
  %v16 = vld [vmem:[%s0 + $0x8] sm:$0xff]
  %v17 = vld [vmem:[%s0 + $0x10] sm:$0xff]
  %v18 = vld [vmem:[%s0 + $0x18] sm:$0xff]
  %v19 = vld [vmem:[%s0 + $0x20] sm:$0xf]
  %v20 = vld [vmem:[%s0 + $0x24] sm:$0xff]
  %v21 = vld [vmem:[%s0 + $0x2c] sm:$0xff]
  %v22 = vld [vmem:[%s0 + $0x34] sm:$0xff]
  %v23 = vld [vmem:[%s0 + $0x3c] sm:$0xff]
  %v24 = vld [vmem:[%s0 + $0x44] sm:$0xf]
  %v25 = vld [vmem:[%s0 + $0x48] sm:$0xff]
  %v26 = vld [vmem:[%s0 + $0x50] sm:$0xff]
  %v27 = vld [vmem:[%s0 + $0x58] sm:$0xff]
  %v28 = vld [vmem:[%s0 + $0x60] sm:$0xff]
  %v29 = vld [vmem:[%s0 + $0x68] sm:$0xf]
  %v30 = vld [vmem:[%s0 + $0x6c] sm:$0xff]
  %v31 = vld [vmem:[%s0 + $0x74] sm:$0xff]
  %v32 = vld [vmem:[%s0 + $0x7c] sm:$0xff]
  %v33 = vld [vmem:[%s0 + $0x84] sm:$0xff]
  %v34 = vld [vmem:[%s0 + $0x8c] sm:$0xf]
  %v35 = vld [vmem:[%s0 + $0x90] sm:$0xff]
  %v36 = vld [vmem:[%s0 + $0x98] sm:$0xff]
  %v37 = vld [vmem:[%s0 + $0xa0] sm:$0xff]
  %v38 = vld [vmem:[%s0 + $0xa8] sm:$0xff]
  %v39 = vld [vmem:[%s0 + $0xb0] sm:$0xf]
  %v40 = vld [vmem:[%s0 + $0xb4] sm:$0xff]
  %v41 = vld [vmem:[%s0 + $0xbc] sm:$0xff]
  %v42 = vld [vmem:[%s0 + $0xc4] sm:$0xff]
  %v43 = vld [vmem:[%s0 + $0xcc] sm:$0xff]
  %v44 = vld [vmem:[%s0 + $0xd4] sm:$0xf]
  %v45 = vld [vmem:[%s0 + $0xd8] sm:$0xff]
  %v46 = vld [vmem:[%s0 + $0xe0] sm:$0xff]
  %v47 = vld [vmem:[%s0 + $0xe8] sm:$0xff]
  %v48 = vld [vmem:[%s0 + $0xf0] sm:$0xff]
  %v49 = vld [vmem:[%s0 + $0xf8] sm:$0xf]
  %v50 = vld [vmem:[%s0 + $0xfc] sm:$0xff]
  %v51 = vld [vmem:[%s0 + $0x104] sm:$0xff]
  %v52 = vld [vmem:[%s0 + $0x10c] sm:$0xff]
  %v53 = vld [vmem:[%s0 + $0x114] sm:$0xff]
  %v54 = vld [vmem:[%s0 + $0x11c] sm:$0xf]
  %v55 = vld [vmem:[%s0 + $0x120] sm:$0xff]
  %v56 = vld [vmem:[%s0 + $0x128] sm:$0xff]
  %v57 = vld [vmem:[%s0 + $0x130] sm:$0xff]
  %v58 = vld [vmem:[%s0 + $0x138] sm:$0xff]
  %v59 = vld [vmem:[%s0 + $0x140] sm:$0xf]
  %v60 = vld [vmem:[%s0 + $0x144] sm:$0xff]
  %v61 = vld [vmem:[%s0 + $0x14c] sm:$0xff]
  %v62 = vld [vmem:[%s0 + $0x154] sm:$0xff]
  %v63 = vld [vmem:[%s0 + $0x15c] sm:$0xff]
  %v64 = vld [vmem:[%s0 + $0x164] sm:$0xf]
  %v65 = vld [vmem:[%s0 + $0x168] sm:$0xff]
  %v66 = vld [vmem:[%s0 + $0x170] sm:$0xff]
  %v67 = vld [vmem:[%s0 + $0x178] sm:$0xff]
  %v68 = vld [vmem:[%s0 + $0x180] sm:$0xff]
  %v69 = vld [vmem:[%s0 + $0x188] sm:$0xf]
  %v70 = vld [vmem:[%s0 + $0x18c] sm:$0xff]
  %v71 = vld [vmem:[%s0 + $0x194] sm:$0xff]
  %v72 = vld [vmem:[%s0 + $0x19c] sm:$0xff]
  %v73 = vld [vmem:[%s0 + $0x1a4] sm:$0xff]
  %v74 = vld [vmem:[%s0 + $0x1ac] sm:$0xf]
  %v75 = vld [vmem:[%s0 + $0x1b0] sm:$0xff]
  %v76 = vld [vmem:[%s0 + $0x1b8] sm:$0xff]
  %v77 = vld [vmem:[%s0 + $0x1c0] sm:$0xff]
  %v78 = vld [vmem:[%s0 + $0x1c8] sm:$0xff]
  %v79 = vld [vmem:[%s0 + $0x1d0] sm:$0xf]
  %v80 = vld [vmem:[%s0 + $0x1d4] sm:$0xff]
  %v81 = vld [vmem:[%s0 + $0x1dc] sm:$0xff]
  %v82 = vld [vmem:[%s0 + $0x1e4] sm:$0xff]
  %v83 = vld [vmem:[%s0 + $0x1ec] sm:$0xff]
  %v84 = vld [vmem:[%s0 + $0x1f4] sm:$0xf]
  %v85 = vld [vmem:[%s0 + $0x1f8] sm:$0xff]
  %v86 = vld [vmem:[%s0 + $0x200] sm:$0xff]
  %v87 = vld [vmem:[%s0 + $0x208] sm:$0xff]
  %v88 = vld [vmem:[%s0 + $0x210] sm:$0xff]
  %v89 = vld [vmem:[%s0 + $0x218] sm:$0xf]
  %v90 = vld [vmem:[%s0 + $0x21c] sm:$0xff]
  %v91 = vld [vmem:[%s0 + $0x224] sm:$0xff]
  %v92 = vld [vmem:[%s0 + $0x22c] sm:$0xff]
  %v93 = vld [vmem:[%s0 + $0x234] sm:$0xff]
  %v94 = vld [vmem:[%s0 + $0x23c] sm:$0xf]
  %v95 = vld [vmem:[%s0 + $0x240] sm:$0xff]
  %v96 = vld [vmem:[%s0 + $0x248] sm:$0xff]
  %v97 = vld [vmem:[%s0 + $0x250] sm:$0xff]
  %v98 = vld [vmem:[%s0 + $0x258] sm:$0xff]
  %v99 = vld [vmem:[%s0 + $0x260] sm:$0xf]
  %v100 = vld [vmem:[%s0 + $0x264] sm:$0xff]
  %v101 = vld [vmem:[%s0 + $0x26c] sm:$0xff]
  %v102 = vld [vmem:[%s0 + $0x274] sm:$0xff]
  %v103 = vld [vmem:[%s0 + $0x27c] sm:$0xff]
  %v104 = vld [vmem:[%s0 + $0x284] sm:$0xf]
  %v105 = vld [vmem:[%s0 + $0x288] sm:$0xff]
  %v106 = vld [vmem:[%s0 + $0x290] sm:$0xff]
  %v107 = vld [vmem:[%s0 + $0x298] sm:$0xff]
  %v108 = vld [vmem:[%s0 + $0x2a0] sm:$0xff]
  %v109 = vld [vmem:[%s0 + $0x2a8] sm:$0xf]
  %v110 = vld [vmem:[%s0 + $0x2ac] sm:$0xff]
  %v111 = vld [vmem:[%s0 + $0x2b4] sm:$0xff]
  %v112 = vld [vmem:[%s0 + $0x2bc] sm:$0xff]
  %v113 = vld [vmem:[%s0 + $0x2c4] sm:$0xff]
  %v114 = vld [vmem:[%s0 + $0x2cc] sm:$0xf]
  %v115 = vld [vmem:[%s0 + $0x2d0] sm:$0xff]
  %v116 = vld [vmem:[%s0 + $0x2d8] sm:$0xff]
  %v117 = vld [vmem:[%s0 + $0x2e0] sm:$0xff]
  %v118 = vld [vmem:[%s0 + $0x2e8] sm:$0xff]
  %v119 = vld [vmem:[%s0 + $0x2f0] sm:$0xf]
  %v120 = vld [vmem:[%s0 + $0x2f4] sm:$0xff]
  %v121 = vld [vmem:[%s0 + $0x2fc] sm:$0xff]
  %v122 = vld [vmem:[%s0 + $0x304] sm:$0xff]
  %v123 = vld [vmem:[%s0 + $0x30c] sm:$0xff]
  %v124 = vld [vmem:[%s0 + $0x314] sm:$0xf]
  %v125 = vld [vmem:[%s0 + $0x318] sm:$0xff]
  %v126 = vld [vmem:[%s0 + $0x320] sm:$0xff]
  %v127 = vld [vmem:[%s0 + $0x328] sm:$0xff]
  %v128 = vld [vmem:[%s0 + $0x330] sm:$0xff]
  %v129 = vld [vmem:[%s0 + $0x338] sm:$0xf]
  %v130 = vld [vmem:[%s0 + $0x33c] sm:$0xff]
  %v131 = vld [vmem:[%s0 + $0x344] sm:$0xff]
  %v132 = vld [vmem:[%s0 + $0x34c] sm:$0xff]
  %v133 = vld [vmem:[%s0 + $0x354] sm:$0xff]
  %v134 = vld [vmem:[%s0 + $0x35c] sm:$0xf]
  %v135 = vld [vmem:[%s0 + $0x360] sm:$0xff]
  %v136 = vld [vmem:[%s0 + $0x368] sm:$0xff]
  %v137 = vld [vmem:[%s0 + $0x370] sm:$0xff]
  %v138 = vld [vmem:[%s0 + $0x378] sm:$0xff]
  %v139 = vld [vmem:[%s0 + $0x380] sm:$0xf]
  %v140 = vld [vmem:[%s1] sm:$0xf]
  %v141 = vld [vmem:[%s1 + $0x4] sm:$0xf]
  %v142 = vld [vmem:[%s1 + $0x8] sm:$0xf]
  %v143 = vld [vmem:[%s1 + $0xc] sm:$0xf]
  %v144 = vld [vmem:[%s1 + $0x10] sm:$0xf]
  %v145 = vld [vmem:[%s1 + $0x14] sm:$0xf]
  %v146 = vld [vmem:[%s1 + $0x18] sm:$0xf]
  %v147 = vld [vmem:[%s1 + $0x1c] sm:$0xf]
  %v148 = vld [vmem:[%s1 + $0x20] sm:$0xf]
  %v149 = vld [vmem:[%s1 + $0x24] sm:$0xf]
  %v150 = vld [vmem:[%s1 + $0x28] sm:$0xf]
  %v151 = vld [vmem:[%s1 + $0x2c] sm:$0xf]
  %v152 = vld [vmem:[%s1 + $0x30] sm:$0xf]
  %v153 = vld [vmem:[%s1 + $0x34] sm:$0xf]
  %v154 = vld [vmem:[%s1 + $0x38] sm:$0xf]
  %v155 = vld [vmem:[%s1 + $0x3c] sm:$0xf]
  %v156 = vld [vmem:[%s1 + $0x40] sm:$0xf]
  %v157 = vld [vmem:[%s1 + $0x44] sm:$0xf]
  %v158 = vld [vmem:[%s1 + $0x48] sm:$0xf]
  %v159 = vld [vmem:[%s1 + $0x4c] sm:$0xf]
  %v160 = vld [vmem:[%s1 + $0x50] sm:$0xf]
  %v161 = vld [vmem:[%s1 + $0x54] sm:$0xf]
  %v162 = vld [vmem:[%s1 + $0x58] sm:$0xf]
  %v163 = vld [vmem:[%s1 + $0x5c] sm:$0xf]
  %v164 = vld [vmem:[%s1 + $0x60] sm:$0xf]
  %v165 = vld [vmem:[%s1 + $0x64] sm:$0xf]
  %v166 = vld [vmem:[%s1 + $0x68] sm:$0xf]
  %v167 = vld [vmem:[%s1 + $0x6c] sm:$0xf]
  %v168 = vld [vmem:[%s1 + $0x70] sm:$0xf]
  %v169 = vld [vmem:[%s1 + $0x74] sm:$0xf]
  %v170 = vld [vmem:[%s1 + $0x78] sm:$0xf]
  %v171 = vld [vmem:[%s1 + $0x7c] sm:$0xf]
  %v172 = vld [vmem:[%s1 + $0x80] sm:$0xf]
  %v173 = vld [vmem:[%s1 + $0x84] sm:$0xf]
  %v174 = vld [vmem:[%s1 + $0x88] sm:$0xf]
  %v175 = vld [vmem:[%s1 + $0x8c] sm:$0xf]
  %v176 = vld [vmem:[%s1 + $0x90] sm:$0xf]
  %v177 = vld [vmem:[%s1 + $0x94] sm:$0xf]
  %v178 = vld [vmem:[%s1 + $0x98] sm:$0xf]
  %v179 = vld [vmem:[%s1 + $0x9c] sm:$0xf]
  %v180 = vld [vmem:[%s1 + $0xa0] sm:$0xf]
  %v181 = vld [vmem:[%s1 + $0xa4] sm:$0xf]
  %v182 = vld [vmem:[%s1 + $0xa8] sm:$0xf]
  %v183 = vld [vmem:[%s1 + $0xac] sm:$0xf]
  %v184 = vld [vmem:[%s1 + $0xb0] sm:$0xf]
  %v185 = vld [vmem:[%s1 + $0xb4] sm:$0xf]
  %v186 = vld [vmem:[%s1 + $0xb8] sm:$0xf]
  %v187 = vld [vmem:[%s1 + $0xbc] sm:$0xf]
  %v188 = vld [vmem:[%s1 + $0xc0] sm:$0xf]
  %v189 = vld [vmem:[%s1 + $0xc4] sm:$0xf]
  %v190 = vld [vmem:[%s1 + $0xc8] sm:$0xf]
  %v191 = vld [vmem:[%s1 + $0xcc] sm:$0xf]
  %v192 = vld [vmem:[%s1 + $0xd0] sm:$0xf]
  %v193 = vld [vmem:[%s1 + $0xd4] sm:$0xf]
  %v194 = vld [vmem:[%s1 + $0xd8] sm:$0xf]
  %v195 = vld [vmem:[%s1 + $0xdc] sm:$0xf]
  %v196 = vld [vmem:[%s1 + $0xe0] sm:$0xf]
  %v197 = vld [vmem:[%s1 + $0xe4] sm:$0xf]
  %v198 = vld [vmem:[%s1 + $0xe8] sm:$0xf]
  %v199 = vld [vmem:[%s1 + $0xec] sm:$0xf]
  %v200 = vld [vmem:[%s1 + $0xf0] sm:$0xf]
  %v201 = vld [vmem:[%s1 + $0xf4] sm:$0xf]
  %v202 = vld [vmem:[%s1 + $0xf8] sm:$0xf]
  %v203 = vld [vmem:[%s1 + $0xfc] sm:$0xf]
  %v204 = vld [vmem:[%s1 + $0x100] sm:$0xf]
  %v205 = vld [vmem:[%s1 + $0x104] sm:$0xf]
  %v206 = vld [vmem:[%s1 + $0x108] sm:$0xf]
  %v207 = vld [vmem:[%s1 + $0x10c] sm:$0xf]
  %v208 = vld [vmem:[%s1 + $0x110] sm:$0xf]
  %v209 = vld [vmem:[%s1 + $0x114] sm:$0xf]
  %v210 = vld [vmem:[%s1 + $0x118] sm:$0xf]
  %v211 = vld [vmem:[%s1 + $0x11c] sm:$0xf]
  %v212 = vld [vmem:[%s1 + $0x120] sm:$0xf]
  %v213 = vld [vmem:[%s1 + $0x124] sm:$0xf]
  %v214 = vld [vmem:[%s1 + $0x128] sm:$0xf]
  %v215 = vld [vmem:[%s1 + $0x12c] sm:$0xf]
  %v216 = vld [vmem:[%s1 + $0x130] sm:$0xf]
  %v217 = vld [vmem:[%s1 + $0x134] sm:$0xf]
  %v218 = vld [vmem:[%s1 + $0x138] sm:$0xf]
  %v219 = vld [vmem:[%s1 + $0x13c] sm:$0xf]
  %v220 = vld [vmem:[%s1 + $0x140] sm:$0xf]
  %v221 = vld [vmem:[%s1 + $0x144] sm:$0xf]
  %v222 = vld [vmem:[%s1 + $0x148] sm:$0xf]
  %v223 = vld [vmem:[%s1 + $0x14c] sm:$0xf]
  %v224 = vld [vmem:[%s1 + $0x150] sm:$0xf]
  %v225 = vld [vmem:[%s1 + $0x154] sm:$0xf]
  %v226 = vld [vmem:[%s1 + $0x158] sm:$0xf]
  %v227 = vld [vmem:[%s1 + $0x15c] sm:$0xf]
  %v228 = vld [vmem:[%s1 + $0x160] sm:$0xf]
  %v229 = vld [vmem:[%s1 + $0x164] sm:$0xf]
  %v230 = vld [vmem:[%s1 + $0x168] sm:$0xf]
  %v231 = vld [vmem:[%s1 + $0x16c] sm:$0xf]
  %v232 = vld [vmem:[%s1 + $0x170] sm:$0xf]
  %v233 = vld [vmem:[%s1 + $0x174] sm:$0xf]
  %v234 = vld [vmem:[%s1 + $0x178] sm:$0xf]
  %v235 = vld [vmem:[%s1 + $0x17c] sm:$0xf]
  %v236 = vld [vmem:[%s1 + $0x180] sm:$0xf]
  %v237 = vld [vmem:[%s1 + $0x184] sm:$0xf]
  %v238 = vld [vmem:[%s1 + $0x188] sm:$0xf]
  %v239 = vld [vmem:[%s1 + $0x18c] sm:$0xf]
  %v240 = vld [vmem:[%s1 + $0x190] sm:$0xf]
  %v241 = vld [vmem:[%s1 + $0x194] sm:$0xf]
  %v242 = vld [vmem:[%s1 + $0x198] sm:$0xf]
  %v243 = vld [vmem:[%s1 + $0x19c] sm:$0xf]
  %v244 = vld [vmem:[%s1 + $0x1a0] sm:$0xf]
  %v245 = vld [vmem:[%s1 + $0x1a4] sm:$0xf]
  %v246 = vld [vmem:[%s1 + $0x1a8] sm:$0xf]
  %v247 = vld [vmem:[%s1 + $0x1ac] sm:$0xf]
  %v248 = vld [vmem:[%s1 + $0x1b0] sm:$0xf]
  %v249 = vld [vmem:[%s1 + $0x1b4] sm:$0xf]
  %v250 = vld [vmem:[%s1 + $0x1b8] sm:$0xf]
  %v251 = vld [vmem:[%s1 + $0x1bc] sm:$0xf]
  %v252 = vld [vmem:[%s1 + $0x1c0] sm:$0xf]
  %v253 = vld [vmem:[%s1 + $0x1c4] sm:$0xf]
  %v254 = vld [vmem:[%s1 + $0x1c8] sm:$0xf]
  %v255 = vld [vmem:[%s1 + $0x1cc] sm:$0xf]
  %v256 = vld [vmem:[%s1 + $0x1d0] sm:$0xf]
  %v257 = vld [vmem:[%s1 + $0x1d4] sm:$0xf]
  %v258 = vld [vmem:[%s1 + $0x1d8] sm:$0xf]
  %v259 = vld [vmem:[%s1 + $0x1dc] sm:$0xf]
  %v260 = vld [vmem:[%s1 + $0x1e0] sm:$0xf]
  %v261 = vld [vmem:[%s1 + $0x1e4] sm:$0xf]
  %v262 = vld [vmem:[%s1 + $0x1e8] sm:$0xf]
  %v263 = vld [vmem:[%s1 + $0x1ec] sm:$0xf]
  %v264 = vld [vmem:[%s1 + $0x1f0] sm:$0xf]
  %v265 = vld [vmem:[%s1 + $0x1f4] sm:$0xf]
  %v266 = vld [vmem:[%s1 + $0x1f8] sm:$0xf]
  %v267 = vld [vmem:[%s1 + $0x1fc] sm:$0xf]
  %v268 = vld [vmem:[%s1 + $0x200] sm:$0xf]
  %v269 = vld [vmem:[%s1 + $0x204] sm:$0xf]
  %v270 = vld [vmem:[%s1 + $0x208] sm:$0xf]
  %v271 = vld [vmem:[%s1 + $0x20c] sm:$0xf]
  %v272 = vld [vmem:[%s1 + $0x210] sm:$0xf]
  %v273 = vld [vmem:[%s1 + $0x214] sm:$0xf]
  %v274 = vld [vmem:[%s1 + $0x218] sm:$0xf]
  %v275 = vld [vmem:[%s1 + $0x21c] sm:$0xf]
  %v276 = vld [vmem:[%s1 + $0x220] sm:$0xf]
  %v277 = vld [vmem:[%s1 + $0x224] sm:$0xf]
  %v278 = vld [vmem:[%s1 + $0x228] sm:$0xf]
  %v279 = vld [vmem:[%s1 + $0x22c] sm:$0xf]
  %v280 = vld [vmem:[%s1 + $0x230] sm:$0xf]
  %v281 = vld [vmem:[%s1 + $0x234] sm:$0xf]
  %v282 = vld [vmem:[%s1 + $0x238] sm:$0xf]
  %v283 = vld [vmem:[%s1 + $0x23c] sm:$0xf]
  %v409 = vunpack.c.l.b16 %v15
  %v410 = vunpack.c.h.b16 %v15
  %v411 = vunpack.c.l.b16 %v16
  %v412 = vunpack.c.h.b16 %v16
  %v413 = vunpack.c.l.b16 %v17
  %v414 = vunpack.c.h.b16 %v17
  %v415 = vunpack.c.l.b16 %v18
  %v416 = vunpack.c.h.b16 %v18
  %v417 = vunpack.c.l.b16 %v19
  %v418 = vunpack.c.l.b16 %v20
  %v419 = vunpack.c.h.b16 %v20
  %v420 = vunpack.c.l.b16 %v21
  %v421 = vunpack.c.h.b16 %v21
  %v422 = vunpack.c.l.b16 %v22
  %v423 = vunpack.c.h.b16 %v22
  %v424 = vunpack.c.l.b16 %v23
  %v425 = vunpack.c.h.b16 %v23
  %v426 = vunpack.c.l.b16 %v24
  %v427 = vunpack.c.l.b16 %v25
  %v428 = vunpack.c.h.b16 %v25
  %v429 = vunpack.c.l.b16 %v26
  %v430 = vunpack.c.h.b16 %v26
  %v431 = vunpack.c.l.b16 %v27
  %v432 = vunpack.c.h.b16 %v27
  %v433 = vunpack.c.l.b16 %v28
  %v434 = vunpack.c.h.b16 %v28
  %v435 = vunpack.c.l.b16 %v29
  %v436 = vunpack.c.l.b16 %v30
  %v437 = vunpack.c.h.b16 %v30
  %v438 = vunpack.c.l.b16 %v31
  %v439 = vunpack.c.h.b16 %v31
  %v440 = vunpack.c.l.b16 %v32
  %v441 = vunpack.c.h.b16 %v32
  %v442 = vunpack.c.l.b16 %v33
  %v443 = vunpack.c.h.b16 %v33
  %v444 = vunpack.c.l.b16 %v34
  %v445 = vunpack.c.l.b16 %v35
  %v446 = vunpack.c.h.b16 %v35
  %v447 = vunpack.c.l.b16 %v36
  %v448 = vunpack.c.h.b16 %v36
  %v449 = vunpack.c.l.b16 %v37
  %v450 = vunpack.c.h.b16 %v37
  %v451 = vunpack.c.l.b16 %v38
  %v452 = vunpack.c.h.b16 %v38
  %v453 = vunpack.c.l.b16 %v39
  %v454 = vunpack.c.l.b16 %v40
  %v455 = vunpack.c.h.b16 %v40
  %v456 = vunpack.c.l.b16 %v41
  %v457 = vunpack.c.h.b16 %v41
  %v458 = vunpack.c.l.b16 %v42
  %v459 = vunpack.c.h.b16 %v42
  %v460 = vunpack.c.l.b16 %v43
  %v461 = vunpack.c.h.b16 %v43
  %v462 = vunpack.c.l.b16 %v44
  %v463 = vunpack.c.l.b16 %v45
  %v464 = vunpack.c.h.b16 %v45
  %v465 = vunpack.c.l.b16 %v46
  %v466 = vunpack.c.h.b16 %v46
  %v467 = vunpack.c.l.b16 %v47
  %v468 = vunpack.c.h.b16 %v47
  %v469 = vunpack.c.l.b16 %v48
  %v470 = vunpack.c.h.b16 %v48
  %v471 = vunpack.c.l.b16 %v49
  %v472 = vunpack.c.l.b16 %v50
  %v473 = vunpack.c.h.b16 %v50
  %v474 = vunpack.c.l.b16 %v51
  %v475 = vunpack.c.h.b16 %v51
  %v476 = vunpack.c.l.b16 %v52
  %v477 = vunpack.c.h.b16 %v52
  %v478 = vunpack.c.l.b16 %v53
  %v479 = vunpack.c.h.b16 %v53
  %v480 = vunpack.c.l.b16 %v54
  %v481 = vunpack.c.l.b16 %v55
  %v482 = vunpack.c.h.b16 %v55
  %v483 = vunpack.c.l.b16 %v56
  %v484 = vunpack.c.h.b16 %v56
  %v485 = vunpack.c.l.b16 %v57
  %v486 = vunpack.c.h.b16 %v57
  %v487 = vunpack.c.l.b16 %v58
  %v488 = vunpack.c.h.b16 %v58
  %v489 = vunpack.c.l.b16 %v59
  %v490 = vunpack.c.l.b16 %v60
  %v491 = vunpack.c.h.b16 %v60
  %v492 = vunpack.c.l.b16 %v61
  %v493 = vunpack.c.h.b16 %v61
  %v494 = vunpack.c.l.b16 %v62
  %v495 = vunpack.c.h.b16 %v62
  %v496 = vunpack.c.l.b16 %v63
  %v497 = vunpack.c.h.b16 %v63
  %v498 = vunpack.c.l.b16 %v64
  %v499 = vunpack.c.l.b16 %v65
  %v500 = vunpack.c.h.b16 %v65
  %v501 = vunpack.c.l.b16 %v66
  %v502 = vunpack.c.h.b16 %v66
  %v503 = vunpack.c.l.b16 %v67
  %v504 = vunpack.c.h.b16 %v67
  %v505 = vunpack.c.l.b16 %v68
  %v506 = vunpack.c.h.b16 %v68
  %v507 = vunpack.c.l.b16 %v69
  %v508 = vunpack.c.l.b16 %v70
  %v509 = vunpack.c.h.b16 %v70
  %v510 = vunpack.c.l.b16 %v71
  %v511 = vunpack.c.h.b16 %v71
  %v512 = vunpack.c.l.b16 %v72
  %v513 = vunpack.c.h.b16 %v72
  %v514 = vunpack.c.l.b16 %v73
  %v515 = vunpack.c.h.b16 %v73
  %v516 = vunpack.c.l.b16 %v74
  %v517 = vunpack.c.l.b16 %v75
  %v518 = vunpack.c.h.b16 %v75
  %v519 = vunpack.c.l.b16 %v76
  %v520 = vunpack.c.h.b16 %v76
  %v521 = vunpack.c.l.b16 %v77
  %v522 = vunpack.c.h.b16 %v77
  %v523 = vunpack.c.l.b16 %v78
  %v524 = vunpack.c.h.b16 %v78
  %v525 = vunpack.c.l.b16 %v79
  %v526 = vunpack.c.l.b16 %v80
  %v527 = vunpack.c.h.b16 %v80
  %v528 = vunpack.c.l.b16 %v81
  %v529 = vunpack.c.h.b16 %v81
  %v530 = vunpack.c.l.b16 %v82
  %v531 = vunpack.c.h.b16 %v82
  %v532 = vunpack.c.l.b16 %v83
  %v533 = vunpack.c.h.b16 %v83
  %v534 = vunpack.c.l.b16 %v84
  %v535 = vunpack.c.l.b16 %v85
  %v536 = vunpack.c.h.b16 %v85
  %v537 = vunpack.c.l.b16 %v86
  %v538 = vunpack.c.h.b16 %v86
  %v539 = vunpack.c.l.b16 %v87
  %v540 = vunpack.c.h.b16 %v87
  %v541 = vunpack.c.l.b16 %v88
  %v542 = vunpack.c.h.b16 %v88
  %v543 = vunpack.c.l.b16 %v89
  %v544 = vunpack.c.l.b16 %v90
  %v545 = vunpack.c.h.b16 %v90
  %v546 = vunpack.c.l.b16 %v91
  %v547 = vunpack.c.h.b16 %v91
  %v548 = vunpack.c.l.b16 %v92
  %v549 = vunpack.c.h.b16 %v92
  %v550 = vunpack.c.l.b16 %v93
  %v551 = vunpack.c.h.b16 %v93
  %v552 = vunpack.c.l.b16 %v94
  %v553 = vunpack.c.l.b16 %v95
  %v554 = vunpack.c.h.b16 %v95
  %v555 = vunpack.c.l.b16 %v96
  %v556 = vunpack.c.h.b16 %v96
  %v557 = vunpack.c.l.b16 %v97
  %v558 = vunpack.c.h.b16 %v97
  %v559 = vunpack.c.l.b16 %v98
  %v560 = vunpack.c.h.b16 %v98
  %v561 = vunpack.c.l.b16 %v99
  %v562 = vunpack.c.l.b16 %v100
  %v563 = vunpack.c.h.b16 %v100
  %v564 = vunpack.c.l.b16 %v101
  %v565 = vunpack.c.h.b16 %v101
  %v566 = vunpack.c.l.b16 %v102
  %v567 = vunpack.c.h.b16 %v102
  %v568 = vunpack.c.l.b16 %v103
  %v569 = vunpack.c.h.b16 %v103
  %v570 = vunpack.c.l.b16 %v104
  %v571 = vunpack.c.l.b16 %v105
  %v572 = vunpack.c.h.b16 %v105
  %v573 = vunpack.c.l.b16 %v106
  %v574 = vunpack.c.h.b16 %v106
  %v575 = vunpack.c.l.b16 %v107
  %v576 = vunpack.c.h.b16 %v107
  %v577 = vunpack.c.l.b16 %v108
  %v578 = vunpack.c.h.b16 %v108
  %v579 = vunpack.c.l.b16 %v109
  %v580 = vunpack.c.l.b16 %v110
  %v581 = vunpack.c.h.b16 %v110
  %v582 = vunpack.c.l.b16 %v111
  %v583 = vunpack.c.h.b16 %v111
  %v584 = vunpack.c.l.b16 %v112
  %v585 = vunpack.c.h.b16 %v112
  %v586 = vunpack.c.l.b16 %v113
  %v587 = vunpack.c.h.b16 %v113
  %v588 = vunpack.c.l.b16 %v114
  %v589 = vunpack.c.l.b16 %v115
  %v590 = vunpack.c.h.b16 %v115
  %v591 = vunpack.c.l.b16 %v116
  %v592 = vunpack.c.h.b16 %v116
  %v593 = vunpack.c.l.b16 %v117
  %v594 = vunpack.c.h.b16 %v117
  %v595 = vunpack.c.l.b16 %v118
  %v596 = vunpack.c.h.b16 %v118
  %v597 = vunpack.c.l.b16 %v119
  %v598 = vunpack.c.l.b16 %v120
  %v599 = vunpack.c.h.b16 %v120
  %v600 = vunpack.c.l.b16 %v121
  %v601 = vunpack.c.h.b16 %v121
  %v602 = vunpack.c.l.b16 %v122
  %v603 = vunpack.c.h.b16 %v122
  %v604 = vunpack.c.l.b16 %v123
  %v605 = vunpack.c.h.b16 %v123
  %v606 = vunpack.c.l.b16 %v124
  %v607 = vunpack.c.l.b16 %v125
  %v608 = vunpack.c.h.b16 %v125
  %v609 = vunpack.c.l.b16 %v126
  %v610 = vunpack.c.h.b16 %v126
  %v611 = vunpack.c.l.b16 %v127
  %v612 = vunpack.c.h.b16 %v127
  %v613 = vunpack.c.l.b16 %v128
  %v614 = vunpack.c.h.b16 %v128
  %v615 = vunpack.c.l.b16 %v129
  %v616 = vunpack.c.l.b16 %v130
  %v617 = vunpack.c.h.b16 %v130
  %v618 = vunpack.c.l.b16 %v131
  %v619 = vunpack.c.h.b16 %v131
  %v620 = vunpack.c.l.b16 %v132
  %v621 = vunpack.c.h.b16 %v132
  %v622 = vunpack.c.l.b16 %v133
  %v623 = vunpack.c.h.b16 %v133
  %v624 = vunpack.c.l.b16 %v134
  %v625 = vunpack.c.l.b16 %v135
  %v626 = vunpack.c.h.b16 %v135
  %v627 = vunpack.c.l.b16 %v136
  %v628 = vunpack.c.h.b16 %v136
  %v629 = vunpack.c.l.b16 %v137
  %v630 = vunpack.c.h.b16 %v137
  %v631 = vunpack.c.l.b16 %v138
  %v632 = vunpack.c.h.b16 %v138
  %v633 = vunpack.c.l.b16 %v139
  %v634 = vpack.c.b16 %v418, %v409
  %v635 = vpack.c.b16 %v419, %v410
  %v636 = vpack.c.b16 %v420, %v411
  %v637 = vpack.c.b16 %v421, %v412
  %v638 = vpack.c.b16 %v422, %v413
  %v639 = vpack.c.b16 %v423, %v414
  %v640 = vpack.c.b16 %v424, %v415
  %v641 = vpack.c.b16 %v425, %v416
  %v642 = vpack.c.b16 %v426, %v417
  %v643 = vpack.c.b16 %v436, %v427
  %v644 = vpack.c.b16 %v437, %v428
  %v645 = vpack.c.b16 %v438, %v429
  %v646 = vpack.c.b16 %v439, %v430
  %v647 = vpack.c.b16 %v440, %v431
  %v648 = vpack.c.b16 %v441, %v432
  %v649 = vpack.c.b16 %v442, %v433
  %v650 = vpack.c.b16 %v443, %v434
  %v651 = vpack.c.b16 %v444, %v435
  %v652 = vpack.c.b16 %v454, %v445
  %v653 = vpack.c.b16 %v455, %v446
  %v654 = vpack.c.b16 %v456, %v447
  %v655 = vpack.c.b16 %v457, %v448
  %v656 = vpack.c.b16 %v458, %v449
  %v657 = vpack.c.b16 %v459, %v450
  %v658 = vpack.c.b16 %v460, %v451
  %v659 = vpack.c.b16 %v461, %v452
  %v660 = vpack.c.b16 %v462, %v453
  %v661 = vpack.c.b16 %v472, %v463
  %v662 = vpack.c.b16 %v473, %v464
  %v663 = vpack.c.b16 %v474, %v465
  %v664 = vpack.c.b16 %v475, %v466
  %v665 = vpack.c.b16 %v476, %v467
  %v666 = vpack.c.b16 %v477, %v468
  %v667 = vpack.c.b16 %v478, %v469
  %v668 = vpack.c.b16 %v479, %v470
  %v669 = vpack.c.b16 %v480, %v471
  %v670 = vpack.c.b16 %v490, %v481
  %v671 = vpack.c.b16 %v491, %v482
  %v672 = vpack.c.b16 %v492, %v483
  %v673 = vpack.c.b16 %v493, %v484
  %v674 = vpack.c.b16 %v494, %v485
  %v675 = vpack.c.b16 %v495, %v486
  %v676 = vpack.c.b16 %v496, %v487
  %v677 = vpack.c.b16 %v497, %v488
  %v678 = vpack.c.b16 %v498, %v489
  %v679 = vpack.c.b16 %v508, %v499
  %v680 = vpack.c.b16 %v509, %v500
  %v681 = vpack.c.b16 %v510, %v501
  %v682 = vpack.c.b16 %v511, %v502
  %v683 = vpack.c.b16 %v512, %v503
  %v684 = vpack.c.b16 %v513, %v504
  %v685 = vpack.c.b16 %v514, %v505
  %v686 = vpack.c.b16 %v515, %v506
  %v687 = vpack.c.b16 %v516, %v507
  %v688 = vpack.c.b16 %v526, %v517
  %v689 = vpack.c.b16 %v527, %v518
  %v690 = vpack.c.b16 %v528, %v519
  %v691 = vpack.c.b16 %v529, %v520
  %v692 = vpack.c.b16 %v530, %v521
  %v693 = vpack.c.b16 %v531, %v522
  %v694 = vpack.c.b16 %v532, %v523
  %v695 = vpack.c.b16 %v533, %v524
  %v696 = vpack.c.b16 %v534, %v525
  %v697 = vpack.c.b16 %v544, %v535
  %v698 = vpack.c.b16 %v545, %v536
  %v699 = vpack.c.b16 %v546, %v537
  %v700 = vpack.c.b16 %v547, %v538
  %v701 = vpack.c.b16 %v548, %v539
  %v702 = vpack.c.b16 %v549, %v540
  %v703 = vpack.c.b16 %v550, %v541
  %v704 = vpack.c.b16 %v551, %v542
  %v705 = vpack.c.b16 %v552, %v543
  %v706 = vpack.c.b16 %v562, %v553
  %v707 = vpack.c.b16 %v563, %v554
  %v708 = vpack.c.b16 %v564, %v555
  %v709 = vpack.c.b16 %v565, %v556
  %v710 = vpack.c.b16 %v566, %v557
  %v711 = vpack.c.b16 %v567, %v558
  %v712 = vpack.c.b16 %v568, %v559
  %v713 = vpack.c.b16 %v569, %v560
  %v714 = vpack.c.b16 %v570, %v561
  %v715 = vpack.c.b16 %v580, %v571
  %v716 = vpack.c.b16 %v581, %v572
  %v717 = vpack.c.b16 %v582, %v573
  %v718 = vpack.c.b16 %v583, %v574
  %v719 = vpack.c.b16 %v584, %v575
  %v720 = vpack.c.b16 %v585, %v576
  %v721 = vpack.c.b16 %v586, %v577
  %v722 = vpack.c.b16 %v587, %v578
  %v723 = vpack.c.b16 %v588, %v579
  %v724 = vpack.c.b16 %v598, %v589
  %v725 = vpack.c.b16 %v599, %v590
  %v726 = vpack.c.b16 %v600, %v591
  %v727 = vpack.c.b16 %v601, %v592
  %v728 = vpack.c.b16 %v602, %v593
  %v729 = vpack.c.b16 %v603, %v594
  %v730 = vpack.c.b16 %v604, %v595
  %v731 = vpack.c.b16 %v605, %v596
  %v732 = vpack.c.b16 %v606, %v597
  %v733 = vpack.c.b16 %v616, %v607
  %v734 = vpack.c.b16 %v617, %v608
  %v735 = vpack.c.b16 %v618, %v609
  %v736 = vpack.c.b16 %v619, %v610
  %v737 = vpack.c.b16 %v620, %v611
  %v738 = vpack.c.b16 %v621, %v612
  %v739 = vpack.c.b16 %v622, %v613
  %v740 = vpack.c.b16 %v623, %v614
  %v741 = vpack.c.b16 %v624, %v615
  %v742 = vpack.c.b16 %v625, %v625
  %v743 = vpack.c.b16 %v626, %v626
  %v744 = vpack.c.b16 %v627, %v627
  %v745 = vpack.c.b16 %v628, %v628
  %v746 = vpack.c.b16 %v629, %v629
  %v747 = vpack.c.b16 %v630, %v630
  %v748 = vpack.c.b16 %v631, %v631
  %v749 = vpack.c.b16 %v632, %v632
  %v750 = vpack.c.b16 %v633, %v633
  %v1012 = vunpack.c.l.b16 %v140
  %v1013 = vunpack.c.l.b16 %v141
  %v1014 = vunpack.c.l.b16 %v142
  %v1015 = vunpack.c.l.b16 %v143
  %v1016 = vunpack.c.l.b16 %v144
  %v1017 = vunpack.c.l.b16 %v145
  %v1018 = vunpack.c.l.b16 %v146
  %v1019 = vunpack.c.l.b16 %v147
  %v1020 = vunpack.c.l.b16 %v148
  %v1021 = vunpack.c.l.b16 %v149
  %v1022 = vunpack.c.l.b16 %v150
  %v1023 = vunpack.c.l.b16 %v151
  %v1024 = vunpack.c.l.b16 %v152
  %v1025 = vunpack.c.l.b16 %v153
  %v1026 = vunpack.c.l.b16 %v154
  %v1027 = vunpack.c.l.b16 %v155
  %v1028 = vunpack.c.l.b16 %v156
  %v1029 = vunpack.c.l.b16 %v157
  %v1030 = vunpack.c.l.b16 %v158
  %v1031 = vunpack.c.l.b16 %v159
  %v1032 = vunpack.c.l.b16 %v160
  %v1033 = vunpack.c.l.b16 %v161
  %v1034 = vunpack.c.l.b16 %v162
  %v1035 = vunpack.c.l.b16 %v163
  %v1036 = vunpack.c.l.b16 %v164
  %v1037 = vunpack.c.l.b16 %v165
  %v1038 = vunpack.c.l.b16 %v166
  %v1039 = vunpack.c.l.b16 %v167
  %v1040 = vunpack.c.l.b16 %v168
  %v1041 = vunpack.c.l.b16 %v169
  %v1042 = vunpack.c.l.b16 %v170
  %v1043 = vunpack.c.l.b16 %v171
  %v1044 = vunpack.c.l.b16 %v172
  %v1045 = vunpack.c.l.b16 %v173
  %v1046 = vunpack.c.l.b16 %v174
  %v1047 = vunpack.c.l.b16 %v175
  %v1048 = vunpack.c.l.b16 %v176
  %v1049 = vunpack.c.l.b16 %v177
  %v1050 = vunpack.c.l.b16 %v178
  %v1051 = vunpack.c.l.b16 %v179
  %v1052 = vunpack.c.l.b16 %v180
  %v1053 = vunpack.c.l.b16 %v181
  %v1054 = vunpack.c.l.b16 %v182
  %v1055 = vunpack.c.l.b16 %v183
  %v1056 = vunpack.c.l.b16 %v184
  %v1057 = vunpack.c.l.b16 %v185
  %v1058 = vunpack.c.l.b16 %v186
  %v1059 = vunpack.c.l.b16 %v187
  %v1060 = vunpack.c.l.b16 %v188
  %v1061 = vunpack.c.l.b16 %v189
  %v1062 = vunpack.c.l.b16 %v190
  %v1063 = vunpack.c.l.b16 %v191
  %v1064 = vunpack.c.l.b16 %v192
  %v1065 = vunpack.c.l.b16 %v193
  %v1066 = vunpack.c.l.b16 %v194
  %v1067 = vunpack.c.l.b16 %v195
  %v1068 = vunpack.c.l.b16 %v196
  %v1069 = vunpack.c.l.b16 %v197
  %v1070 = vunpack.c.l.b16 %v198
  %v1071 = vunpack.c.l.b16 %v199
  %v1072 = vunpack.c.l.b16 %v200
  %v1073 = vunpack.c.l.b16 %v201
  %v1074 = vunpack.c.l.b16 %v202
  %v1075 = vunpack.c.l.b16 %v203
  %v1076 = vunpack.c.l.b16 %v204
  %v1077 = vunpack.c.l.b16 %v205
  %v1078 = vunpack.c.l.b16 %v206
  %v1079 = vunpack.c.l.b16 %v207
  %v1080 = vunpack.c.l.b16 %v208
  %v1081 = vunpack.c.l.b16 %v209
  %v1082 = vunpack.c.l.b16 %v210
  %v1083 = vunpack.c.l.b16 %v211
  %v1084 = vunpack.c.l.b16 %v212
  %v1085 = vunpack.c.l.b16 %v213
  %v1086 = vunpack.c.l.b16 %v214
  %v1087 = vunpack.c.l.b16 %v215
  %v1088 = vunpack.c.l.b16 %v216
  %v1089 = vunpack.c.l.b16 %v217
  %v1090 = vunpack.c.l.b16 %v218
  %v1091 = vunpack.c.l.b16 %v219
  %v1092 = vunpack.c.l.b16 %v220
  %v1093 = vunpack.c.l.b16 %v221
  %v1094 = vunpack.c.l.b16 %v222
  %v1095 = vunpack.c.l.b16 %v223
  %v1096 = vunpack.c.l.b16 %v224
  %v1097 = vunpack.c.l.b16 %v225
  %v1098 = vunpack.c.l.b16 %v226
  %v1099 = vunpack.c.l.b16 %v227
  %v1100 = vunpack.c.l.b16 %v228
  %v1101 = vunpack.c.l.b16 %v229
  %v1102 = vunpack.c.l.b16 %v230
  %v1103 = vunpack.c.l.b16 %v231
  %v1104 = vunpack.c.l.b16 %v232
  %v1105 = vunpack.c.l.b16 %v233
  %v1106 = vunpack.c.l.b16 %v234
  %v1107 = vunpack.c.l.b16 %v235
  %v1108 = vunpack.c.l.b16 %v236
  %v1109 = vunpack.c.l.b16 %v237
  %v1110 = vunpack.c.l.b16 %v238
  %v1111 = vunpack.c.l.b16 %v239
  %v1112 = vunpack.c.l.b16 %v240
  %v1113 = vunpack.c.l.b16 %v241
  %v1114 = vunpack.c.l.b16 %v242
  %v1115 = vunpack.c.l.b16 %v243
  %v1116 = vunpack.c.l.b16 %v244
  %v1117 = vunpack.c.l.b16 %v245
  %v1118 = vunpack.c.l.b16 %v246
  %v1119 = vunpack.c.l.b16 %v247
  %v1120 = vunpack.c.l.b16 %v248
  %v1121 = vunpack.c.l.b16 %v249
  %v1122 = vunpack.c.l.b16 %v250
  %v1123 = vunpack.c.l.b16 %v251
  %v1124 = vunpack.c.l.b16 %v252
  %v1125 = vunpack.c.l.b16 %v253
  %v1126 = vunpack.c.l.b16 %v254
  %v1127 = vunpack.c.l.b16 %v255
  %v1128 = vunpack.c.l.b16 %v256
  %v1129 = vunpack.c.l.b16 %v257
  %v1130 = vunpack.c.l.b16 %v258
  %v1131 = vunpack.c.l.b16 %v259
  %v1132 = vunpack.c.l.b16 %v260
  %v1133 = vunpack.c.l.b16 %v261
  %v1134 = vunpack.c.l.b16 %v262
  %v1135 = vunpack.c.l.b16 %v263
  %v1136 = vunpack.c.l.b16 %v264
  %v1137 = vunpack.c.l.b16 %v265
  %v1138 = vunpack.c.l.b16 %v266
  %v1139 = vunpack.c.l.b16 %v267
  %v1140 = vunpack.c.l.b16 %v268
  %v1141 = vunpack.c.l.b16 %v269
  %v1142 = vunpack.c.l.b16 %v270
  %v1143 = vunpack.c.l.b16 %v271
  %v1144 = vunpack.c.l.b16 %v272
  %v1145 = vunpack.c.l.b16 %v273
  %v1146 = vunpack.c.l.b16 %v274
  %v1147 = vunpack.c.l.b16 %v275
  %v1148 = vunpack.c.l.b16 %v276
  %v1149 = vunpack.c.l.b16 %v277
  %v1150 = vunpack.c.l.b16 %v278
  %v1151 = vunpack.c.l.b16 %v279
  %v1152 = vunpack.c.l.b16 %v280
  %v1153 = vunpack.c.l.b16 %v281
  %v1154 = vunpack.c.l.b16 %v282
  %v1155 = vunpack.c.l.b16 %v283
  %v1156 = vpack.c.b16 %v1013, %v1012
  %v1157 = vpack.c.b16 %v1015, %v1014
  %v1158 = vpack.c.b16 %v1017, %v1016
  %v1159 = vpack.c.b16 %v1019, %v1018
  %v1160 = vpack.c.b16 %v1021, %v1020
  %v1161 = vpack.c.b16 %v1023, %v1022
  %v1162 = vpack.c.b16 %v1025, %v1024
  %v1163 = vpack.c.b16 %v1027, %v1026
  %v1164 = vpack.c.b16 %v1029, %v1028
  %v1165 = vpack.c.b16 %v1031, %v1030
  %v1166 = vpack.c.b16 %v1033, %v1032
  %v1167 = vpack.c.b16 %v1035, %v1034
  %v1168 = vpack.c.b16 %v1037, %v1036
  %v1169 = vpack.c.b16 %v1039, %v1038
  %v1170 = vpack.c.b16 %v1041, %v1040
  %v1171 = vpack.c.b16 %v1043, %v1042
  %v1172 = vpack.c.b16 %v1045, %v1044
  %v1173 = vpack.c.b16 %v1047, %v1046
  %v1174 = vpack.c.b16 %v1049, %v1048
  %v1175 = vpack.c.b16 %v1051, %v1050
  %v1176 = vpack.c.b16 %v1053, %v1052
  %v1177 = vpack.c.b16 %v1055, %v1054
  %v1178 = vpack.c.b16 %v1057, %v1056
  %v1179 = vpack.c.b16 %v1059, %v1058
  %v1180 = vpack.c.b16 %v1061, %v1060
  %v1181 = vpack.c.b16 %v1063, %v1062
  %v1182 = vpack.c.b16 %v1065, %v1064
  %v1183 = vpack.c.b16 %v1067, %v1066
  %v1184 = vpack.c.b16 %v1069, %v1068
  %v1185 = vpack.c.b16 %v1071, %v1070
  %v1186 = vpack.c.b16 %v1073, %v1072
  %v1187 = vpack.c.b16 %v1075, %v1074
  %v1188 = vpack.c.b16 %v1077, %v1076
  %v1189 = vpack.c.b16 %v1079, %v1078
  %v1190 = vpack.c.b16 %v1081, %v1080
  %v1191 = vpack.c.b16 %v1083, %v1082
  %v1192 = vpack.c.b16 %v1085, %v1084
  %v1193 = vpack.c.b16 %v1087, %v1086
  %v1194 = vpack.c.b16 %v1089, %v1088
  %v1195 = vpack.c.b16 %v1091, %v1090
  %v1196 = vpack.c.b16 %v1093, %v1092
  %v1197 = vpack.c.b16 %v1095, %v1094
  %v1198 = vpack.c.b16 %v1097, %v1096
  %v1199 = vpack.c.b16 %v1099, %v1098
  %v1200 = vpack.c.b16 %v1101, %v1100
  %v1201 = vpack.c.b16 %v1103, %v1102
  %v1202 = vpack.c.b16 %v1105, %v1104
  %v1203 = vpack.c.b16 %v1107, %v1106
  %v1204 = vpack.c.b16 %v1109, %v1108
  %v1205 = vpack.c.b16 %v1111, %v1110
  %v1206 = vpack.c.b16 %v1113, %v1112
  %v1207 = vpack.c.b16 %v1115, %v1114
  %v1208 = vpack.c.b16 %v1117, %v1116
  %v1209 = vpack.c.b16 %v1119, %v1118
  %v1210 = vpack.c.b16 %v1121, %v1120
  %v1211 = vpack.c.b16 %v1123, %v1122
  %v1212 = vpack.c.b16 %v1125, %v1124
  %v1213 = vpack.c.b16 %v1127, %v1126
  %v1214 = vpack.c.b16 %v1129, %v1128
  %v1215 = vpack.c.b16 %v1131, %v1130
  %v1216 = vpack.c.b16 %v1133, %v1132
  %v1217 = vpack.c.b16 %v1135, %v1134
  %v1218 = vpack.c.b16 %v1137, %v1136
  %v1219 = vpack.c.b16 %v1139, %v1138
  %v1220 = vpack.c.b16 %v1141, %v1140
  %v1221 = vpack.c.b16 %v1143, %v1142
  %v1222 = vpack.c.b16 %v1145, %v1144
  %v1223 = vpack.c.b16 %v1147, %v1146
  %v1224 = vpack.c.b16 %v1149, %v1148
  %v1225 = vpack.c.b16 %v1151, %v1150
  %v1226 = vpack.c.b16 %v1153, %v1152
  %v1227 = vpack.c.b16 %v1155, %v1154
  %1300 = vmatpush.bf16.msra.mxu0 %v1163
  %1301 = vmatpush.bf16.msra.mxu0 %v1162
  %1302 = vmatpush.bf16.msra.mxu0 %v1161
  %1303 = vmatpush.bf16.msra.mxu0 %v1160
  %1304 = vmatpush.bf16.msra.mxu0 %v1159
  %1305 = vmatpush.bf16.msra.mxu0 %v1158
  %1306 = vmatpush.bf16.msra.mxu0 %v1157
  %1307 = vmatpush.bf16.msra.mxu0 %v1156
  %1308 = vmatmul.bf16.gmra.mxu0 %v634
  %v1309 = vpop.f32.mrf.mxu0
  %v1310 = vadd.f32 0.0, %v1309
  %v1311 = vpop.f32.mrf.mxu0
  %v1312 = vadd.f32 0.0, %v1311
  %1313 = vmatmul.bf16.gmra.mxu0 %v643
  %v1314 = vpop.f32.mrf.mxu0
  %v1315 = vadd.f32 0.0, %v1314
  %v1316 = vpop.f32.mrf.mxu0
  %v1317 = vadd.f32 0.0, %v1316
  %1318 = vmatmul.bf16.gmra.mxu0 %v652
  %v1319 = vpop.f32.mrf.mxu0
  %v1320 = vadd.f32 0.0, %v1319
  %v1321 = vpop.f32.mrf.mxu0
  %v1322 = vadd.f32 0.0, %v1321
  %1323 = vmatmul.bf16.gmra.mxu0 %v661
  %v1324 = vpop.f32.mrf.mxu0
  %v1325 = vadd.f32 0.0, %v1324
  %v1326 = vpop.f32.mrf.mxu0
  %v1327 = vadd.f32 0.0, %v1326
  %1328 = vmatmul.bf16.gmra.mxu0 %v670
  %v1329 = vpop.f32.mrf.mxu0
  %v1330 = vadd.f32 0.0, %v1329
  %v1331 = vpop.f32.mrf.mxu0
  %v1332 = vadd.f32 0.0, %v1331
  %1333 = vmatmul.bf16.gmra.mxu0 %v679
  %v1334 = vpop.f32.mrf.mxu0
  %v1335 = vadd.f32 0.0, %v1334
  %v1336 = vpop.f32.mrf.mxu0
  %v1337 = vadd.f32 0.0, %v1336
  %1338 = vmatmul.bf16.gmra.mxu0 %v688
  %v1339 = vpop.f32.mrf.mxu0
  %v1340 = vadd.f32 0.0, %v1339
  %v1341 = vpop.f32.mrf.mxu0
  %v1342 = vadd.f32 0.0, %v1341
  %1343 = vmatmul.bf16.gmra.mxu0 %v697
  %v1344 = vpop.f32.mrf.mxu0
  %v1345 = vadd.f32 0.0, %v1344
  %v1346 = vpop.f32.mrf.mxu0
  %v1347 = vadd.f32 0.0, %v1346
  %1348 = vmatmul.bf16.gmra.mxu0 %v706
  %v1349 = vpop.f32.mrf.mxu0
  %v1350 = vadd.f32 0.0, %v1349
  %v1351 = vpop.f32.mrf.mxu0
  %v1352 = vadd.f32 0.0, %v1351
  %1353 = vmatmul.bf16.gmra.mxu0 %v715
  %v1354 = vpop.f32.mrf.mxu0
  %v1355 = vadd.f32 0.0, %v1354
  %v1356 = vpop.f32.mrf.mxu0
  %v1357 = vadd.f32 0.0, %v1356
  %1358 = vmatmul.bf16.gmra.mxu0 %v724
  %v1359 = vpop.f32.mrf.mxu0
  %v1360 = vadd.f32 0.0, %v1359
  %v1361 = vpop.f32.mrf.mxu0
  %v1362 = vadd.f32 0.0, %v1361
  %1363 = vmatmul.bf16.gmra.mxu0 %v733
  %v1364 = vpop.f32.mrf.mxu0
  %v1365 = vadd.f32 0.0, %v1364
  %v1366 = vpop.f32.mrf.mxu0
  %v1367 = vadd.f32 0.0, %v1366
  %1368 = vmatmul.bf16.gmra.mxu0 %v742
  %v1369 = vpop.f32.mrf.mxu0
  %v1370 = vadd.f32 0.0, %v1369
  %v1371 = vpop.f32.mrf.mxu0
  %1372 = vdwg.mxu0
  %1373 = vmatpush.bf16.msra.mxu0 %v1171
  %1374 = vmatpush.bf16.msra.mxu0 %v1170
  %1375 = vmatpush.bf16.msra.mxu0 %v1169
  %1376 = vmatpush.bf16.msra.mxu0 %v1168
  %1377 = vmatpush.bf16.msra.mxu0 %v1167
  %1378 = vmatpush.bf16.msra.mxu0 %v1166
  %1379 = vmatpush.bf16.msra.mxu0 %v1165
  %1380 = vmatpush.bf16.msra.mxu0 %v1164
  %1381 = vmatmul.bf16.gmra.mxu0 %v635
  %v1382 = vpop.f32.mrf.mxu0
  %v1383 = vadd.f32 %v1310, %v1382
  %v1384 = vpop.f32.mrf.mxu0
  %v1385 = vadd.f32 %v1312, %v1384
  %1386 = vmatmul.bf16.gmra.mxu0 %v644
  %v1387 = vpop.f32.mrf.mxu0
  %v1388 = vadd.f32 %v1315, %v1387
  %v1389 = vpop.f32.mrf.mxu0
  %v1390 = vadd.f32 %v1317, %v1389
  %1391 = vmatmul.bf16.gmra.mxu0 %v653
  %v1392 = vpop.f32.mrf.mxu0
  %v1393 = vadd.f32 %v1320, %v1392
  %v1394 = vpop.f32.mrf.mxu0
  %v1395 = vadd.f32 %v1322, %v1394
  %1396 = vmatmul.bf16.gmra.mxu0 %v662
  %v1397 = vpop.f32.mrf.mxu0
  %v1398 = vadd.f32 %v1325, %v1397
  %v1399 = vpop.f32.mrf.mxu0
  %v1400 = vadd.f32 %v1327, %v1399
  %1401 = vmatmul.bf16.gmra.mxu0 %v671
  %v1402 = vpop.f32.mrf.mxu0
  %v1403 = vadd.f32 %v1330, %v1402
  %v1404 = vpop.f32.mrf.mxu0
  %v1405 = vadd.f32 %v1332, %v1404
  %1406 = vmatmul.bf16.gmra.mxu0 %v680
  %v1407 = vpop.f32.mrf.mxu0
  %v1408 = vadd.f32 %v1335, %v1407
  %v1409 = vpop.f32.mrf.mxu0
  %v1410 = vadd.f32 %v1337, %v1409
  %1411 = vmatmul.bf16.gmra.mxu0 %v689
  %v1412 = vpop.f32.mrf.mxu0
  %v1413 = vadd.f32 %v1340, %v1412
  %v1414 = vpop.f32.mrf.mxu0
  %v1415 = vadd.f32 %v1342, %v1414
  %1416 = vmatmul.bf16.gmra.mxu0 %v698
  %v1417 = vpop.f32.mrf.mxu0
  %v1418 = vadd.f32 %v1345, %v1417
  %v1419 = vpop.f32.mrf.mxu0
  %v1420 = vadd.f32 %v1347, %v1419
  %1421 = vmatmul.bf16.gmra.mxu0 %v707
  %v1422 = vpop.f32.mrf.mxu0
  %v1423 = vadd.f32 %v1350, %v1422
  %v1424 = vpop.f32.mrf.mxu0
  %v1425 = vadd.f32 %v1352, %v1424
  %1426 = vmatmul.bf16.gmra.mxu0 %v716
  %v1427 = vpop.f32.mrf.mxu0
  %v1428 = vadd.f32 %v1355, %v1427
  %v1429 = vpop.f32.mrf.mxu0
  %v1430 = vadd.f32 %v1357, %v1429
  %1431 = vmatmul.bf16.gmra.mxu0 %v725
  %v1432 = vpop.f32.mrf.mxu0
  %v1433 = vadd.f32 %v1360, %v1432
  %v1434 = vpop.f32.mrf.mxu0
  %v1435 = vadd.f32 %v1362, %v1434
  %1436 = vmatmul.bf16.gmra.mxu0 %v734
  %v1437 = vpop.f32.mrf.mxu0
  %v1438 = vadd.f32 %v1365, %v1437
  %v1439 = vpop.f32.mrf.mxu0
  %v1440 = vadd.f32 %v1367, %v1439
  %1441 = vmatmul.bf16.gmra.mxu0 %v743
  %v1442 = vpop.f32.mrf.mxu0
  %v1443 = vadd.f32 %v1370, %v1442
  %v1444 = vpop.f32.mrf.mxu0
  %1445 = vdwg.mxu0
  %1446 = vmatpush.bf16.msra.mxu0 %v1179
  %1447 = vmatpush.bf16.msra.mxu0 %v1178
  %1448 = vmatpush.bf16.msra.mxu0 %v1177
  %1449 = vmatpush.bf16.msra.mxu0 %v1176
  %1450 = vmatpush.bf16.msra.mxu0 %v1175
  %1451 = vmatpush.bf16.msra.mxu0 %v1174
  %1452 = vmatpush.bf16.msra.mxu0 %v1173
  %1453 = vmatpush.bf16.msra.mxu0 %v1172
  %1454 = vmatmul.bf16.gmra.mxu0 %v636
  %v1455 = vpop.f32.mrf.mxu0
  %v1456 = vadd.f32 %v1383, %v1455
  %v1457 = vpop.f32.mrf.mxu0
  %v1458 = vadd.f32 %v1385, %v1457
  %1459 = vmatmul.bf16.gmra.mxu0 %v645
  %v1460 = vpop.f32.mrf.mxu0
  %v1461 = vadd.f32 %v1388, %v1460
  %v1462 = vpop.f32.mrf.mxu0
  %v1463 = vadd.f32 %v1390, %v1462
  %1464 = vmatmul.bf16.gmra.mxu0 %v654
  %v1465 = vpop.f32.mrf.mxu0
  %v1466 = vadd.f32 %v1393, %v1465
  %v1467 = vpop.f32.mrf.mxu0
  %v1468 = vadd.f32 %v1395, %v1467
  %1469 = vmatmul.bf16.gmra.mxu0 %v663
  %v1470 = vpop.f32.mrf.mxu0
  %v1471 = vadd.f32 %v1398, %v1470
  %v1472 = vpop.f32.mrf.mxu0
  %v1473 = vadd.f32 %v1400, %v1472
  %1474 = vmatmul.bf16.gmra.mxu0 %v672
  %v1475 = vpop.f32.mrf.mxu0
  %v1476 = vadd.f32 %v1403, %v1475
  %v1477 = vpop.f32.mrf.mxu0
  %v1478 = vadd.f32 %v1405, %v1477
  %1479 = vmatmul.bf16.gmra.mxu0 %v681
  %v1480 = vpop.f32.mrf.mxu0
  %v1481 = vadd.f32 %v1408, %v1480
  %v1482 = vpop.f32.mrf.mxu0
  %v1483 = vadd.f32 %v1410, %v1482
  %1484 = vmatmul.bf16.gmra.mxu0 %v690
  %v1485 = vpop.f32.mrf.mxu0
  %v1486 = vadd.f32 %v1413, %v1485
  %v1487 = vpop.f32.mrf.mxu0
  %v1488 = vadd.f32 %v1415, %v1487
  %1489 = vmatmul.bf16.gmra.mxu0 %v699
  %v1490 = vpop.f32.mrf.mxu0
  %v1491 = vadd.f32 %v1418, %v1490
  %v1492 = vpop.f32.mrf.mxu0
  %v1493 = vadd.f32 %v1420, %v1492
  %1494 = vmatmul.bf16.gmra.mxu0 %v708
  %v1495 = vpop.f32.mrf.mxu0
  %v1496 = vadd.f32 %v1423, %v1495
  %v1497 = vpop.f32.mrf.mxu0
  %v1498 = vadd.f32 %v1425, %v1497
  %1499 = vmatmul.bf16.gmra.mxu0 %v717
  %v1500 = vpop.f32.mrf.mxu0
  %v1501 = vadd.f32 %v1428, %v1500
  %v1502 = vpop.f32.mrf.mxu0
  %v1503 = vadd.f32 %v1430, %v1502
  %1504 = vmatmul.bf16.gmra.mxu0 %v726
  %v1505 = vpop.f32.mrf.mxu0
  %v1506 = vadd.f32 %v1433, %v1505
  %v1507 = vpop.f32.mrf.mxu0
  %v1508 = vadd.f32 %v1435, %v1507
  %1509 = vmatmul.bf16.gmra.mxu0 %v735
  %v1510 = vpop.f32.mrf.mxu0
  %v1511 = vadd.f32 %v1438, %v1510
  %v1512 = vpop.f32.mrf.mxu0
  %v1513 = vadd.f32 %v1440, %v1512
  %1514 = vmatmul.bf16.gmra.mxu0 %v744
  %v1515 = vpop.f32.mrf.mxu0
  %v1516 = vadd.f32 %v1443, %v1515
  %v1517 = vpop.f32.mrf.mxu0
  %1518 = vdwg.mxu0
  %1519 = vmatpush.bf16.msra.mxu0 %v1187
  %1520 = vmatpush.bf16.msra.mxu0 %v1186
  %1521 = vmatpush.bf16.msra.mxu0 %v1185
  %1522 = vmatpush.bf16.msra.mxu0 %v1184
  %1523 = vmatpush.bf16.msra.mxu0 %v1183
  %1524 = vmatpush.bf16.msra.mxu0 %v1182
  %1525 = vmatpush.bf16.msra.mxu0 %v1181
  %1526 = vmatpush.bf16.msra.mxu0 %v1180
  %1527 = vmatmul.bf16.gmra.mxu0 %v637
  %v1528 = vpop.f32.mrf.mxu0
  %v1529 = vadd.f32 %v1456, %v1528
  %v1530 = vpop.f32.mrf.mxu0
  %v1531 = vadd.f32 %v1458, %v1530
  %1532 = vmatmul.bf16.gmra.mxu0 %v646
  %v1533 = vpop.f32.mrf.mxu0
  %v1534 = vadd.f32 %v1461, %v1533
  %v1535 = vpop.f32.mrf.mxu0
  %v1536 = vadd.f32 %v1463, %v1535
  %1537 = vmatmul.bf16.gmra.mxu0 %v655
  %v1538 = vpop.f32.mrf.mxu0
  %v1539 = vadd.f32 %v1466, %v1538
  %v1540 = vpop.f32.mrf.mxu0
  %v1541 = vadd.f32 %v1468, %v1540
  %1542 = vmatmul.bf16.gmra.mxu0 %v664
  %v1543 = vpop.f32.mrf.mxu0
  %v1544 = vadd.f32 %v1471, %v1543
  %v1545 = vpop.f32.mrf.mxu0
  %v1546 = vadd.f32 %v1473, %v1545
  %1547 = vmatmul.bf16.gmra.mxu0 %v673
  %v1548 = vpop.f32.mrf.mxu0
  %v1549 = vadd.f32 %v1476, %v1548
  %v1550 = vpop.f32.mrf.mxu0
  %v1551 = vadd.f32 %v1478, %v1550
  %1552 = vmatmul.bf16.gmra.mxu0 %v682
  %v1553 = vpop.f32.mrf.mxu0
  %v1554 = vadd.f32 %v1481, %v1553
  %v1555 = vpop.f32.mrf.mxu0
  %v1556 = vadd.f32 %v1483, %v1555
  %1557 = vmatmul.bf16.gmra.mxu0 %v691
  %v1558 = vpop.f32.mrf.mxu0
  %v1559 = vadd.f32 %v1486, %v1558
  %v1560 = vpop.f32.mrf.mxu0
  %v1561 = vadd.f32 %v1488, %v1560
  %1562 = vmatmul.bf16.gmra.mxu0 %v700
  %v1563 = vpop.f32.mrf.mxu0
  %v1564 = vadd.f32 %v1491, %v1563
  %v1565 = vpop.f32.mrf.mxu0
  %v1566 = vadd.f32 %v1493, %v1565
  %1567 = vmatmul.bf16.gmra.mxu0 %v709
  %v1568 = vpop.f32.mrf.mxu0
  %v1569 = vadd.f32 %v1496, %v1568
  %v1570 = vpop.f32.mrf.mxu0
  %v1571 = vadd.f32 %v1498, %v1570
  %1572 = vmatmul.bf16.gmra.mxu0 %v718
  %v1573 = vpop.f32.mrf.mxu0
  %v1574 = vadd.f32 %v1501, %v1573
  %v1575 = vpop.f32.mrf.mxu0
  %v1576 = vadd.f32 %v1503, %v1575
  %1577 = vmatmul.bf16.gmra.mxu0 %v727
  %v1578 = vpop.f32.mrf.mxu0
  %v1579 = vadd.f32 %v1506, %v1578
  %v1580 = vpop.f32.mrf.mxu0
  %v1581 = vadd.f32 %v1508, %v1580
  %1582 = vmatmul.bf16.gmra.mxu0 %v736
  %v1583 = vpop.f32.mrf.mxu0
  %v1584 = vadd.f32 %v1511, %v1583
  %v1585 = vpop.f32.mrf.mxu0
  %v1586 = vadd.f32 %v1513, %v1585
  %1587 = vmatmul.bf16.gmra.mxu0 %v745
  %v1588 = vpop.f32.mrf.mxu0
  %v1589 = vadd.f32 %v1516, %v1588
  %v1590 = vpop.f32.mrf.mxu0
  %1591 = vdwg.mxu0
  %1592 = vmatpush.bf16.msra.mxu0 %v1195
  %1593 = vmatpush.bf16.msra.mxu0 %v1194
  %1594 = vmatpush.bf16.msra.mxu0 %v1193
  %1595 = vmatpush.bf16.msra.mxu0 %v1192
  %1596 = vmatpush.bf16.msra.mxu0 %v1191
  %1597 = vmatpush.bf16.msra.mxu0 %v1190
  %1598 = vmatpush.bf16.msra.mxu0 %v1189
  %1599 = vmatpush.bf16.msra.mxu0 %v1188
  %1600 = vmatmul.bf16.gmra.mxu0 %v638
  %v1601 = vpop.f32.mrf.mxu0
  %v1602 = vadd.f32 %v1529, %v1601
  %v1603 = vpop.f32.mrf.mxu0
  %v1604 = vadd.f32 %v1531, %v1603
  %1605 = vmatmul.bf16.gmra.mxu0 %v647
  %v1606 = vpop.f32.mrf.mxu0
  %v1607 = vadd.f32 %v1534, %v1606
  %v1608 = vpop.f32.mrf.mxu0
  %v1609 = vadd.f32 %v1536, %v1608
  %1610 = vmatmul.bf16.gmra.mxu0 %v656
  %v1611 = vpop.f32.mrf.mxu0
  %v1612 = vadd.f32 %v1539, %v1611
  %v1613 = vpop.f32.mrf.mxu0
  %v1614 = vadd.f32 %v1541, %v1613
  %1615 = vmatmul.bf16.gmra.mxu0 %v665
  %v1616 = vpop.f32.mrf.mxu0
  %v1617 = vadd.f32 %v1544, %v1616
  %v1618 = vpop.f32.mrf.mxu0
  %v1619 = vadd.f32 %v1546, %v1618
  %1620 = vmatmul.bf16.gmra.mxu0 %v674
  %v1621 = vpop.f32.mrf.mxu0
  %v1622 = vadd.f32 %v1549, %v1621
  %v1623 = vpop.f32.mrf.mxu0
  %v1624 = vadd.f32 %v1551, %v1623
  %1625 = vmatmul.bf16.gmra.mxu0 %v683
  %v1626 = vpop.f32.mrf.mxu0
  %v1627 = vadd.f32 %v1554, %v1626
  %v1628 = vpop.f32.mrf.mxu0
  %v1629 = vadd.f32 %v1556, %v1628
  %1630 = vmatmul.bf16.gmra.mxu0 %v692
  %v1631 = vpop.f32.mrf.mxu0
  %v1632 = vadd.f32 %v1559, %v1631
  %v1633 = vpop.f32.mrf.mxu0
  %v1634 = vadd.f32 %v1561, %v1633
  %1635 = vmatmul.bf16.gmra.mxu0 %v701
  %v1636 = vpop.f32.mrf.mxu0
  %v1637 = vadd.f32 %v1564, %v1636
  %v1638 = vpop.f32.mrf.mxu0
  %v1639 = vadd.f32 %v1566, %v1638
  %1640 = vmatmul.bf16.gmra.mxu0 %v710
  %v1641 = vpop.f32.mrf.mxu0
  %v1642 = vadd.f32 %v1569, %v1641
  %v1643 = vpop.f32.mrf.mxu0
  %v1644 = vadd.f32 %v1571, %v1643
  %1645 = vmatmul.bf16.gmra.mxu0 %v719
  %v1646 = vpop.f32.mrf.mxu0
  %v1647 = vadd.f32 %v1574, %v1646
  %v1648 = vpop.f32.mrf.mxu0
  %v1649 = vadd.f32 %v1576, %v1648
  %1650 = vmatmul.bf16.gmra.mxu0 %v728
  %v1651 = vpop.f32.mrf.mxu0
  %v1652 = vadd.f32 %v1579, %v1651
  %v1653 = vpop.f32.mrf.mxu0
  %v1654 = vadd.f32 %v1581, %v1653
  %1655 = vmatmul.bf16.gmra.mxu0 %v737
  %v1656 = vpop.f32.mrf.mxu0
  %v1657 = vadd.f32 %v1584, %v1656
  %v1658 = vpop.f32.mrf.mxu0
  %v1659 = vadd.f32 %v1586, %v1658
  %1660 = vmatmul.bf16.gmra.mxu0 %v746
  %v1661 = vpop.f32.mrf.mxu0
  %v1662 = vadd.f32 %v1589, %v1661
  %v1663 = vpop.f32.mrf.mxu0
  %1664 = vdwg.mxu0
  %1665 = vmatpush.bf16.msra.mxu0 %v1203
  %1666 = vmatpush.bf16.msra.mxu0 %v1202
  %1667 = vmatpush.bf16.msra.mxu0 %v1201
  %1668 = vmatpush.bf16.msra.mxu0 %v1200
  %1669 = vmatpush.bf16.msra.mxu0 %v1199
  %1670 = vmatpush.bf16.msra.mxu0 %v1198
  %1671 = vmatpush.bf16.msra.mxu0 %v1197
  %1672 = vmatpush.bf16.msra.mxu0 %v1196
  %1673 = vmatmul.bf16.gmra.mxu0 %v639
  %v1674 = vpop.f32.mrf.mxu0
  %v1675 = vadd.f32 %v1602, %v1674
  %v1676 = vpop.f32.mrf.mxu0
  %v1677 = vadd.f32 %v1604, %v1676
  %1678 = vmatmul.bf16.gmra.mxu0 %v648
  %v1679 = vpop.f32.mrf.mxu0
  %v1680 = vadd.f32 %v1607, %v1679
  %v1681 = vpop.f32.mrf.mxu0
  %v1682 = vadd.f32 %v1609, %v1681
  %1683 = vmatmul.bf16.gmra.mxu0 %v657
  %v1684 = vpop.f32.mrf.mxu0
  %v1685 = vadd.f32 %v1612, %v1684
  %v1686 = vpop.f32.mrf.mxu0
  %v1687 = vadd.f32 %v1614, %v1686
  %1688 = vmatmul.bf16.gmra.mxu0 %v666
  %v1689 = vpop.f32.mrf.mxu0
  %v1690 = vadd.f32 %v1617, %v1689
  %v1691 = vpop.f32.mrf.mxu0
  %v1692 = vadd.f32 %v1619, %v1691
  %1693 = vmatmul.bf16.gmra.mxu0 %v675
  %v1694 = vpop.f32.mrf.mxu0
  %v1695 = vadd.f32 %v1622, %v1694
  %v1696 = vpop.f32.mrf.mxu0
  %v1697 = vadd.f32 %v1624, %v1696
  %1698 = vmatmul.bf16.gmra.mxu0 %v684
  %v1699 = vpop.f32.mrf.mxu0
  %v1700 = vadd.f32 %v1627, %v1699
  %v1701 = vpop.f32.mrf.mxu0
  %v1702 = vadd.f32 %v1629, %v1701
  %1703 = vmatmul.bf16.gmra.mxu0 %v693
  %v1704 = vpop.f32.mrf.mxu0
  %v1705 = vadd.f32 %v1632, %v1704
  %v1706 = vpop.f32.mrf.mxu0
  %v1707 = vadd.f32 %v1634, %v1706
  %1708 = vmatmul.bf16.gmra.mxu0 %v702
  %v1709 = vpop.f32.mrf.mxu0
  %v1710 = vadd.f32 %v1637, %v1709
  %v1711 = vpop.f32.mrf.mxu0
  %v1712 = vadd.f32 %v1639, %v1711
  %1713 = vmatmul.bf16.gmra.mxu0 %v711
  %v1714 = vpop.f32.mrf.mxu0
  %v1715 = vadd.f32 %v1642, %v1714
  %v1716 = vpop.f32.mrf.mxu0
  %v1717 = vadd.f32 %v1644, %v1716
  %1718 = vmatmul.bf16.gmra.mxu0 %v720
  %v1719 = vpop.f32.mrf.mxu0
  %v1720 = vadd.f32 %v1647, %v1719
  %v1721 = vpop.f32.mrf.mxu0
  %v1722 = vadd.f32 %v1649, %v1721
  %1723 = vmatmul.bf16.gmra.mxu0 %v729
  %v1724 = vpop.f32.mrf.mxu0
  %v1725 = vadd.f32 %v1652, %v1724
  %v1726 = vpop.f32.mrf.mxu0
  %v1727 = vadd.f32 %v1654, %v1726
  %1728 = vmatmul.bf16.gmra.mxu0 %v738
  %v1729 = vpop.f32.mrf.mxu0
  %v1730 = vadd.f32 %v1657, %v1729
  %v1731 = vpop.f32.mrf.mxu0
  %v1732 = vadd.f32 %v1659, %v1731
  %1733 = vmatmul.bf16.gmra.mxu0 %v747
  %v1734 = vpop.f32.mrf.mxu0
  %v1735 = vadd.f32 %v1662, %v1734
  %v1736 = vpop.f32.mrf.mxu0
  %1737 = vdwg.mxu0
  %1738 = vmatpush.bf16.msra.mxu0 %v1211
  %1739 = vmatpush.bf16.msra.mxu0 %v1210
  %1740 = vmatpush.bf16.msra.mxu0 %v1209
  %1741 = vmatpush.bf16.msra.mxu0 %v1208
  %1742 = vmatpush.bf16.msra.mxu0 %v1207
  %1743 = vmatpush.bf16.msra.mxu0 %v1206
  %1744 = vmatpush.bf16.msra.mxu0 %v1205
  %1745 = vmatpush.bf16.msra.mxu0 %v1204
  %1746 = vmatmul.bf16.gmra.mxu0 %v640
  %v1747 = vpop.f32.mrf.mxu0
  %v1748 = vadd.f32 %v1675, %v1747
  %v1749 = vpop.f32.mrf.mxu0
  %v1750 = vadd.f32 %v1677, %v1749
  %1751 = vmatmul.bf16.gmra.mxu0 %v649
  %v1752 = vpop.f32.mrf.mxu0
  %v1753 = vadd.f32 %v1680, %v1752
  %v1754 = vpop.f32.mrf.mxu0
  %v1755 = vadd.f32 %v1682, %v1754
  %1756 = vmatmul.bf16.gmra.mxu0 %v658
  %v1757 = vpop.f32.mrf.mxu0
  %v1758 = vadd.f32 %v1685, %v1757
  %v1759 = vpop.f32.mrf.mxu0
  %v1760 = vadd.f32 %v1687, %v1759
  %1761 = vmatmul.bf16.gmra.mxu0 %v667
  %v1762 = vpop.f32.mrf.mxu0
  %v1763 = vadd.f32 %v1690, %v1762
  %v1764 = vpop.f32.mrf.mxu0
  %v1765 = vadd.f32 %v1692, %v1764
  %1766 = vmatmul.bf16.gmra.mxu0 %v676
  %v1767 = vpop.f32.mrf.mxu0
  %v1768 = vadd.f32 %v1695, %v1767
  %v1769 = vpop.f32.mrf.mxu0
  %v1770 = vadd.f32 %v1697, %v1769
  %1771 = vmatmul.bf16.gmra.mxu0 %v685
  %v1772 = vpop.f32.mrf.mxu0
  %v1773 = vadd.f32 %v1700, %v1772
  %v1774 = vpop.f32.mrf.mxu0
  %v1775 = vadd.f32 %v1702, %v1774
  %1776 = vmatmul.bf16.gmra.mxu0 %v694
  %v1777 = vpop.f32.mrf.mxu0
  %v1778 = vadd.f32 %v1705, %v1777
  %v1779 = vpop.f32.mrf.mxu0
  %v1780 = vadd.f32 %v1707, %v1779
  %1781 = vmatmul.bf16.gmra.mxu0 %v703
  %v1782 = vpop.f32.mrf.mxu0
  %v1783 = vadd.f32 %v1710, %v1782
  %v1784 = vpop.f32.mrf.mxu0
  %v1785 = vadd.f32 %v1712, %v1784
  %1786 = vmatmul.bf16.gmra.mxu0 %v712
  %v1787 = vpop.f32.mrf.mxu0
  %v1788 = vadd.f32 %v1715, %v1787
  %v1789 = vpop.f32.mrf.mxu0
  %v1790 = vadd.f32 %v1717, %v1789
  %1791 = vmatmul.bf16.gmra.mxu0 %v721
  %v1792 = vpop.f32.mrf.mxu0
  %v1793 = vadd.f32 %v1720, %v1792
  %v1794 = vpop.f32.mrf.mxu0
  %v1795 = vadd.f32 %v1722, %v1794
  %1796 = vmatmul.bf16.gmra.mxu0 %v730
  %v1797 = vpop.f32.mrf.mxu0
  %v1798 = vadd.f32 %v1725, %v1797
  %v1799 = vpop.f32.mrf.mxu0
  %v1800 = vadd.f32 %v1727, %v1799
  %1801 = vmatmul.bf16.gmra.mxu0 %v739
  %v1802 = vpop.f32.mrf.mxu0
  %v1803 = vadd.f32 %v1730, %v1802
  %v1804 = vpop.f32.mrf.mxu0
  %v1805 = vadd.f32 %v1732, %v1804
  %1806 = vmatmul.bf16.gmra.mxu0 %v748
  %v1807 = vpop.f32.mrf.mxu0
  %v1808 = vadd.f32 %v1735, %v1807
  %v1809 = vpop.f32.mrf.mxu0
  %1810 = vdwg.mxu0
  %1811 = vmatpush.bf16.msra.mxu0 %v1219
  %1812 = vmatpush.bf16.msra.mxu0 %v1218
  %1813 = vmatpush.bf16.msra.mxu0 %v1217
  %1814 = vmatpush.bf16.msra.mxu0 %v1216
  %1815 = vmatpush.bf16.msra.mxu0 %v1215
  %1816 = vmatpush.bf16.msra.mxu0 %v1214
  %1817 = vmatpush.bf16.msra.mxu0 %v1213
  %1818 = vmatpush.bf16.msra.mxu0 %v1212
  %1819 = vmatmul.bf16.gmra.mxu0 %v641
  %v1820 = vpop.f32.mrf.mxu0
  %v1821 = vadd.f32 %v1748, %v1820
  %v1822 = vpop.f32.mrf.mxu0
  %v1823 = vadd.f32 %v1750, %v1822
  %1824 = vmatmul.bf16.gmra.mxu0 %v650
  %v1825 = vpop.f32.mrf.mxu0
  %v1826 = vadd.f32 %v1753, %v1825
  %v1827 = vpop.f32.mrf.mxu0
  %v1828 = vadd.f32 %v1755, %v1827
  %1829 = vmatmul.bf16.gmra.mxu0 %v659
  %v1830 = vpop.f32.mrf.mxu0
  %v1831 = vadd.f32 %v1758, %v1830
  %v1832 = vpop.f32.mrf.mxu0
  %v1833 = vadd.f32 %v1760, %v1832
  %1834 = vmatmul.bf16.gmra.mxu0 %v668
  %v1835 = vpop.f32.mrf.mxu0
  %v1836 = vadd.f32 %v1763, %v1835
  %v1837 = vpop.f32.mrf.mxu0
  %v1838 = vadd.f32 %v1765, %v1837
  %1839 = vmatmul.bf16.gmra.mxu0 %v677
  %v1840 = vpop.f32.mrf.mxu0
  %v1841 = vadd.f32 %v1768, %v1840
  %v1842 = vpop.f32.mrf.mxu0
  %v1843 = vadd.f32 %v1770, %v1842
  %1844 = vmatmul.bf16.gmra.mxu0 %v686
  %v1845 = vpop.f32.mrf.mxu0
  %v1846 = vadd.f32 %v1773, %v1845
  %v1847 = vpop.f32.mrf.mxu0
  %v1848 = vadd.f32 %v1775, %v1847
  %1849 = vmatmul.bf16.gmra.mxu0 %v695
  %v1850 = vpop.f32.mrf.mxu0
  %v1851 = vadd.f32 %v1778, %v1850
  %v1852 = vpop.f32.mrf.mxu0
  %v1853 = vadd.f32 %v1780, %v1852
  %1854 = vmatmul.bf16.gmra.mxu0 %v704
  %v1855 = vpop.f32.mrf.mxu0
  %v1856 = vadd.f32 %v1783, %v1855
  %v1857 = vpop.f32.mrf.mxu0
  %v1858 = vadd.f32 %v1785, %v1857
  %1859 = vmatmul.bf16.gmra.mxu0 %v713
  %v1860 = vpop.f32.mrf.mxu0
  %v1861 = vadd.f32 %v1788, %v1860
  %v1862 = vpop.f32.mrf.mxu0
  %v1863 = vadd.f32 %v1790, %v1862
  %1864 = vmatmul.bf16.gmra.mxu0 %v722
  %v1865 = vpop.f32.mrf.mxu0
  %v1866 = vadd.f32 %v1793, %v1865
  %v1867 = vpop.f32.mrf.mxu0
  %v1868 = vadd.f32 %v1795, %v1867
  %1869 = vmatmul.bf16.gmra.mxu0 %v731
  %v1870 = vpop.f32.mrf.mxu0
  %v1871 = vadd.f32 %v1798, %v1870
  %v1872 = vpop.f32.mrf.mxu0
  %v1873 = vadd.f32 %v1800, %v1872
  %1874 = vmatmul.bf16.gmra.mxu0 %v740
  %v1875 = vpop.f32.mrf.mxu0
  %v1876 = vadd.f32 %v1803, %v1875
  %v1877 = vpop.f32.mrf.mxu0
  %v1878 = vadd.f32 %v1805, %v1877
  %1879 = vmatmul.bf16.gmra.mxu0 %v749
  %v1880 = vpop.f32.mrf.mxu0
  %v1881 = vadd.f32 %v1808, %v1880
  %v1882 = vpop.f32.mrf.mxu0
  %1883 = vdwg.mxu0
  %1884 = vmatpush.bf16.msra.mxu0 %v1227
  %1885 = vmatpush.bf16.msra.mxu0 %v1226
  %1886 = vmatpush.bf16.msra.mxu0 %v1225
  %1887 = vmatpush.bf16.msra.mxu0 %v1224
  %1888 = vmatpush.bf16.msra.mxu0 %v1223
  %1889 = vmatpush.bf16.msra.mxu0 %v1222
  %1890 = vmatpush.bf16.msra.mxu0 %v1221
  %1891 = vmatpush.bf16.msra.mxu0 %v1220
  %1892 = vmatmul.bf16.gmra.mxu0 %v642
  %v1893 = vpop.f32.mrf.mxu0
  %v1894 = vadd.f32 %v1821, %v1893
  %v1895 = vpop.f32.mrf.mxu0
  %v1896 = vadd.f32 %v1823, %v1895
  %1897 = vmatmul.bf16.gmra.mxu0 %v651
  %v1898 = vpop.f32.mrf.mxu0
  %v1899 = vadd.f32 %v1826, %v1898
  %v1900 = vpop.f32.mrf.mxu0
  %v1901 = vadd.f32 %v1828, %v1900
  %1902 = vmatmul.bf16.gmra.mxu0 %v660
  %v1903 = vpop.f32.mrf.mxu0
  %v1904 = vadd.f32 %v1831, %v1903
  %v1905 = vpop.f32.mrf.mxu0
  %v1906 = vadd.f32 %v1833, %v1905
  %1907 = vmatmul.bf16.gmra.mxu0 %v669
  %v1908 = vpop.f32.mrf.mxu0
  %v1909 = vadd.f32 %v1836, %v1908
  %v1910 = vpop.f32.mrf.mxu0
  %v1911 = vadd.f32 %v1838, %v1910
  %1912 = vmatmul.bf16.gmra.mxu0 %v678
  %v1913 = vpop.f32.mrf.mxu0
  %v1914 = vadd.f32 %v1841, %v1913
  %v1915 = vpop.f32.mrf.mxu0
  %v1916 = vadd.f32 %v1843, %v1915
  %1917 = vmatmul.bf16.gmra.mxu0 %v687
  %v1918 = vpop.f32.mrf.mxu0
  %v1919 = vadd.f32 %v1846, %v1918
  %v1920 = vpop.f32.mrf.mxu0
  %v1921 = vadd.f32 %v1848, %v1920
  %1922 = vmatmul.bf16.gmra.mxu0 %v696
  %v1923 = vpop.f32.mrf.mxu0
  %v1924 = vadd.f32 %v1851, %v1923
  %v1925 = vpop.f32.mrf.mxu0
  %v1926 = vadd.f32 %v1853, %v1925
  %1927 = vmatmul.bf16.gmra.mxu0 %v705
  %v1928 = vpop.f32.mrf.mxu0
  %v1929 = vadd.f32 %v1856, %v1928
  %v1930 = vpop.f32.mrf.mxu0
  %v1931 = vadd.f32 %v1858, %v1930
  %1932 = vmatmul.bf16.gmra.mxu0 %v714
  %v1933 = vpop.f32.mrf.mxu0
  %v1934 = vadd.f32 %v1861, %v1933
  %v1935 = vpop.f32.mrf.mxu0
  %v1936 = vadd.f32 %v1863, %v1935
  %1937 = vmatmul.bf16.gmra.mxu0 %v723
  %v1938 = vpop.f32.mrf.mxu0
  %v1939 = vadd.f32 %v1866, %v1938
  %v1940 = vpop.f32.mrf.mxu0
  %v1941 = vadd.f32 %v1868, %v1940
  %1942 = vmatmul.bf16.gmra.mxu0 %v732
  %v1943 = vpop.f32.mrf.mxu0
  %v1944 = vadd.f32 %v1871, %v1943
  %v1945 = vpop.f32.mrf.mxu0
  %v1946 = vadd.f32 %v1873, %v1945
  %1947 = vmatmul.bf16.gmra.mxu0 %v741
  %v1948 = vpop.f32.mrf.mxu0
  %v1949 = vadd.f32 %v1876, %v1948
  %v1950 = vpop.f32.mrf.mxu0
  %v1951 = vadd.f32 %v1878, %v1950
  %1952 = vmatmul.bf16.gmra.mxu0 %v750
  %v1953 = vpop.f32.mrf.mxu0
  %v1954 = vadd.f32 %v1881, %v1953
  %v1955 = vpop.f32.mrf.mxu0
  %1956 = vdwg.mxu0
  %vm1957 = vcmp.gt.f32.partialorder %v1894, 0.0
  %vm1958 = vcmp.gt.f32.partialorder %v1896, 0.0
  %vm1959 = vcmp.gt.f32.partialorder %v1899, 0.0
  %vm1960 = vcmp.gt.f32.partialorder %v1901, 0.0
  %vm1961 = vcmp.gt.f32.partialorder %v1904, 0.0
  %vm1962 = vcmp.gt.f32.partialorder %v1906, 0.0
  %vm1963 = vcmp.gt.f32.partialorder %v1909, 0.0
  %vm1964 = vcmp.gt.f32.partialorder %v1911, 0.0
  %vm1965 = vcmp.gt.f32.partialorder %v1914, 0.0
  %vm1966 = vcmp.gt.f32.partialorder %v1916, 0.0
  %vm1967 = vcmp.gt.f32.partialorder %v1919, 0.0
  %vm1968 = vcmp.gt.f32.partialorder %v1921, 0.0
  %vm1969 = vcmp.gt.f32.partialorder %v1924, 0.0
  %vm1970 = vcmp.gt.f32.partialorder %v1926, 0.0
  %vm1971 = vcmp.gt.f32.partialorder %v1929, 0.0
  %vm1972 = vcmp.gt.f32.partialorder %v1931, 0.0
  %vm1973 = vcmp.gt.f32.partialorder %v1934, 0.0
  %vm1974 = vcmp.gt.f32.partialorder %v1936, 0.0
  %vm1975 = vcmp.gt.f32.partialorder %v1939, 0.0
  %vm1976 = vcmp.gt.f32.partialorder %v1941, 0.0
  %vm1977 = vcmp.gt.f32.partialorder %v1944, 0.0
  %vm1978 = vcmp.gt.f32.partialorder %v1946, 0.0
  %vm1979 = vcmp.gt.f32.partialorder %v1949, 0.0
  %vm1980 = vcmp.gt.f32.partialorder %v1951, 0.0
  %vm1981 = vcmp.gt.f32.partialorder %v1954, 0.0
  %v1982 = vmul.f32 %v1894, 0.01
  %v1983 = vmul.f32 %v1896, 0.01
  %v1984 = vmul.f32 %v1899, 0.01
  %v1985 = vmul.f32 %v1901, 0.01
  %v1986 = vmul.f32 %v1904, 0.01
  %v1987 = vmul.f32 %v1906, 0.01
  %v1988 = vmul.f32 %v1909, 0.01
  %v1989 = vmul.f32 %v1911, 0.01
  %v1990 = vmul.f32 %v1914, 0.01
  %v1991 = vmul.f32 %v1916, 0.01
  %v1992 = vmul.f32 %v1919, 0.01
  %v1993 = vmul.f32 %v1921, 0.01
  %v1994 = vmul.f32 %v1924, 0.01
  %v1995 = vmul.f32 %v1926, 0.01
  %v1996 = vmul.f32 %v1929, 0.01
  %v1997 = vmul.f32 %v1931, 0.01
  %v1998 = vmul.f32 %v1934, 0.01
  %v1999 = vmul.f32 %v1936, 0.01
  %v2000 = vmul.f32 %v1939, 0.01
  %v2001 = vmul.f32 %v1941, 0.01
  %v2002 = vmul.f32 %v1944, 0.01
  %v2003 = vmul.f32 %v1946, 0.01
  %v2004 = vmul.f32 %v1949, 0.01
  %v2005 = vmul.f32 %v1951, 0.01
  %v2006 = vmul.f32 %v1954, 0.01
  %v2007 = vsel %vm1957, %v1894, %v1982
  %v2008 = vsel %vm1958, %v1896, %v1983
  %v2009 = vsel %vm1959, %v1899, %v1984
  %v2010 = vsel %vm1960, %v1901, %v1985
  %v2011 = vsel %vm1961, %v1904, %v1986
  %v2012 = vsel %vm1962, %v1906, %v1987
  %v2013 = vsel %vm1963, %v1909, %v1988
  %v2014 = vsel %vm1964, %v1911, %v1989
  %v2015 = vsel %vm1965, %v1914, %v1990
  %v2016 = vsel %vm1966, %v1916, %v1991
  %v2017 = vsel %vm1967, %v1919, %v1992
  %v2018 = vsel %vm1968, %v1921, %v1993
  %v2019 = vsel %vm1969, %v1924, %v1994
  %v2020 = vsel %vm1970, %v1926, %v1995
  %v2021 = vsel %vm1971, %v1929, %v1996
  %v2022 = vsel %vm1972, %v1931, %v1997
  %v2023 = vsel %vm1973, %v1934, %v1998
  %v2024 = vsel %vm1974, %v1936, %v1999
  %v2025 = vsel %vm1975, %v1939, %v2000
  %v2026 = vsel %vm1976, %v1941, %v2001
  %v2027 = vsel %vm1977, %v1944, %v2002
  %v2028 = vsel %vm1978, %v1946, %v2003
  %v2029 = vsel %vm1979, %v1949, %v2004
  %v2030 = vsel %vm1980, %v1951, %v2005
  %v2031 = vsel %vm1981, %v1954, %v2006
  %v2032 = vpack.c.bf16 %v2007, %v2007
  %v2033 = vpack.c.bf16 %v2008, %v2008
  %v2034 = vpack.c.bf16 %v2009, %v2009
  %v2035 = vpack.c.bf16 %v2010, %v2010
  %v2036 = vpack.c.bf16 %v2011, %v2011
  %v2037 = vpack.c.bf16 %v2012, %v2012
  %v2038 = vpack.c.bf16 %v2013, %v2013
  %v2039 = vpack.c.bf16 %v2014, %v2014
  %v2040 = vpack.c.bf16 %v2015, %v2015
  %v2041 = vpack.c.bf16 %v2016, %v2016
  %v2042 = vpack.c.bf16 %v2017, %v2017
  %v2043 = vpack.c.bf16 %v2018, %v2018
  %v2044 = vpack.c.bf16 %v2019, %v2019
  %v2045 = vpack.c.bf16 %v2020, %v2020
  %v2046 = vpack.c.bf16 %v2021, %v2021
  %v2047 = vpack.c.bf16 %v2022, %v2022
  %v2048 = vpack.c.bf16 %v2023, %v2023
  %v2049 = vpack.c.bf16 %v2024, %v2024
  %v2050 = vpack.c.bf16 %v2025, %v2025
  %v2051 = vpack.c.bf16 %v2026, %v2026
  %v2052 = vpack.c.bf16 %v2027, %v2027
  %v2053 = vpack.c.bf16 %v2028, %v2028
  %v2054 = vpack.c.bf16 %v2029, %v2029
  %v2055 = vpack.c.bf16 %v2030, %v2030
  %v2056 = vpack.c.bf16 %v2031, %v2031
  %v2082 = vrot.slane %v2032, 3
  %v2083 = vrot.slane %v2033, 3
  %v2084 = vrot.slane %v2034, 3
  %v2085 = vrot.slane %v2035, 3
  %v2086 = vrot.slane %v2036, 3
  %v2087 = vrot.slane %v2037, 3
  %v2088 = vrot.slane %v2038, 3
  %v2089 = vrot.slane %v2039, 3
  %v2090 = vrot.slane %v2040, 3
  %v2091 = vrot.slane %v2041, 3
  %v2092 = vrot.slane %v2042, 3
  %v2093 = vrot.slane %v2043, 3
  %v2094 = vrot.slane %v2044, 3
  %v2095 = vrot.slane %v2045, 3
  %v2096 = vrot.slane %v2046, 3
  %v2097 = vrot.slane %v2047, 3
  %v2098 = vrot.slane %v2048, 3
  %v2099 = vrot.slane %v2049, 3
  %v2100 = vrot.slane %v2050, 3
  %v2101 = vrot.slane %v2051, 3
  %v2102 = vrot.slane %v2052, 3
  %v2103 = vrot.slane %v2053, 3
  %v2104 = vrot.slane %v2054, 3
  %v2105 = vrot.slane %v2055, 3
  %v2106 = vrot.slane %v2056, 3
  %vm2107 = vcmask 1040384
  %v2110 = vsel %vm2107, %v2032, %v2082
  %vm2111 = vcmask 1041409
  %v2112 = vsel %vm2111, %v2032, %v2082
  %v2114 = vrot.slane %v2112, 1
  %vm2115 = vcmask 1042434
  %v2116 = vsel %vm2115, %v2032, %v2082
  %v2118 = vrot.slane %v2116, 2
  %vm2119 = vcmask 1043459
  %v2120 = vsel %vm2119, %v2032, %v2082
  %v2122 = vrot.slane %v2120, 3
  %v2125 = vsel %vm2107, %v2033, %v2083
  %v2126 = vsel %vm2111, %v2033, %v2083
  %v2128 = vrot.slane %v2126, 1
  %v2129 = vsel %vm2115, %v2033, %v2083
  %v2131 = vrot.slane %v2129, 2
  %v2132 = vsel %vm2119, %v2033, %v2083
  %v2134 = vrot.slane %v2132, 3
  %v2137 = vsel %vm2107, %v2034, %v2084
  %v2138 = vsel %vm2111, %v2034, %v2084
  %v2140 = vrot.slane %v2138, 1
  %v2141 = vsel %vm2115, %v2034, %v2084
  %v2143 = vrot.slane %v2141, 2
  %v2144 = vsel %vm2119, %v2034, %v2084
  %v2146 = vrot.slane %v2144, 3
  %v2149 = vsel %vm2107, %v2035, %v2085
  %v2150 = vsel %vm2111, %v2035, %v2085
  %v2152 = vrot.slane %v2150, 1
  %v2153 = vsel %vm2115, %v2035, %v2085
  %v2155 = vrot.slane %v2153, 2
  %v2156 = vsel %vm2119, %v2035, %v2085
  %v2158 = vrot.slane %v2156, 3
  %v2161 = vsel %vm2107, %v2036, %v2086
  %v2162 = vsel %vm2111, %v2036, %v2086
  %v2164 = vrot.slane %v2162, 1
  %v2165 = vsel %vm2115, %v2036, %v2086
  %v2167 = vrot.slane %v2165, 2
  %v2168 = vsel %vm2119, %v2036, %v2086
  %v2170 = vrot.slane %v2168, 3
  %v2173 = vsel %vm2107, %v2037, %v2087
  %v2174 = vsel %vm2111, %v2037, %v2087
  %v2176 = vrot.slane %v2174, 1
  %v2177 = vsel %vm2115, %v2037, %v2087
  %v2179 = vrot.slane %v2177, 2
  %v2180 = vsel %vm2119, %v2037, %v2087
  %v2182 = vrot.slane %v2180, 3
  %v2185 = vsel %vm2107, %v2038, %v2088
  %v2186 = vsel %vm2111, %v2038, %v2088
  %v2188 = vrot.slane %v2186, 1
  %v2189 = vsel %vm2115, %v2038, %v2088
  %v2191 = vrot.slane %v2189, 2
  %v2192 = vsel %vm2119, %v2038, %v2088
  %v2194 = vrot.slane %v2192, 3
  %v2197 = vsel %vm2107, %v2039, %v2089
  %v2198 = vsel %vm2111, %v2039, %v2089
  %v2200 = vrot.slane %v2198, 1
  %v2201 = vsel %vm2115, %v2039, %v2089
  %v2203 = vrot.slane %v2201, 2
  %v2204 = vsel %vm2119, %v2039, %v2089
  %v2206 = vrot.slane %v2204, 3
  %v2209 = vsel %vm2107, %v2040, %v2090
  %v2210 = vsel %vm2111, %v2040, %v2090
  %v2212 = vrot.slane %v2210, 1
  %v2213 = vsel %vm2115, %v2040, %v2090
  %v2215 = vrot.slane %v2213, 2
  %v2216 = vsel %vm2119, %v2040, %v2090
  %v2218 = vrot.slane %v2216, 3
  %v2221 = vsel %vm2107, %v2041, %v2091
  %v2222 = vsel %vm2111, %v2041, %v2091
  %v2224 = vrot.slane %v2222, 1
  %v2225 = vsel %vm2115, %v2041, %v2091
  %v2227 = vrot.slane %v2225, 2
  %v2228 = vsel %vm2119, %v2041, %v2091
  %v2230 = vrot.slane %v2228, 3
  %v2233 = vsel %vm2107, %v2042, %v2092
  %v2234 = vsel %vm2111, %v2042, %v2092
  %v2236 = vrot.slane %v2234, 1
  %v2237 = vsel %vm2115, %v2042, %v2092
  %v2239 = vrot.slane %v2237, 2
  %v2240 = vsel %vm2119, %v2042, %v2092
  %v2242 = vrot.slane %v2240, 3
  %v2245 = vsel %vm2107, %v2043, %v2093
  %v2246 = vsel %vm2111, %v2043, %v2093
  %v2248 = vrot.slane %v2246, 1
  %v2249 = vsel %vm2115, %v2043, %v2093
  %v2251 = vrot.slane %v2249, 2
  %v2252 = vsel %vm2119, %v2043, %v2093
  %v2254 = vrot.slane %v2252, 3
  %v2257 = vsel %vm2107, %v2044, %v2094
  %v2258 = vsel %vm2111, %v2044, %v2094
  %v2260 = vrot.slane %v2258, 1
  %v2261 = vsel %vm2115, %v2044, %v2094
  %v2263 = vrot.slane %v2261, 2
  %v2264 = vsel %vm2119, %v2044, %v2094
  %v2266 = vrot.slane %v2264, 3
  %v2269 = vsel %vm2107, %v2045, %v2095
  %v2270 = vsel %vm2111, %v2045, %v2095
  %v2272 = vrot.slane %v2270, 1
  %v2273 = vsel %vm2115, %v2045, %v2095
  %v2275 = vrot.slane %v2273, 2
  %v2276 = vsel %vm2119, %v2045, %v2095
  %v2278 = vrot.slane %v2276, 3
  %v2281 = vsel %vm2107, %v2046, %v2096
  %v2282 = vsel %vm2111, %v2046, %v2096
  %v2284 = vrot.slane %v2282, 1
  %v2285 = vsel %vm2115, %v2046, %v2096
  %v2287 = vrot.slane %v2285, 2
  %v2288 = vsel %vm2119, %v2046, %v2096
  %v2290 = vrot.slane %v2288, 3
  %v2293 = vsel %vm2107, %v2047, %v2097
  %v2294 = vsel %vm2111, %v2047, %v2097
  %v2296 = vrot.slane %v2294, 1
  %v2297 = vsel %vm2115, %v2047, %v2097
  %v2299 = vrot.slane %v2297, 2
  %v2300 = vsel %vm2119, %v2047, %v2097
  %v2302 = vrot.slane %v2300, 3
  %v2305 = vsel %vm2107, %v2048, %v2098
  %v2306 = vsel %vm2111, %v2048, %v2098
  %v2308 = vrot.slane %v2306, 1
  %v2309 = vsel %vm2115, %v2048, %v2098
  %v2311 = vrot.slane %v2309, 2
  %v2312 = vsel %vm2119, %v2048, %v2098
  %v2314 = vrot.slane %v2312, 3
  %v2317 = vsel %vm2107, %v2049, %v2099
  %v2318 = vsel %vm2111, %v2049, %v2099
  %v2320 = vrot.slane %v2318, 1
  %v2321 = vsel %vm2115, %v2049, %v2099
  %v2323 = vrot.slane %v2321, 2
  %v2324 = vsel %vm2119, %v2049, %v2099
  %v2326 = vrot.slane %v2324, 3
  %v2329 = vsel %vm2107, %v2050, %v2100
  %v2330 = vsel %vm2111, %v2050, %v2100
  %v2332 = vrot.slane %v2330, 1
  %v2333 = vsel %vm2115, %v2050, %v2100
  %v2335 = vrot.slane %v2333, 2
  %v2336 = vsel %vm2119, %v2050, %v2100
  %v2338 = vrot.slane %v2336, 3
  %v2341 = vsel %vm2107, %v2051, %v2101
  %v2342 = vsel %vm2111, %v2051, %v2101
  %v2344 = vrot.slane %v2342, 1
  %v2345 = vsel %vm2115, %v2051, %v2101
  %v2347 = vrot.slane %v2345, 2
  %v2348 = vsel %vm2119, %v2051, %v2101
  %v2350 = vrot.slane %v2348, 3
  %v2353 = vsel %vm2107, %v2052, %v2102
  %v2354 = vsel %vm2111, %v2052, %v2102
  %v2356 = vrot.slane %v2354, 1
  %v2357 = vsel %vm2115, %v2052, %v2102
  %v2359 = vrot.slane %v2357, 2
  %v2360 = vsel %vm2119, %v2052, %v2102
  %v2362 = vrot.slane %v2360, 3
  %v2365 = vsel %vm2107, %v2053, %v2103
  %v2366 = vsel %vm2111, %v2053, %v2103
  %v2368 = vrot.slane %v2366, 1
  %v2369 = vsel %vm2115, %v2053, %v2103
  %v2371 = vrot.slane %v2369, 2
  %v2372 = vsel %vm2119, %v2053, %v2103
  %v2374 = vrot.slane %v2372, 3
  %v2377 = vsel %vm2107, %v2054, %v2104
  %v2378 = vsel %vm2111, %v2054, %v2104
  %v2380 = vrot.slane %v2378, 1
  %v2381 = vsel %vm2115, %v2054, %v2104
  %v2383 = vrot.slane %v2381, 2
  %v2384 = vsel %vm2119, %v2054, %v2104
  %v2386 = vrot.slane %v2384, 3
  %v2389 = vsel %vm2107, %v2055, %v2105
  %v2390 = vsel %vm2111, %v2055, %v2105
  %v2392 = vrot.slane %v2390, 1
  %v2393 = vsel %vm2115, %v2055, %v2105
  %v2395 = vrot.slane %v2393, 2
  %v2396 = vsel %vm2119, %v2055, %v2105
  %v2398 = vrot.slane %v2396, 3
  %v2401 = vsel %vm2107, %v2056, %v2106
  %v2402 = vsel %vm2111, %v2056, %v2106
  %v2404 = vrot.slane %v2402, 1
  %v2405 = vsel %vm2115, %v2056, %v2106
  %v2407 = vrot.slane %v2405, 2
  %v2408 = vsel %vm2119, %v2056, %v2106
  %v2410 = vrot.slane %v2408, 3
  %v2411 = vld [vmem:[%s2] sm:$0xf]
  %v2412 = vld [vmem:[%s2 + $0x4] sm:$0xf]
  %v2413 = vld [vmem:[%s2 + $0x8] sm:$0xf]
  %v2414 = vld [vmem:[%s2 + $0xc] sm:$0xf]
  %v2415 = vld [vmem:[%s2 + $0x10] sm:$0xf]
  %v2416 = vld [vmem:[%s2 + $0x14] sm:$0xf]
  %v2417 = vld [vmem:[%s2 + $0x18] sm:$0xf]
  %v2418 = vld [vmem:[%s2 + $0x1c] sm:$0xf]
  %s2419 = scalar_lea.vmem %s2, 96
  %v2420 = vld [vmem:[%s2419] sm:$0xf]
  %v2421 = vld [vmem:[%s2419 + $0x4] sm:$0xf]
  %v2422 = vld [vmem:[%s2419 + $0x8] sm:$0xf]
  %v2423 = vld [vmem:[%s2419 + $0xc] sm:$0xf]
  %v2424 = vld [vmem:[%s2419 + $0x10] sm:$0xf]
  %v2425 = vld [vmem:[%s2419 + $0x14] sm:$0xf]
  %v2426 = vld [vmem:[%s2419 + $0x18] sm:$0xf]
  %v2427 = vld [vmem:[%s2419 + $0x1c] sm:$0xf]
  %2429 = vst [vmem:[#allocation1] ss:$9 sm:$0xff] %v2128
  %s2431 = scalar_lea.vmem [#allocation1], 1
  %2432 = vst [vmem:[%s2431] ss:$9 sm:$0xff] %v2131
  %s2434 = scalar_lea.vmem [#allocation1], 2
  %2435 = vst [vmem:[%s2434] ss:$9 sm:$0xff] %v2134
  %s2436 = scalar_lea.vmem [#allocation1], 3
  %2437 = vst [vmem:[%s2436] ss:$9 sm:$0xff] %v2137
  %s2439 = scalar_lea.vmem [#allocation1], 4
  %2440 = vst [vmem:[%s2439] ss:$9 sm:$0xff] %v2143
  %s2442 = scalar_lea.vmem [#allocation1], 5
  %2443 = vst [vmem:[%s2442] ss:$9 sm:$0xff] %v2146
  %s2444 = scalar_lea.vmem [#allocation1], 6
  %2445 = vst [vmem:[%s2444] ss:$9 sm:$0xff] %v2149
  %s2447 = scalar_lea.vmem [#allocation1], 7
  %2448 = vst [vmem:[%s2447] ss:$9 sm:$0xff] %v2152
  %v2449 = vld [vmem:[#allocation1] sm:$0xff]
  %2451 = vst [vmem:[#allocation1] ss:$9 sm:$0xff] %v2158
  %2452 = vst [vmem:[%s2431] ss:$9 sm:$0xff] %v2161
  %2454 = vst [vmem:[%s2434] ss:$9 sm:$0xff] %v2164
  %2456 = vst [vmem:[%s2436] ss:$9 sm:$0xff] %v2167
  %2457 = vst [vmem:[%s2439] ss:$9 sm:$0xff] %v2173
  %2459 = vst [vmem:[%s2442] ss:$9 sm:$0xff] %v2176
  %2461 = vst [vmem:[%s2444] ss:$9 sm:$0xff] %v2179
  %2463 = vst [vmem:[%s2447] ss:$9 sm:$0xff] %v2182
  %v2464 = vld [vmem:[#allocation1] sm:$0xff]
  %2466 = vst [vmem:[#allocation1] ss:$9 sm:$0xff] %v2188
  %2468 = vst [vmem:[%s2431] ss:$9 sm:$0xff] %v2191
  %2470 = vst [vmem:[%s2434] ss:$9 sm:$0xff] %v2194
  %2471 = vst [vmem:[%s2436] ss:$9 sm:$0xff] %v2197
  %2473 = vst [vmem:[%s2439] ss:$9 sm:$0xff] %v2203
  %2475 = vst [vmem:[%s2442] ss:$9 sm:$0xff] %v2206
  %2476 = vst [vmem:[%s2444] ss:$9 sm:$0xff] %v2209
  %2478 = vst [vmem:[%s2447] ss:$9 sm:$0xff] %v2212
  %v2479 = vld [vmem:[#allocation1] sm:$0xff]
  %2481 = vst [vmem:[#allocation1] ss:$9 sm:$0xff] %v2218
  %2482 = vst [vmem:[%s2431] ss:$9 sm:$0xff] %v2221
  %2484 = vst [vmem:[%s2434] ss:$9 sm:$0xff] %v2224
  %2486 = vst [vmem:[%s2436] ss:$9 sm:$0xff] %v2227
  %2487 = vst [vmem:[%s2439] ss:$9 sm:$0xff] %v2233
  %2489 = vst [vmem:[%s2442] ss:$9 sm:$0xff] %v2236
  %2491 = vst [vmem:[%s2444] ss:$9 sm:$0xff] %v2239
  %2493 = vst [vmem:[%s2447] ss:$9 sm:$0xff] %v2242
  %v2494 = vld [vmem:[#allocation1] sm:$0xff]
  %2496 = vst [vmem:[#allocation1] ss:$9 sm:$0xff] %v2278
  %2497 = vst [vmem:[%s2431] ss:$9 sm:$0xff] %v2281
  %2499 = vst [vmem:[%s2434] ss:$9 sm:$0xff] %v2284
  %2501 = vst [vmem:[%s2436] ss:$9 sm:$0xff] %v2287
  %2502 = vst [vmem:[%s2439] ss:$9 sm:$0xff] %v2293
  %2504 = vst [vmem:[%s2442] ss:$9 sm:$0xff] %v2296
  %2506 = vst [vmem:[%s2444] ss:$9 sm:$0xff] %v2299
  %2508 = vst [vmem:[%s2447] ss:$9 sm:$0xff] %v2302
  %v2509 = vld [vmem:[#allocation1] sm:$0xff]
  %2511 = vst [vmem:[#allocation1] ss:$9 sm:$0xff] %v2308
  %2513 = vst [vmem:[%s2431] ss:$9 sm:$0xff] %v2311
  %2515 = vst [vmem:[%s2434] ss:$9 sm:$0xff] %v2314
  %2516 = vst [vmem:[%s2436] ss:$9 sm:$0xff] %v2317
  %2518 = vst [vmem:[%s2439] ss:$9 sm:$0xff] %v2323
  %2520 = vst [vmem:[%s2442] ss:$9 sm:$0xff] %v2326
  %2521 = vst [vmem:[%s2444] ss:$9 sm:$0xff] %v2329
  %2523 = vst [vmem:[%s2447] ss:$9 sm:$0xff] %v2332
  %v2524 = vld [vmem:[#allocation1] sm:$0xff]
  %2526 = vst [vmem:[#allocation1] ss:$9 sm:$0xff] %v2338
  %2527 = vst [vmem:[%s2431] ss:$9 sm:$0xff] %v2341
  %2529 = vst [vmem:[%s2434] ss:$9 sm:$0xff] %v2344
  %2531 = vst [vmem:[%s2436] ss:$9 sm:$0xff] %v2347
  %2532 = vst [vmem:[%s2439] ss:$9 sm:$0xff] %v2353
  %2534 = vst [vmem:[%s2442] ss:$9 sm:$0xff] %v2356
  %2536 = vst [vmem:[%s2444] ss:$9 sm:$0xff] %v2359
  %2538 = vst [vmem:[%s2447] ss:$9 sm:$0xff] %v2362
  %v2539 = vld [vmem:[#allocation1] sm:$0xff]
  %2541 = vst [vmem:[#allocation1] ss:$9 sm:$0xff] %v2368
  %2543 = vst [vmem:[%s2431] ss:$9 sm:$0xff] %v2371
  %2545 = vst [vmem:[%s2434] ss:$9 sm:$0xff] %v2374
  %2546 = vst [vmem:[%s2436] ss:$9 sm:$0xff] %v2377
  %2548 = vst [vmem:[%s2439] ss:$9 sm:$0xff] %v2383
  %2550 = vst [vmem:[%s2442] ss:$9 sm:$0xff] %v2386
  %2551 = vst [vmem:[%s2444] ss:$9 sm:$0xff] %v2389
  %2553 = vst [vmem:[%s2447] ss:$9 sm:$0xff] %v2392
  %v2554 = vld [vmem:[#allocation1] sm:$0xff]
  %v2563 = vunpack.c.l.b16 %v2420
  %v2564 = vunpack.c.l.b16 %v2421
  %v2565 = vunpack.c.l.b16 %v2422
  %v2566 = vunpack.c.l.b16 %v2423
  %v2567 = vunpack.c.l.b16 %v2424
  %v2568 = vunpack.c.l.b16 %v2425
  %v2569 = vunpack.c.l.b16 %v2426
  %v2570 = vunpack.c.l.b16 %v2427
  %v2571 = vpack.c.b16 %v2564, %v2563
  %v2572 = vpack.c.b16 %v2566, %v2565
  %v2573 = vpack.c.b16 %v2568, %v2567
  %v2574 = vpack.c.b16 %v2570, %v2569
  %vm2579 = vcmask 523264
  %v2580 = vsel %vm2579, %v2449, 0
  %v2582 = vsel %vm2579, %v2464, 0
  %v2584 = vsel %vm2579, %v2479, 0
  %v2586 = vsel %vm2579, %v2494, 0
  %v2588 = vsel %vm2579, %v2509, 0
  %v2590 = vsel %vm2579, %v2524, 0
  %v2592 = vsel %vm2579, %v2539, 0
  %v2594 = vsel %vm2579, %v2554, 0
  %2596 = vmatpush.bf16.msra.mxu0 0
  %2597 = vmatpush.bf16.msra.mxu0 0
  %2598 = vmatpush.bf16.msra.mxu0 0
  %2599 = vmatpush.bf16.msra.mxu0 0
  %2600 = vmatpush.bf16.msra.mxu0 %v2574
  %2601 = vmatpush.bf16.msra.mxu0 %v2573
  %2602 = vmatpush.bf16.msra.mxu0 %v2572
  %2603 = vmatpush.bf16.msra.mxu0 %v2571
  %2604 = vmatmul.bf16.gmra.mxu0 %v2580
  %v2605 = vpop.f32.mrf.mxu0
  %v2606 = vadd.f32 0.0, %v2605
  %v2607 = vpop.f32.mrf.mxu0
  %v2608 = vadd.f32 0.0, %v2607
  %2609 = vmatmul.bf16.gmra.mxu0 %v2582
  %v2610 = vpop.f32.mrf.mxu0
  %v2611 = vadd.f32 0.0, %v2610
  %v2612 = vpop.f32.mrf.mxu0
  %v2613 = vadd.f32 0.0, %v2612
  %2614 = vmatmul.bf16.gmra.mxu0 %v2584
  %v2615 = vpop.f32.mrf.mxu0
  %v2616 = vadd.f32 0.0, %v2615
  %v2617 = vpop.f32.mrf.mxu0
  %v2618 = vadd.f32 0.0, %v2617
  %2619 = vmatmul.bf16.gmra.mxu0 %v2586
  %v2620 = vpop.f32.mrf.mxu0
  %v2621 = vadd.f32 0.0, %v2620
  %v2622 = vpop.f32.mrf.mxu0
  %v2623 = vadd.f32 0.0, %v2622
  %2624 = vmatmul.bf16.gmra.mxu0 %v2588
  %v2625 = vpop.f32.mrf.mxu0
  %v2626 = vadd.f32 0.0, %v2625
  %v2627 = vpop.f32.mrf.mxu0
  %v2628 = vadd.f32 0.0, %v2627
  %2629 = vmatmul.bf16.gmra.mxu0 %v2590
  %v2630 = vpop.f32.mrf.mxu0
  %v2631 = vadd.f32 0.0, %v2630
  %v2632 = vpop.f32.mrf.mxu0
  %v2633 = vadd.f32 0.0, %v2632
  %2634 = vmatmul.bf16.gmra.mxu0 %v2592
  %v2635 = vpop.f32.mrf.mxu0
  %v2636 = vadd.f32 0.0, %v2635
  %v2637 = vpop.f32.mrf.mxu0
  %v2638 = vadd.f32 0.0, %v2637
  %2639 = vmatmul.bf16.gmra.mxu0 %v2594
  %v2640 = vpop.f32.mrf.mxu0
  %v2641 = vadd.f32 0.0, %v2640
  %v2642 = vpop.f32.mrf.mxu0
  %v2643 = vadd.f32 0.0, %v2642
  %2644 = vdwg.mxu0
  %2645 = vst [vmem:[#allocation1] ss:$9 sm:$0xff] %v2110
  %s2647 = scalar_lea.vmem [#allocation1], 1
  %2648 = vst [vmem:[%s2647] ss:$9 sm:$0xff] %v2114
  %s2650 = scalar_lea.vmem [#allocation1], 2
  %2651 = vst [vmem:[%s2650] ss:$9 sm:$0xff] %v2118
  %s2653 = scalar_lea.vmem [#allocation1], 3
  %2654 = vst [vmem:[%s2653] ss:$9 sm:$0xff] %v2122
  %s2655 = scalar_lea.vmem [#allocation1], 4
  %2656 = vst [vmem:[%s2655] ss:$9 sm:$0xff] %v2128
  %s2657 = scalar_lea.vmem [#allocation1], 5
  %2658 = vst [vmem:[%s2657] ss:$9 sm:$0xff] %v2131
  %s2659 = scalar_lea.vmem [#allocation1], 6
  %2660 = vst [vmem:[%s2659] ss:$9 sm:$0xff] %v2134
  %s2661 = scalar_lea.vmem [#allocation1], 7
  %2662 = vst [vmem:[%s2661] ss:$9 sm:$0xff] %v2137
  %v2663 = vld [vmem:[#allocation1] sm:$0xff]
  %2664 = vst [vmem:[#allocation1] ss:$9 sm:$0xff] %v2143
  %2665 = vst [vmem:[%s2647] ss:$9 sm:$0xff] %v2146
  %2666 = vst [vmem:[%s2650] ss:$9 sm:$0xff] %v2149
  %2667 = vst [vmem:[%s2653] ss:$9 sm:$0xff] %v2152
  %2668 = vst [vmem:[%s2655] ss:$9 sm:$0xff] %v2158
  %2669 = vst [vmem:[%s2657] ss:$9 sm:$0xff] %v2161
  %2670 = vst [vmem:[%s2659] ss:$9 sm:$0xff] %v2164
  %2671 = vst [vmem:[%s2661] ss:$9 sm:$0xff] %v2167
  %v2672 = vld [vmem:[#allocation1] sm:$0xff]
  %2673 = vst [vmem:[#allocation1] ss:$9 sm:$0xff] %v2173
  %2674 = vst [vmem:[%s2647] ss:$9 sm:$0xff] %v2176
  %2675 = vst [vmem:[%s2650] ss:$9 sm:$0xff] %v2179
  %2676 = vst [vmem:[%s2653] ss:$9 sm:$0xff] %v2182
  %2677 = vst [vmem:[%s2655] ss:$9 sm:$0xff] %v2188
  %2678 = vst [vmem:[%s2657] ss:$9 sm:$0xff] %v2191
  %2679 = vst [vmem:[%s2659] ss:$9 sm:$0xff] %v2194
  %2680 = vst [vmem:[%s2661] ss:$9 sm:$0xff] %v2197
  %v2681 = vld [vmem:[#allocation1] sm:$0xff]
  %2682 = vst [vmem:[#allocation1] ss:$9 sm:$0xff] %v2203
  %2683 = vst [vmem:[%s2647] ss:$9 sm:$0xff] %v2206
  %2684 = vst [vmem:[%s2650] ss:$9 sm:$0xff] %v2209
  %2685 = vst [vmem:[%s2653] ss:$9 sm:$0xff] %v2212
  %2686 = vst [vmem:[%s2655] ss:$9 sm:$0xff] %v2218
  %2687 = vst [vmem:[%s2657] ss:$9 sm:$0xff] %v2221
  %2688 = vst [vmem:[%s2659] ss:$9 sm:$0xff] %v2224
  %2689 = vst [vmem:[%s2661] ss:$9 sm:$0xff] %v2227
  %v2690 = vld [vmem:[#allocation1] sm:$0xff]
  %2692 = vst [vmem:[#allocation1] ss:$9 sm:$0xff] %v2263
  %2694 = vst [vmem:[%s2647] ss:$9 sm:$0xff] %v2266
  %2695 = vst [vmem:[%s2650] ss:$9 sm:$0xff] %v2269
  %2697 = vst [vmem:[%s2653] ss:$9 sm:$0xff] %v2272
  %2698 = vst [vmem:[%s2655] ss:$9 sm:$0xff] %v2278
  %2699 = vst [vmem:[%s2657] ss:$9 sm:$0xff] %v2281
  %2700 = vst [vmem:[%s2659] ss:$9 sm:$0xff] %v2284
  %2701 = vst [vmem:[%s2661] ss:$9 sm:$0xff] %v2287
  %v2702 = vld [vmem:[#allocation1] sm:$0xff]
  %2703 = vst [vmem:[#allocation1] ss:$9 sm:$0xff] %v2293
  %2704 = vst [vmem:[%s2647] ss:$9 sm:$0xff] %v2296
  %2705 = vst [vmem:[%s2650] ss:$9 sm:$0xff] %v2299
  %2706 = vst [vmem:[%s2653] ss:$9 sm:$0xff] %v2302
  %2707 = vst [vmem:[%s2655] ss:$9 sm:$0xff] %v2308
  %2708 = vst [vmem:[%s2657] ss:$9 sm:$0xff] %v2311
  %2709 = vst [vmem:[%s2659] ss:$9 sm:$0xff] %v2314
  %2710 = vst [vmem:[%s2661] ss:$9 sm:$0xff] %v2317
  %v2711 = vld [vmem:[#allocation1] sm:$0xff]
  %2712 = vst [vmem:[#allocation1] ss:$9 sm:$0xff] %v2323
  %2713 = vst [vmem:[%s2647] ss:$9 sm:$0xff] %v2326
  %2714 = vst [vmem:[%s2650] ss:$9 sm:$0xff] %v2329
  %2715 = vst [vmem:[%s2653] ss:$9 sm:$0xff] %v2332
  %2716 = vst [vmem:[%s2655] ss:$9 sm:$0xff] %v2338
  %2717 = vst [vmem:[%s2657] ss:$9 sm:$0xff] %v2341
  %2718 = vst [vmem:[%s2659] ss:$9 sm:$0xff] %v2344
  %2719 = vst [vmem:[%s2661] ss:$9 sm:$0xff] %v2347
  %v2720 = vld [vmem:[#allocation1] sm:$0xff]
  %2721 = vst [vmem:[#allocation1] ss:$9 sm:$0xff] %v2353
  %2722 = vst [vmem:[%s2647] ss:$9 sm:$0xff] %v2356
  %2723 = vst [vmem:[%s2650] ss:$9 sm:$0xff] %v2359
  %2724 = vst [vmem:[%s2653] ss:$9 sm:$0xff] %v2362
  %2725 = vst [vmem:[%s2655] ss:$9 sm:$0xff] %v2368
  %2726 = vst [vmem:[%s2657] ss:$9 sm:$0xff] %v2371
  %2727 = vst [vmem:[%s2659] ss:$9 sm:$0xff] %v2374
  %2728 = vst [vmem:[%s2661] ss:$9 sm:$0xff] %v2377
  %v2729 = vld [vmem:[#allocation1] sm:$0xff]
  %v2738 = vunpack.c.l.b16 %v2411
  %v2739 = vunpack.c.l.b16 %v2412
  %v2740 = vunpack.c.l.b16 %v2413
  %v2741 = vunpack.c.l.b16 %v2414
  %v2742 = vunpack.c.l.b16 %v2415
  %v2743 = vunpack.c.l.b16 %v2416
  %v2744 = vunpack.c.l.b16 %v2417
  %v2745 = vunpack.c.l.b16 %v2418
  %v2746 = vpack.c.b16 %v2739, %v2738
  %v2747 = vpack.c.b16 %v2741, %v2740
  %v2748 = vpack.c.b16 %v2743, %v2742
  %v2749 = vpack.c.b16 %v2745, %v2744
  %v2754 = vsel %vm2579, %v2663, 0
  %v2756 = vsel %vm2579, %v2672, 0
  %v2758 = vsel %vm2579, %v2681, 0
  %v2760 = vsel %vm2579, %v2690, 0
  %v2762 = vsel %vm2579, %v2702, 0
  %v2764 = vsel %vm2579, %v2711, 0
  %v2766 = vsel %vm2579, %v2720, 0
  %v2768 = vsel %vm2579, %v2729, 0
  %2770 = vmatpush.bf16.msra.mxu0 0
  %2771 = vmatpush.bf16.msra.mxu0 0
  %2772 = vmatpush.bf16.msra.mxu0 0
  %2773 = vmatpush.bf16.msra.mxu0 0
  %2774 = vmatpush.bf16.msra.mxu0 %v2749
  %2775 = vmatpush.bf16.msra.mxu0 %v2748
  %2776 = vmatpush.bf16.msra.mxu0 %v2747
  %2777 = vmatpush.bf16.msra.mxu0 %v2746
  %2778 = vmatmul.bf16.gmra.mxu0 %v2754
  %v2779 = vpop.f32.mrf.mxu0
  %v2780 = vadd.f32 %v2606, %v2779
  %v2781 = vpop.f32.mrf.mxu0
  %v2782 = vadd.f32 %v2608, %v2781
  %2783 = vmatmul.bf16.gmra.mxu0 %v2756
  %v2784 = vpop.f32.mrf.mxu0
  %v2785 = vadd.f32 %v2611, %v2784
  %v2786 = vpop.f32.mrf.mxu0
  %v2787 = vadd.f32 %v2613, %v2786
  %2788 = vmatmul.bf16.gmra.mxu0 %v2758
  %v2789 = vpop.f32.mrf.mxu0
  %v2790 = vadd.f32 %v2616, %v2789
  %v2791 = vpop.f32.mrf.mxu0
  %v2792 = vadd.f32 %v2618, %v2791
  %2793 = vmatmul.bf16.gmra.mxu0 %v2760
  %v2794 = vpop.f32.mrf.mxu0
  %v2795 = vadd.f32 %v2621, %v2794
  %v2796 = vpop.f32.mrf.mxu0
  %v2797 = vadd.f32 %v2623, %v2796
  %2798 = vmatmul.bf16.gmra.mxu0 %v2762
  %v2799 = vpop.f32.mrf.mxu0
  %v2800 = vadd.f32 %v2626, %v2799
  %v2801 = vpop.f32.mrf.mxu0
  %v2802 = vadd.f32 %v2628, %v2801
  %2803 = vmatmul.bf16.gmra.mxu0 %v2764
  %v2804 = vpop.f32.mrf.mxu0
  %v2805 = vadd.f32 %v2631, %v2804
  %v2806 = vpop.f32.mrf.mxu0
  %v2807 = vadd.f32 %v2633, %v2806
  %2808 = vmatmul.bf16.gmra.mxu0 %v2766
  %v2809 = vpop.f32.mrf.mxu0
  %v2810 = vadd.f32 %v2636, %v2809
  %v2811 = vpop.f32.mrf.mxu0
  %v2812 = vadd.f32 %v2638, %v2811
  %2813 = vmatmul.bf16.gmra.mxu0 %v2768
  %v2814 = vpop.f32.mrf.mxu0
  %v2815 = vadd.f32 %v2641, %v2814
  %v2816 = vpop.f32.mrf.mxu0
  %v2817 = vadd.f32 %v2643, %v2816
  %2818 = vdwg.mxu0
  %s2819 = scalar_lea.vmem %s2, 192
  %v2820 = vld [vmem:[%s2819] sm:$0xf]
  %v2821 = vld [vmem:[%s2819 + $0x4] sm:$0xf]
  %v2822 = vld [vmem:[%s2819 + $0x8] sm:$0xf]
  %v2823 = vld [vmem:[%s2819 + $0xc] sm:$0xf]
  %v2824 = vld [vmem:[%s2819 + $0x10] sm:$0xf]
  %v2825 = vld [vmem:[%s2819 + $0x14] sm:$0xf]
  %v2826 = vld [vmem:[%s2819 + $0x18] sm:$0xf]
  %v2827 = vld [vmem:[%s2819 + $0x1c] sm:$0xf]
  %2828 = vst [vmem:[#allocation1] ss:$9 sm:$0xff] %v2143
  %s2829 = scalar_lea.vmem [#allocation1], 1
  %2830 = vst [vmem:[%s2829] ss:$9 sm:$0xff] %v2146
  %s2831 = scalar_lea.vmem [#allocation1], 2
  %2832 = vst [vmem:[%s2831] ss:$9 sm:$0xff] %v2149
  %s2833 = scalar_lea.vmem [#allocation1], 3
  %2834 = vst [vmem:[%s2833] ss:$9 sm:$0xff] %v2152
  %s2835 = scalar_lea.vmem [#allocation1], 4
  %2836 = vst [vmem:[%s2835] ss:$9 sm:$0xff] %v2158
  %s2837 = scalar_lea.vmem [#allocation1], 5
  %2838 = vst [vmem:[%s2837] ss:$9 sm:$0xff] %v2161
  %s2839 = scalar_lea.vmem [#allocation1], 6
  %2840 = vst [vmem:[%s2839] ss:$9 sm:$0xff] %v2164
  %s2841 = scalar_lea.vmem [#allocation1], 7
  %2842 = vst [vmem:[%s2841] ss:$9 sm:$0xff] %v2167
  %v2843 = vld [vmem:[#allocation1] sm:$0xff]
  %2844 = vst [vmem:[#allocation1] ss:$9 sm:$0xff] %v2173
  %2845 = vst [vmem:[%s2829] ss:$9 sm:$0xff] %v2176
  %2846 = vst [vmem:[%s2831] ss:$9 sm:$0xff] %v2179
  %2847 = vst [vmem:[%s2833] ss:$9 sm:$0xff] %v2182
  %2848 = vst [vmem:[%s2835] ss:$9 sm:$0xff] %v2188
  %2849 = vst [vmem:[%s2837] ss:$9 sm:$0xff] %v2191
  %2850 = vst [vmem:[%s2839] ss:$9 sm:$0xff] %v2194
  %2851 = vst [vmem:[%s2841] ss:$9 sm:$0xff] %v2197
  %v2852 = vld [vmem:[#allocation1] sm:$0xff]
  %2853 = vst [vmem:[#allocation1] ss:$9 sm:$0xff] %v2203
  %2854 = vst [vmem:[%s2829] ss:$9 sm:$0xff] %v2206
  %2855 = vst [vmem:[%s2831] ss:$9 sm:$0xff] %v2209
  %2856 = vst [vmem:[%s2833] ss:$9 sm:$0xff] %v2212
  %2857 = vst [vmem:[%s2835] ss:$9 sm:$0xff] %v2218
  %2858 = vst [vmem:[%s2837] ss:$9 sm:$0xff] %v2221
  %2859 = vst [vmem:[%s2839] ss:$9 sm:$0xff] %v2224
  %2860 = vst [vmem:[%s2841] ss:$9 sm:$0xff] %v2227
  %v2861 = vld [vmem:[#allocation1] sm:$0xff]
  %2862 = vst [vmem:[#allocation1] ss:$9 sm:$0xff] %v2233
  %2863 = vst [vmem:[%s2829] ss:$9 sm:$0xff] %v2236
  %2864 = vst [vmem:[%s2831] ss:$9 sm:$0xff] %v2239
  %2865 = vst [vmem:[%s2833] ss:$9 sm:$0xff] %v2242
  %2867 = vst [vmem:[%s2835] ss:$9 sm:$0xff] %v2248
  %2869 = vst [vmem:[%s2837] ss:$9 sm:$0xff] %v2251
  %2871 = vst [vmem:[%s2839] ss:$9 sm:$0xff] %v2254
  %2872 = vst [vmem:[%s2841] ss:$9 sm:$0xff] %v2257
  %v2873 = vld [vmem:[#allocation1] sm:$0xff]
  %2874 = vst [vmem:[#allocation1] ss:$9 sm:$0xff] %v2293
  %2875 = vst [vmem:[%s2829] ss:$9 sm:$0xff] %v2296
  %2876 = vst [vmem:[%s2831] ss:$9 sm:$0xff] %v2299
  %2877 = vst [vmem:[%s2833] ss:$9 sm:$0xff] %v2302
  %2878 = vst [vmem:[%s2835] ss:$9 sm:$0xff] %v2308
  %2879 = vst [vmem:[%s2837] ss:$9 sm:$0xff] %v2311
  %2880 = vst [vmem:[%s2839] ss:$9 sm:$0xff] %v2314
  %2881 = vst [vmem:[%s2841] ss:$9 sm:$0xff] %v2317
  %v2882 = vld [vmem:[#allocation1] sm:$0xff]
  %2883 = vst [vmem:[#allocation1] ss:$9 sm:$0xff] %v2323
  %2884 = vst [vmem:[%s2829] ss:$9 sm:$0xff] %v2326
  %2885 = vst [vmem:[%s2831] ss:$9 sm:$0xff] %v2329
  %2886 = vst [vmem:[%s2833] ss:$9 sm:$0xff] %v2332
  %2887 = vst [vmem:[%s2835] ss:$9 sm:$0xff] %v2338
  %2888 = vst [vmem:[%s2837] ss:$9 sm:$0xff] %v2341
  %2889 = vst [vmem:[%s2839] ss:$9 sm:$0xff] %v2344
  %2890 = vst [vmem:[%s2841] ss:$9 sm:$0xff] %v2347
  %v2891 = vld [vmem:[#allocation1] sm:$0xff]
  %2892 = vst [vmem:[#allocation1] ss:$9 sm:$0xff] %v2353
  %2893 = vst [vmem:[%s2829] ss:$9 sm:$0xff] %v2356
  %2894 = vst [vmem:[%s2831] ss:$9 sm:$0xff] %v2359
  %2895 = vst [vmem:[%s2833] ss:$9 sm:$0xff] %v2362
  %2896 = vst [vmem:[%s2835] ss:$9 sm:$0xff] %v2368
  %2897 = vst [vmem:[%s2837] ss:$9 sm:$0xff] %v2371
  %2898 = vst [vmem:[%s2839] ss:$9 sm:$0xff] %v2374
  %2899 = vst [vmem:[%s2841] ss:$9 sm:$0xff] %v2377
  %v2900 = vld [vmem:[#allocation1] sm:$0xff]
  %2901 = vst [vmem:[#allocation1] ss:$9 sm:$0xff] %v2383
  %2902 = vst [vmem:[%s2829] ss:$9 sm:$0xff] %v2386
  %2903 = vst [vmem:[%s2831] ss:$9 sm:$0xff] %v2389
  %2904 = vst [vmem:[%s2833] ss:$9 sm:$0xff] %v2392
  %2906 = vst [vmem:[%s2835] ss:$9 sm:$0xff] %v2398
  %2907 = vst [vmem:[%s2837] ss:$9 sm:$0xff] %v2401
  %2909 = vst [vmem:[%s2839] ss:$9 sm:$0xff] %v2404
  %2911 = vst [vmem:[%s2841] ss:$9 sm:$0xff] %v2407
  %v2912 = vld [vmem:[#allocation1] sm:$0xff]
  %v2921 = vunpack.c.l.b16 %v2820
  %v2922 = vunpack.c.l.b16 %v2821
  %v2923 = vunpack.c.l.b16 %v2822
  %v2924 = vunpack.c.l.b16 %v2823
  %v2925 = vunpack.c.l.b16 %v2824
  %v2926 = vunpack.c.l.b16 %v2825
  %v2927 = vunpack.c.l.b16 %v2826
  %v2928 = vunpack.c.l.b16 %v2827
  %v2929 = vpack.c.b16 %v2922, %v2921
  %v2930 = vpack.c.b16 %v2924, %v2923
  %v2931 = vpack.c.b16 %v2926, %v2925
  %v2932 = vpack.c.b16 %v2928, %v2927
  %v2937 = vsel %vm2579, %v2843, 0
  %v2939 = vsel %vm2579, %v2852, 0
  %v2941 = vsel %vm2579, %v2861, 0
  %v2943 = vsel %vm2579, %v2873, 0
  %v2945 = vsel %vm2579, %v2882, 0
  %v2947 = vsel %vm2579, %v2891, 0
  %v2949 = vsel %vm2579, %v2900, 0
  %v2951 = vsel %vm2579, %v2912, 0
  %2953 = vmatpush.bf16.msra.mxu0 0
  %2954 = vmatpush.bf16.msra.mxu0 0
  %2955 = vmatpush.bf16.msra.mxu0 0
  %2956 = vmatpush.bf16.msra.mxu0 0
  %2957 = vmatpush.bf16.msra.mxu0 %v2932
  %2958 = vmatpush.bf16.msra.mxu0 %v2931
  %2959 = vmatpush.bf16.msra.mxu0 %v2930
  %2960 = vmatpush.bf16.msra.mxu0 %v2929
  %2961 = vmatmul.bf16.gmra.mxu0 %v2937
  %v2962 = vpop.f32.mrf.mxu0
  %v2963 = vadd.f32 0.0, %v2962
  %v2964 = vpop.f32.mrf.mxu0
  %v2965 = vadd.f32 0.0, %v2964
  %2966 = vmatmul.bf16.gmra.mxu0 %v2939
  %v2967 = vpop.f32.mrf.mxu0
  %v2968 = vadd.f32 0.0, %v2967
  %v2969 = vpop.f32.mrf.mxu0
  %v2970 = vadd.f32 0.0, %v2969
  %2971 = vmatmul.bf16.gmra.mxu0 %v2941
  %v2972 = vpop.f32.mrf.mxu0
  %v2973 = vadd.f32 0.0, %v2972
  %v2974 = vpop.f32.mrf.mxu0
  %v2975 = vadd.f32 0.0, %v2974
  %2976 = vmatmul.bf16.gmra.mxu0 %v2943
  %v2977 = vpop.f32.mrf.mxu0
  %v2978 = vadd.f32 0.0, %v2977
  %v2979 = vpop.f32.mrf.mxu0
  %v2980 = vadd.f32 0.0, %v2979
  %2981 = vmatmul.bf16.gmra.mxu0 %v2945
  %v2982 = vpop.f32.mrf.mxu0
  %v2983 = vadd.f32 0.0, %v2982
  %v2984 = vpop.f32.mrf.mxu0
  %v2985 = vadd.f32 0.0, %v2984
  %2986 = vmatmul.bf16.gmra.mxu0 %v2947
  %v2987 = vpop.f32.mrf.mxu0
  %v2988 = vadd.f32 0.0, %v2987
  %v2989 = vpop.f32.mrf.mxu0
  %v2990 = vadd.f32 0.0, %v2989
  %2991 = vmatmul.bf16.gmra.mxu0 %v2949
  %v2992 = vpop.f32.mrf.mxu0
  %v2993 = vadd.f32 0.0, %v2992
  %v2994 = vpop.f32.mrf.mxu0
  %v2995 = vadd.f32 0.0, %v2994
  %2996 = vmatmul.bf16.gmra.mxu0 %v2951
  %v2997 = vpop.f32.mrf.mxu0
  %v2998 = vadd.f32 0.0, %v2997
  %v2999 = vpop.f32.mrf.mxu0
  %v3000 = vadd.f32 0.0, %v2999
  %3001 = vdwg.mxu0
  %v3002 = vadd.f32 %v2780, %v2963
  %v3003 = vadd.f32 %v2782, %v2965
  %v3004 = vadd.f32 %v2785, %v2968
  %v3005 = vadd.f32 %v2787, %v2970
  %v3006 = vadd.f32 %v2790, %v2973
  %v3007 = vadd.f32 %v2792, %v2975
  %v3008 = vadd.f32 %v2795, %v2978
  %v3009 = vadd.f32 %v2797, %v2980
  %v3010 = vadd.f32 %v2800, %v2983
  %v3011 = vadd.f32 %v2802, %v2985
  %v3012 = vadd.f32 %v2805, %v2988
  %v3013 = vadd.f32 %v2807, %v2990
  %v3014 = vadd.f32 %v2810, %v2993
  %v3015 = vadd.f32 %v2812, %v2995
  %v3016 = vadd.f32 %v2815, %v2998
  %v3017 = vadd.f32 %v2817, %v3000
  %vm3018 = vsmask.f32 256
  %vm3019 = vsmask.f32 1284
  %vm3020 = vmor %vm3018, %vm3019
  %vm3021 = vsmask.f32 2312
  %vm3022 = vmor %vm3020, %vm3021
  %vm3023 = vsmask.f32 3340
  %vm3024 = vmor %vm3022, %vm3023
  %vm3025 = vsmask.f32 4368
  %vm3026 = vmor %vm3024, %vm3025
  %vm3027 = vsmask.f32 5396
  %vm3028 = vmor %vm3026, %vm3027
  %vm3029 = vsmask.f32 6424
  %vm3030 = vmor %vm3028, %vm3029
  %vm3031 = vsmask.f32 7452
  %vm3032 = vmor %vm3030, %vm3031
  %v3033 = vshrl.u32 %v2110, 16
  %v3035 = vrot.slane %v3033, 7
  %v3036 = vrot.slane %v3035, 1
  %v3037 = vshll.u32 %v2114, 16
  %v3039 = vsel %vm3032, %v3036, %v3037
  %v3040 = vshrl.u32 %v2114, 16
  %v3042 = vrot.slane %v3040, 7
  %v3043 = vrot.slane %v3042, 1
  %v3044 = vshll.u32 %v2118, 16
  %v3046 = vsel %vm3032, %v3043, %v3044
  %v3047 = vshrl.u32 %v2118, 16
  %v3049 = vrot.slane %v3047, 7
  %v3050 = vrot.slane %v3049, 1
  %v3051 = vshll.u32 %v2122, 16
  %v3053 = vsel %vm3032, %v3050, %v3051
  %v3054 = vshrl.u32 %v2122, 16
  %v3056 = vrot.slane %v3054, 7
  %v3057 = vrot.slane %v3056, 1
  %v3058 = vshll.u32 %v2125, 16
  %v3060 = vsel %vm3032, %v3057, %v3058
  %v3061 = vshrl.u32 %v2128, 16
  %v3063 = vrot.slane %v3061, 7
  %v3064 = vrot.slane %v3063, 1
  %v3065 = vshll.u32 %v2131, 16
  %v3067 = vsel %vm3032, %v3064, %v3065
  %v3068 = vshrl.u32 %v2131, 16
  %v3070 = vrot.slane %v3068, 7
  %v3071 = vrot.slane %v3070, 1
  %v3072 = vshll.u32 %v2134, 16
  %v3074 = vsel %vm3032, %v3071, %v3072
  %v3075 = vshrl.u32 %v2134, 16
  %v3077 = vrot.slane %v3075, 7
  %v3078 = vrot.slane %v3077, 1
  %v3079 = vshll.u32 %v2137, 16
  %v3081 = vsel %vm3032, %v3078, %v3079
  %v3082 = vshrl.u32 %v2137, 16
  %v3084 = vrot.slane %v3082, 7
  %v3085 = vrot.slane %v3084, 1
  %v3087 = vshll.u32 %v2140, 16
  %v3089 = vsel %vm3032, %v3085, %v3087
  %v3090 = vshrl.u32 %v2143, 16
  %v3092 = vrot.slane %v3090, 7
  %v3093 = vrot.slane %v3092, 1
  %v3094 = vshll.u32 %v2146, 16
  %v3096 = vsel %vm3032, %v3093, %v3094
  %v3097 = vshrl.u32 %v2146, 16
  %v3099 = vrot.slane %v3097, 7
  %v3100 = vrot.slane %v3099, 1
  %v3101 = vshll.u32 %v2149, 16
  %v3103 = vsel %vm3032, %v3100, %v3101
  %v3104 = vshrl.u32 %v2149, 16
  %v3106 = vrot.slane %v3104, 7
  %v3107 = vrot.slane %v3106, 1
  %v3108 = vshll.u32 %v2152, 16
  %v3110 = vsel %vm3032, %v3107, %v3108
  %v3111 = vshrl.u32 %v2152, 16
  %v3113 = vrot.slane %v3111, 7
  %v3114 = vrot.slane %v3113, 1
  %v3116 = vshll.u32 %v2155, 16
  %v3118 = vsel %vm3032, %v3114, %v3116
  %v3119 = vshrl.u32 %v2158, 16
  %v3121 = vrot.slane %v3119, 7
  %v3122 = vrot.slane %v3121, 1
  %v3123 = vshll.u32 %v2161, 16
  %v3125 = vsel %vm3032, %v3122, %v3123
  %v3126 = vshrl.u32 %v2161, 16
  %v3128 = vrot.slane %v3126, 7
  %v3129 = vrot.slane %v3128, 1
  %v3130 = vshll.u32 %v2164, 16
  %v3132 = vsel %vm3032, %v3129, %v3130
  %v3133 = vshrl.u32 %v2164, 16
  %v3135 = vrot.slane %v3133, 7
  %v3136 = vrot.slane %v3135, 1
  %v3137 = vshll.u32 %v2167, 16
  %v3139 = vsel %vm3032, %v3136, %v3137
  %v3140 = vshrl.u32 %v2167, 16
  %v3142 = vrot.slane %v3140, 7
  %v3143 = vrot.slane %v3142, 1
  %v3145 = vshll.u32 %v2170, 16
  %v3147 = vsel %vm3032, %v3143, %v3145
  %v3148 = vshrl.u32 %v2173, 16
  %v3150 = vrot.slane %v3148, 7
  %v3151 = vrot.slane %v3150, 1
  %v3152 = vshll.u32 %v2176, 16
  %v3154 = vsel %vm3032, %v3151, %v3152
  %v3155 = vshrl.u32 %v2176, 16
  %v3157 = vrot.slane %v3155, 7
  %v3158 = vrot.slane %v3157, 1
  %v3159 = vshll.u32 %v2179, 16
  %v3161 = vsel %vm3032, %v3158, %v3159
  %v3162 = vshrl.u32 %v2179, 16
  %v3164 = vrot.slane %v3162, 7
  %v3165 = vrot.slane %v3164, 1
  %v3166 = vshll.u32 %v2182, 16
  %v3168 = vsel %vm3032, %v3165, %v3166
  %v3169 = vshrl.u32 %v2182, 16
  %v3171 = vrot.slane %v3169, 7
  %v3172 = vrot.slane %v3171, 1
  %v3173 = vshll.u32 %v2185, 16
  %v3175 = vsel %vm3032, %v3172, %v3173
  %v3176 = vshrl.u32 %v2188, 16
  %v3178 = vrot.slane %v3176, 7
  %v3179 = vrot.slane %v3178, 1
  %v3180 = vshll.u32 %v2191, 16
  %v3182 = vsel %vm3032, %v3179, %v3180
  %v3183 = vshrl.u32 %v2191, 16
  %v3185 = vrot.slane %v3183, 7
  %v3186 = vrot.slane %v3185, 1
  %v3187 = vshll.u32 %v2194, 16
  %v3189 = vsel %vm3032, %v3186, %v3187
  %v3190 = vshrl.u32 %v2194, 16
  %v3192 = vrot.slane %v3190, 7
  %v3193 = vrot.slane %v3192, 1
  %v3194 = vshll.u32 %v2197, 16
  %v3196 = vsel %vm3032, %v3193, %v3194
  %v3197 = vshrl.u32 %v2197, 16
  %v3199 = vrot.slane %v3197, 7
  %v3200 = vrot.slane %v3199, 1
  %v3202 = vshll.u32 %v2200, 16
  %v3204 = vsel %vm3032, %v3200, %v3202
  %v3205 = vshrl.u32 %v2203, 16
  %v3207 = vrot.slane %v3205, 7
  %v3208 = vrot.slane %v3207, 1
  %v3209 = vshll.u32 %v2206, 16
  %v3211 = vsel %vm3032, %v3208, %v3209
  %v3212 = vshrl.u32 %v2206, 16
  %v3214 = vrot.slane %v3212, 7
  %v3215 = vrot.slane %v3214, 1
  %v3216 = vshll.u32 %v2209, 16
  %v3218 = vsel %vm3032, %v3215, %v3216
  %v3219 = vshrl.u32 %v2209, 16
  %v3221 = vrot.slane %v3219, 7
  %v3222 = vrot.slane %v3221, 1
  %v3223 = vshll.u32 %v2212, 16
  %v3225 = vsel %vm3032, %v3222, %v3223
  %v3226 = vshrl.u32 %v2212, 16
  %v3228 = vrot.slane %v3226, 7
  %v3229 = vrot.slane %v3228, 1
  %v3231 = vshll.u32 %v2215, 16
  %v3233 = vsel %vm3032, %v3229, %v3231
  %v3234 = vshrl.u32 %v2218, 16
  %v3236 = vrot.slane %v3234, 7
  %v3237 = vrot.slane %v3236, 1
  %v3238 = vshll.u32 %v2221, 16
  %v3240 = vsel %vm3032, %v3237, %v3238
  %v3241 = vshrl.u32 %v2221, 16
  %v3243 = vrot.slane %v3241, 7
  %v3244 = vrot.slane %v3243, 1
  %v3245 = vshll.u32 %v2224, 16
  %v3247 = vsel %vm3032, %v3244, %v3245
  %v3248 = vshrl.u32 %v2224, 16
  %v3250 = vrot.slane %v3248, 7
  %v3251 = vrot.slane %v3250, 1
  %v3252 = vshll.u32 %v2227, 16
  %v3254 = vsel %vm3032, %v3251, %v3252
  %v3255 = vshrl.u32 %v2227, 16
  %v3257 = vrot.slane %v3255, 7
  %v3258 = vrot.slane %v3257, 1
  %v3260 = vshll.u32 %v2230, 16
  %v3262 = vsel %vm3032, %v3258, %v3260
  %v3263 = vshrl.u32 %v2263, 16
  %v3265 = vrot.slane %v3263, 7
  %v3266 = vrot.slane %v3265, 1
  %v3267 = vshll.u32 %v2266, 16
  %v3269 = vsel %vm3032, %v3266, %v3267
  %v3270 = vshrl.u32 %v2266, 16
  %v3272 = vrot.slane %v3270, 7
  %v3273 = vrot.slane %v3272, 1
  %v3274 = vshll.u32 %v2269, 16
  %v3276 = vsel %vm3032, %v3273, %v3274
  %v3277 = vshrl.u32 %v2269, 16
  %v3279 = vrot.slane %v3277, 7
  %v3280 = vrot.slane %v3279, 1
  %v3281 = vshll.u32 %v2272, 16
  %v3283 = vsel %vm3032, %v3280, %v3281
  %v3284 = vshrl.u32 %v2272, 16
  %v3286 = vrot.slane %v3284, 7
  %v3287 = vrot.slane %v3286, 1
  %v3289 = vshll.u32 %v2275, 16
  %v3291 = vsel %vm3032, %v3287, %v3289
  %v3292 = vshrl.u32 %v2278, 16
  %v3294 = vrot.slane %v3292, 7
  %v3295 = vrot.slane %v3294, 1
  %v3296 = vshll.u32 %v2281, 16
  %v3298 = vsel %vm3032, %v3295, %v3296
  %v3299 = vshrl.u32 %v2281, 16
  %v3301 = vrot.slane %v3299, 7
  %v3302 = vrot.slane %v3301, 1
  %v3303 = vshll.u32 %v2284, 16
  %v3305 = vsel %vm3032, %v3302, %v3303
  %v3306 = vshrl.u32 %v2284, 16
  %v3308 = vrot.slane %v3306, 7
  %v3309 = vrot.slane %v3308, 1
  %v3310 = vshll.u32 %v2287, 16
  %v3312 = vsel %vm3032, %v3309, %v3310
  %v3313 = vshrl.u32 %v2287, 16
  %v3315 = vrot.slane %v3313, 7
  %v3316 = vrot.slane %v3315, 1
  %v3318 = vshll.u32 %v2290, 16
  %v3320 = vsel %vm3032, %v3316, %v3318
  %v3321 = vshrl.u32 %v2293, 16
  %v3323 = vrot.slane %v3321, 7
  %v3324 = vrot.slane %v3323, 1
  %v3325 = vshll.u32 %v2296, 16
  %v3327 = vsel %vm3032, %v3324, %v3325
  %v3328 = vshrl.u32 %v2296, 16
  %v3330 = vrot.slane %v3328, 7
  %v3331 = vrot.slane %v3330, 1
  %v3332 = vshll.u32 %v2299, 16
  %v3334 = vsel %vm3032, %v3331, %v3332
  %v3335 = vshrl.u32 %v2299, 16
  %v3337 = vrot.slane %v3335, 7
  %v3338 = vrot.slane %v3337, 1
  %v3339 = vshll.u32 %v2302, 16
  %v3341 = vsel %vm3032, %v3338, %v3339
  %v3342 = vshrl.u32 %v2302, 16
  %v3344 = vrot.slane %v3342, 7
  %v3345 = vrot.slane %v3344, 1
  %v3346 = vshll.u32 %v2305, 16
  %v3348 = vsel %vm3032, %v3345, %v3346
  %v3349 = vshrl.u32 %v2308, 16
  %v3351 = vrot.slane %v3349, 7
  %v3352 = vrot.slane %v3351, 1
  %v3353 = vshll.u32 %v2311, 16
  %v3355 = vsel %vm3032, %v3352, %v3353
  %v3356 = vshrl.u32 %v2311, 16
  %v3358 = vrot.slane %v3356, 7
  %v3359 = vrot.slane %v3358, 1
  %v3360 = vshll.u32 %v2314, 16
  %v3362 = vsel %vm3032, %v3359, %v3360
  %v3363 = vshrl.u32 %v2314, 16
  %v3365 = vrot.slane %v3363, 7
  %v3366 = vrot.slane %v3365, 1
  %v3367 = vshll.u32 %v2317, 16
  %v3369 = vsel %vm3032, %v3366, %v3367
  %v3370 = vshrl.u32 %v2317, 16
  %v3372 = vrot.slane %v3370, 7
  %v3373 = vrot.slane %v3372, 1
  %v3375 = vshll.u32 %v2320, 16
  %v3377 = vsel %vm3032, %v3373, %v3375
  %v3378 = vshrl.u32 %v2323, 16
  %v3380 = vrot.slane %v3378, 7
  %v3381 = vrot.slane %v3380, 1
  %v3382 = vshll.u32 %v2326, 16
  %v3384 = vsel %vm3032, %v3381, %v3382
  %v3385 = vshrl.u32 %v2326, 16
  %v3387 = vrot.slane %v3385, 7
  %v3388 = vrot.slane %v3387, 1
  %v3389 = vshll.u32 %v2329, 16
  %v3391 = vsel %vm3032, %v3388, %v3389
  %v3392 = vshrl.u32 %v2329, 16
  %v3394 = vrot.slane %v3392, 7
  %v3395 = vrot.slane %v3394, 1
  %v3396 = vshll.u32 %v2332, 16
  %v3398 = vsel %vm3032, %v3395, %v3396
  %v3399 = vshrl.u32 %v2332, 16
  %v3401 = vrot.slane %v3399, 7
  %v3402 = vrot.slane %v3401, 1
  %v3404 = vshll.u32 %v2335, 16
  %v3406 = vsel %vm3032, %v3402, %v3404
  %v3407 = vshrl.u32 %v2338, 16
  %v3409 = vrot.slane %v3407, 7
  %v3410 = vrot.slane %v3409, 1
  %v3411 = vshll.u32 %v2341, 16
  %v3413 = vsel %vm3032, %v3410, %v3411
  %v3414 = vshrl.u32 %v2341, 16
  %v3416 = vrot.slane %v3414, 7
  %v3417 = vrot.slane %v3416, 1
  %v3418 = vshll.u32 %v2344, 16
  %v3420 = vsel %vm3032, %v3417, %v3418
  %v3421 = vshrl.u32 %v2344, 16
  %v3423 = vrot.slane %v3421, 7
  %v3424 = vrot.slane %v3423, 1
  %v3425 = vshll.u32 %v2347, 16
  %v3427 = vsel %vm3032, %v3424, %v3425
  %v3428 = vshrl.u32 %v2347, 16
  %v3430 = vrot.slane %v3428, 7
  %v3431 = vrot.slane %v3430, 1
  %v3433 = vshll.u32 %v2350, 16
  %v3435 = vsel %vm3032, %v3431, %v3433
  %v3436 = vshrl.u32 %v2353, 16
  %v3438 = vrot.slane %v3436, 7
  %v3439 = vrot.slane %v3438, 1
  %v3440 = vshll.u32 %v2356, 16
  %v3442 = vsel %vm3032, %v3439, %v3440
  %v3443 = vshrl.u32 %v2356, 16
  %v3445 = vrot.slane %v3443, 7
  %v3446 = vrot.slane %v3445, 1
  %v3447 = vshll.u32 %v2359, 16
  %v3449 = vsel %vm3032, %v3446, %v3447
  %v3450 = vshrl.u32 %v2359, 16
  %v3452 = vrot.slane %v3450, 7
  %v3453 = vrot.slane %v3452, 1
  %v3454 = vshll.u32 %v2362, 16
  %v3456 = vsel %vm3032, %v3453, %v3454
  %v3457 = vshrl.u32 %v2362, 16
  %v3459 = vrot.slane %v3457, 7
  %v3460 = vrot.slane %v3459, 1
  %v3461 = vshll.u32 %v2365, 16
  %v3463 = vsel %vm3032, %v3460, %v3461
  %v3464 = vshrl.u32 %v2368, 16
  %v3466 = vrot.slane %v3464, 7
  %v3467 = vrot.slane %v3466, 1
  %v3468 = vshll.u32 %v2371, 16
  %v3470 = vsel %vm3032, %v3467, %v3468
  %v3471 = vshrl.u32 %v2371, 16
  %v3473 = vrot.slane %v3471, 7
  %v3474 = vrot.slane %v3473, 1
  %v3475 = vshll.u32 %v2374, 16
  %v3477 = vsel %vm3032, %v3474, %v3475
  %v3478 = vshrl.u32 %v2374, 16
  %v3480 = vrot.slane %v3478, 7
  %v3481 = vrot.slane %v3480, 1
  %v3482 = vshll.u32 %v2377, 16
  %v3484 = vsel %vm3032, %v3481, %v3482
  %v3485 = vshrl.u32 %v2377, 16
  %v3487 = vrot.slane %v3485, 7
  %v3488 = vrot.slane %v3487, 1
  %v3490 = vshll.u32 %v2380, 16
  %v3492 = vsel %vm3032, %v3488, %v3490
  %s3493 = scalar_lea.vmem %s2, 32
  %v3494 = vld [vmem:[%s3493] sm:$0xf]
  %v3495 = vld [vmem:[%s3493 + $0x4] sm:$0xf]
  %v3496 = vld [vmem:[%s3493 + $0x8] sm:$0xf]
  %v3497 = vld [vmem:[%s3493 + $0xc] sm:$0xf]
  %v3498 = vld [vmem:[%s3493 + $0x10] sm:$0xf]
  %v3499 = vld [vmem:[%s3493 + $0x14] sm:$0xf]
  %v3500 = vld [vmem:[%s3493 + $0x18] sm:$0xf]
  %v3501 = vld [vmem:[%s3493 + $0x1c] sm:$0xf]
  %3503 = vst [vmem:[#allocation1] ss:$9 sm:$0xff] %v3039
  %s3505 = scalar_lea.vmem [#allocation1], 1
  %3506 = vst [vmem:[%s3505] ss:$9 sm:$0xff] %v3046
  %s3508 = scalar_lea.vmem [#allocation1], 2
  %3509 = vst [vmem:[%s3508] ss:$9 sm:$0xff] %v3053
  %s3511 = scalar_lea.vmem [#allocation1], 3
  %3512 = vst [vmem:[%s3511] ss:$9 sm:$0xff] %v3060
  %s3514 = scalar_lea.vmem [#allocation1], 4
  %3515 = vst [vmem:[%s3514] ss:$9 sm:$0xff] %v3067
  %s3517 = scalar_lea.vmem [#allocation1], 5
  %3518 = vst [vmem:[%s3517] ss:$9 sm:$0xff] %v3074
  %s3520 = scalar_lea.vmem [#allocation1], 6
  %3521 = vst [vmem:[%s3520] ss:$9 sm:$0xff] %v3081
  %s3523 = scalar_lea.vmem [#allocation1], 7
  %3524 = vst [vmem:[%s3523] ss:$9 sm:$0xff] %v3089
  %v3525 = vld [vmem:[#allocation1] sm:$0xff]
  %3527 = vst [vmem:[#allocation1] ss:$9 sm:$0xff] %v3096
  %3529 = vst [vmem:[%s3505] ss:$9 sm:$0xff] %v3103
  %3531 = vst [vmem:[%s3508] ss:$9 sm:$0xff] %v3110
  %3533 = vst [vmem:[%s3511] ss:$9 sm:$0xff] %v3118
  %3535 = vst [vmem:[%s3514] ss:$9 sm:$0xff] %v3125
  %3537 = vst [vmem:[%s3517] ss:$9 sm:$0xff] %v3132
  %3539 = vst [vmem:[%s3520] ss:$9 sm:$0xff] %v3139
  %3541 = vst [vmem:[%s3523] ss:$9 sm:$0xff] %v3147
  %v3542 = vld [vmem:[#allocation1] sm:$0xff]
  %3544 = vst [vmem:[#allocation1] ss:$9 sm:$0xff] %v3154
  %3546 = vst [vmem:[%s3505] ss:$9 sm:$0xff] %v3161
  %3548 = vst [vmem:[%s3508] ss:$9 sm:$0xff] %v3168
  %3550 = vst [vmem:[%s3511] ss:$9 sm:$0xff] %v3175
  %3552 = vst [vmem:[%s3514] ss:$9 sm:$0xff] %v3182
  %3554 = vst [vmem:[%s3517] ss:$9 sm:$0xff] %v3189
  %3556 = vst [vmem:[%s3520] ss:$9 sm:$0xff] %v3196
  %3558 = vst [vmem:[%s3523] ss:$9 sm:$0xff] %v3204
  %v3559 = vld [vmem:[#allocation1] sm:$0xff]
  %3561 = vst [vmem:[#allocation1] ss:$9 sm:$0xff] %v3211
  %3563 = vst [vmem:[%s3505] ss:$9 sm:$0xff] %v3218
  %3565 = vst [vmem:[%s3508] ss:$9 sm:$0xff] %v3225
  %3567 = vst [vmem:[%s3511] ss:$9 sm:$0xff] %v3233
  %3569 = vst [vmem:[%s3514] ss:$9 sm:$0xff] %v3240
  %3571 = vst [vmem:[%s3517] ss:$9 sm:$0xff] %v3247
  %3573 = vst [vmem:[%s3520] ss:$9 sm:$0xff] %v3254
  %3575 = vst [vmem:[%s3523] ss:$9 sm:$0xff] %v3262
  %v3576 = vld [vmem:[#allocation1] sm:$0xff]
  %3578 = vst [vmem:[#allocation1] ss:$9 sm:$0xff] %v3269
  %3580 = vst [vmem:[%s3505] ss:$9 sm:$0xff] %v3276
  %3582 = vst [vmem:[%s3508] ss:$9 sm:$0xff] %v3283
  %3584 = vst [vmem:[%s3511] ss:$9 sm:$0xff] %v3291
  %3586 = vst [vmem:[%s3514] ss:$9 sm:$0xff] %v3298
  %3588 = vst [vmem:[%s3517] ss:$9 sm:$0xff] %v3305
  %3590 = vst [vmem:[%s3520] ss:$9 sm:$0xff] %v3312
  %3592 = vst [vmem:[%s3523] ss:$9 sm:$0xff] %v3320
  %v3593 = vld [vmem:[#allocation1] sm:$0xff]
  %3595 = vst [vmem:[#allocation1] ss:$9 sm:$0xff] %v3327
  %3597 = vst [vmem:[%s3505] ss:$9 sm:$0xff] %v3334
  %3599 = vst [vmem:[%s3508] ss:$9 sm:$0xff] %v3341
  %3601 = vst [vmem:[%s3511] ss:$9 sm:$0xff] %v3348
  %3603 = vst [vmem:[%s3514] ss:$9 sm:$0xff] %v3355
  %3605 = vst [vmem:[%s3517] ss:$9 sm:$0xff] %v3362
  %3607 = vst [vmem:[%s3520] ss:$9 sm:$0xff] %v3369
  %3609 = vst [vmem:[%s3523] ss:$9 sm:$0xff] %v3377
  %v3610 = vld [vmem:[#allocation1] sm:$0xff]
  %3612 = vst [vmem:[#allocation1] ss:$9 sm:$0xff] %v3384
  %3614 = vst [vmem:[%s3505] ss:$9 sm:$0xff] %v3391
  %3616 = vst [vmem:[%s3508] ss:$9 sm:$0xff] %v3398
  %3618 = vst [vmem:[%s3511] ss:$9 sm:$0xff] %v3406
  %3620 = vst [vmem:[%s3514] ss:$9 sm:$0xff] %v3413
  %3622 = vst [vmem:[%s3517] ss:$9 sm:$0xff] %v3420
  %3624 = vst [vmem:[%s3520] ss:$9 sm:$0xff] %v3427
  %3626 = vst [vmem:[%s3523] ss:$9 sm:$0xff] %v3435
  %v3627 = vld [vmem:[#allocation1] sm:$0xff]
  %3629 = vst [vmem:[#allocation1] ss:$9 sm:$0xff] %v3442
  %3631 = vst [vmem:[%s3505] ss:$9 sm:$0xff] %v3449
  %3633 = vst [vmem:[%s3508] ss:$9 sm:$0xff] %v3456
  %3635 = vst [vmem:[%s3511] ss:$9 sm:$0xff] %v3463
  %3637 = vst [vmem:[%s3514] ss:$9 sm:$0xff] %v3470
  %3639 = vst [vmem:[%s3517] ss:$9 sm:$0xff] %v3477
  %3641 = vst [vmem:[%s3520] ss:$9 sm:$0xff] %v3484
  %3643 = vst [vmem:[%s3523] ss:$9 sm:$0xff] %v3492
  %v3644 = vld [vmem:[#allocation1] sm:$0xff]
  %v3653 = vunpack.c.l.b16 %v3494
  %v3654 = vunpack.c.l.b16 %v3495
  %v3655 = vunpack.c.l.b16 %v3496
  %v3656 = vunpack.c.l.b16 %v3497
  %v3657 = vunpack.c.l.b16 %v3498
  %v3658 = vunpack.c.l.b16 %v3499
  %v3659 = vunpack.c.l.b16 %v3500
  %v3660 = vunpack.c.l.b16 %v3501
  %v3661 = vpack.c.b16 %v3654, %v3653
  %v3662 = vpack.c.b16 %v3656, %v3655
  %v3663 = vpack.c.b16 %v3658, %v3657
  %v3664 = vpack.c.b16 %v3660, %v3659
  %v3669 = vsel %vm2579, %v3525, 0
  %v3671 = vsel %vm2579, %v3542, 0
  %v3673 = vsel %vm2579, %v3559, 0
  %v3675 = vsel %vm2579, %v3576, 0
  %v3677 = vsel %vm2579, %v3593, 0
  %v3679 = vsel %vm2579, %v3610, 0
  %v3681 = vsel %vm2579, %v3627, 0
  %v3683 = vsel %vm2579, %v3644, 0
  %3685 = vmatpush.bf16.msra.mxu0 0
  %3686 = vmatpush.bf16.msra.mxu0 0
  %3687 = vmatpush.bf16.msra.mxu0 0
  %3688 = vmatpush.bf16.msra.mxu0 0
  %3689 = vmatpush.bf16.msra.mxu0 %v3664
  %3690 = vmatpush.bf16.msra.mxu0 %v3663
  %3691 = vmatpush.bf16.msra.mxu0 %v3662
  %3692 = vmatpush.bf16.msra.mxu0 %v3661
  %3693 = vmatmul.bf16.gmra.mxu0 %v3669
  %v3694 = vpop.f32.mrf.mxu0
  %v3695 = vadd.f32 0.0, %v3694
  %v3696 = vpop.f32.mrf.mxu0
  %v3697 = vadd.f32 0.0, %v3696
  %3698 = vmatmul.bf16.gmra.mxu0 %v3671
  %v3699 = vpop.f32.mrf.mxu0
  %v3700 = vadd.f32 0.0, %v3699
  %v3701 = vpop.f32.mrf.mxu0
  %v3702 = vadd.f32 0.0, %v3701
  %3703 = vmatmul.bf16.gmra.mxu0 %v3673
  %v3704 = vpop.f32.mrf.mxu0
  %v3705 = vadd.f32 0.0, %v3704
  %v3706 = vpop.f32.mrf.mxu0
  %v3707 = vadd.f32 0.0, %v3706
  %3708 = vmatmul.bf16.gmra.mxu0 %v3675
  %v3709 = vpop.f32.mrf.mxu0
  %v3710 = vadd.f32 0.0, %v3709
  %v3711 = vpop.f32.mrf.mxu0
  %v3712 = vadd.f32 0.0, %v3711
  %3713 = vmatmul.bf16.gmra.mxu0 %v3677
  %v3714 = vpop.f32.mrf.mxu0
  %v3715 = vadd.f32 0.0, %v3714
  %v3716 = vpop.f32.mrf.mxu0
  %v3717 = vadd.f32 0.0, %v3716
  %3718 = vmatmul.bf16.gmra.mxu0 %v3679
  %v3719 = vpop.f32.mrf.mxu0
  %v3720 = vadd.f32 0.0, %v3719
  %v3721 = vpop.f32.mrf.mxu0
  %v3722 = vadd.f32 0.0, %v3721
  %3723 = vmatmul.bf16.gmra.mxu0 %v3681
  %v3724 = vpop.f32.mrf.mxu0
  %v3725 = vadd.f32 0.0, %v3724
  %v3726 = vpop.f32.mrf.mxu0
  %v3727 = vadd.f32 0.0, %v3726
  %3728 = vmatmul.bf16.gmra.mxu0 %v3683
  %v3729 = vpop.f32.mrf.mxu0
  %v3730 = vadd.f32 0.0, %v3729
  %v3731 = vpop.f32.mrf.mxu0
  %v3732 = vadd.f32 0.0, %v3731
  %3733 = vdwg.mxu0
  %v3734 = vadd.f32 %v3002, %v3695
  %v3735 = vadd.f32 %v3003, %v3697
  %v3736 = vadd.f32 %v3004, %v3700
  %v3737 = vadd.f32 %v3005, %v3702
  %v3738 = vadd.f32 %v3006, %v3705
  %v3739 = vadd.f32 %v3007, %v3707
  %v3740 = vadd.f32 %v3008, %v3710
  %v3741 = vadd.f32 %v3009, %v3712
  %v3742 = vadd.f32 %v3010, %v3715
  %v3743 = vadd.f32 %v3011, %v3717
  %v3744 = vadd.f32 %v3012, %v3720
  %v3745 = vadd.f32 %v3013, %v3722
  %v3746 = vadd.f32 %v3014, %v3725
  %v3747 = vadd.f32 %v3015, %v3727
  %v3748 = vadd.f32 %v3016, %v3730
  %v3749 = vadd.f32 %v3017, %v3732
  %v3750 = vshrl.u32 %v2233, 16
  %v3752 = vrot.slane %v3750, 7
  %v3753 = vrot.slane %v3752, 1
  %v3754 = vshll.u32 %v2236, 16
  %v3756 = vsel %vm3032, %v3753, %v3754
  %v3757 = vshrl.u32 %v2236, 16
  %v3759 = vrot.slane %v3757, 7
  %v3760 = vrot.slane %v3759, 1
  %v3761 = vshll.u32 %v2239, 16
  %v3763 = vsel %vm3032, %v3760, %v3761
  %v3764 = vshrl.u32 %v2239, 16
  %v3766 = vrot.slane %v3764, 7
  %v3767 = vrot.slane %v3766, 1
  %v3768 = vshll.u32 %v2242, 16
  %v3770 = vsel %vm3032, %v3767, %v3768
  %v3771 = vshrl.u32 %v2242, 16
  %v3773 = vrot.slane %v3771, 7
  %v3774 = vrot.slane %v3773, 1
  %v3775 = vshll.u32 %v2245, 16
  %v3777 = vsel %vm3032, %v3774, %v3775
  %v3778 = vshrl.u32 %v2383, 16
  %v3780 = vrot.slane %v3778, 7
  %v3781 = vrot.slane %v3780, 1
  %v3782 = vshll.u32 %v2386, 16
  %v3784 = vsel %vm3032, %v3781, %v3782
  %v3785 = vshrl.u32 %v2386, 16
  %v3787 = vrot.slane %v3785, 7
  %v3788 = vrot.slane %v3787, 1
  %v3789 = vshll.u32 %v2389, 16
  %v3791 = vsel %vm3032, %v3788, %v3789
  %v3792 = vshrl.u32 %v2389, 16
  %v3794 = vrot.slane %v3792, 7
  %v3795 = vrot.slane %v3794, 1
  %v3796 = vshll.u32 %v2392, 16
  %v3798 = vsel %vm3032, %v3795, %v3796
  %v3799 = vshrl.u32 %v2392, 16
  %v3801 = vrot.slane %v3799, 7
  %v3802 = vrot.slane %v3801, 1
  %v3804 = vshll.u32 %v2395, 16
  %v3806 = vsel %vm3032, %v3802, %v3804
  %s3807 = scalar_lea.vmem %s2, 128
  %v3808 = vld [vmem:[%s3807] sm:$0xf]
  %v3809 = vld [vmem:[%s3807 + $0x4] sm:$0xf]
  %v3810 = vld [vmem:[%s3807 + $0x8] sm:$0xf]
  %v3811 = vld [vmem:[%s3807 + $0xc] sm:$0xf]
  %v3812 = vld [vmem:[%s3807 + $0x10] sm:$0xf]
  %v3813 = vld [vmem:[%s3807 + $0x14] sm:$0xf]
  %v3814 = vld [vmem:[%s3807 + $0x18] sm:$0xf]
  %v3815 = vld [vmem:[%s3807 + $0x1c] sm:$0xf]
  %3816 = vst [vmem:[#allocation1] ss:$9 sm:$0xff] %v3067
  %s3817 = scalar_lea.vmem [#allocation1], 1
  %3818 = vst [vmem:[%s3817] ss:$9 sm:$0xff] %v3074
  %s3819 = scalar_lea.vmem [#allocation1], 2
  %3820 = vst [vmem:[%s3819] ss:$9 sm:$0xff] %v3081
  %s3821 = scalar_lea.vmem [#allocation1], 3
  %3822 = vst [vmem:[%s3821] ss:$9 sm:$0xff] %v3089
  %s3823 = scalar_lea.vmem [#allocation1], 4
  %3824 = vst [vmem:[%s3823] ss:$9 sm:$0xff] %v3096
  %s3825 = scalar_lea.vmem [#allocation1], 5
  %3826 = vst [vmem:[%s3825] ss:$9 sm:$0xff] %v3103
  %s3827 = scalar_lea.vmem [#allocation1], 6
  %3828 = vst [vmem:[%s3827] ss:$9 sm:$0xff] %v3110
  %s3829 = scalar_lea.vmem [#allocation1], 7
  %3830 = vst [vmem:[%s3829] ss:$9 sm:$0xff] %v3118
  %v3831 = vld [vmem:[#allocation1] sm:$0xff]
  %3832 = vst [vmem:[#allocation1] ss:$9 sm:$0xff] %v3125
  %3833 = vst [vmem:[%s3817] ss:$9 sm:$0xff] %v3132
  %3834 = vst [vmem:[%s3819] ss:$9 sm:$0xff] %v3139
  %3835 = vst [vmem:[%s3821] ss:$9 sm:$0xff] %v3147
  %3836 = vst [vmem:[%s3823] ss:$9 sm:$0xff] %v3154
  %3837 = vst [vmem:[%s3825] ss:$9 sm:$0xff] %v3161
  %3838 = vst [vmem:[%s3827] ss:$9 sm:$0xff] %v3168
  %3839 = vst [vmem:[%s3829] ss:$9 sm:$0xff] %v3175
  %v3840 = vld [vmem:[#allocation1] sm:$0xff]
  %3841 = vst [vmem:[#allocation1] ss:$9 sm:$0xff] %v3182
  %3842 = vst [vmem:[%s3817] ss:$9 sm:$0xff] %v3189
  %3843 = vst [vmem:[%s3819] ss:$9 sm:$0xff] %v3196
  %3844 = vst [vmem:[%s3821] ss:$9 sm:$0xff] %v3204
  %3845 = vst [vmem:[%s3823] ss:$9 sm:$0xff] %v3211
  %3846 = vst [vmem:[%s3825] ss:$9 sm:$0xff] %v3218
  %3847 = vst [vmem:[%s3827] ss:$9 sm:$0xff] %v3225
  %3848 = vst [vmem:[%s3829] ss:$9 sm:$0xff] %v3233
  %v3849 = vld [vmem:[#allocation1] sm:$0xff]
  %3850 = vst [vmem:[#allocation1] ss:$9 sm:$0xff] %v3240
  %3851 = vst [vmem:[%s3817] ss:$9 sm:$0xff] %v3247
  %3852 = vst [vmem:[%s3819] ss:$9 sm:$0xff] %v3254
  %3853 = vst [vmem:[%s3821] ss:$9 sm:$0xff] %v3262
  %3855 = vst [vmem:[%s3823] ss:$9 sm:$0xff] %v3756
  %3857 = vst [vmem:[%s3825] ss:$9 sm:$0xff] %v3763
  %3859 = vst [vmem:[%s3827] ss:$9 sm:$0xff] %v3770
  %3861 = vst [vmem:[%s3829] ss:$9 sm:$0xff] %v3777
  %v3862 = vld [vmem:[#allocation1] sm:$0xff]
  %3863 = vst [vmem:[#allocation1] ss:$9 sm:$0xff] %v3298
  %3864 = vst [vmem:[%s3817] ss:$9 sm:$0xff] %v3305
  %3865 = vst [vmem:[%s3819] ss:$9 sm:$0xff] %v3312
  %3866 = vst [vmem:[%s3821] ss:$9 sm:$0xff] %v3320
  %3867 = vst [vmem:[%s3823] ss:$9 sm:$0xff] %v3327
  %3868 = vst [vmem:[%s3825] ss:$9 sm:$0xff] %v3334
  %3869 = vst [vmem:[%s3827] ss:$9 sm:$0xff] %v3341
  %3870 = vst [vmem:[%s3829] ss:$9 sm:$0xff] %v3348
  %v3871 = vld [vmem:[#allocation1] sm:$0xff]
  %3872 = vst [vmem:[#allocation1] ss:$9 sm:$0xff] %v3355
  %3873 = vst [vmem:[%s3817] ss:$9 sm:$0xff] %v3362
  %3874 = vst [vmem:[%s3819] ss:$9 sm:$0xff] %v3369
  %3875 = vst [vmem:[%s3821] ss:$9 sm:$0xff] %v3377
  %3876 = vst [vmem:[%s3823] ss:$9 sm:$0xff] %v3384
  %3877 = vst [vmem:[%s3825] ss:$9 sm:$0xff] %v3391
  %3878 = vst [vmem:[%s3827] ss:$9 sm:$0xff] %v3398
  %3879 = vst [vmem:[%s3829] ss:$9 sm:$0xff] %v3406
  %v3880 = vld [vmem:[#allocation1] sm:$0xff]
  %3881 = vst [vmem:[#allocation1] ss:$9 sm:$0xff] %v3413
  %3882 = vst [vmem:[%s3817] ss:$9 sm:$0xff] %v3420
  %3883 = vst [vmem:[%s3819] ss:$9 sm:$0xff] %v3427
  %3884 = vst [vmem:[%s3821] ss:$9 sm:$0xff] %v3435
  %3885 = vst [vmem:[%s3823] ss:$9 sm:$0xff] %v3442
  %3886 = vst [vmem:[%s3825] ss:$9 sm:$0xff] %v3449
  %3887 = vst [vmem:[%s3827] ss:$9 sm:$0xff] %v3456
  %3888 = vst [vmem:[%s3829] ss:$9 sm:$0xff] %v3463
  %v3889 = vld [vmem:[#allocation1] sm:$0xff]
  %3890 = vst [vmem:[#allocation1] ss:$9 sm:$0xff] %v3470
  %3891 = vst [vmem:[%s3817] ss:$9 sm:$0xff] %v3477
  %3892 = vst [vmem:[%s3819] ss:$9 sm:$0xff] %v3484
  %3893 = vst [vmem:[%s3821] ss:$9 sm:$0xff] %v3492
  %3895 = vst [vmem:[%s3823] ss:$9 sm:$0xff] %v3784
  %3897 = vst [vmem:[%s3825] ss:$9 sm:$0xff] %v3791
  %3899 = vst [vmem:[%s3827] ss:$9 sm:$0xff] %v3798
  %3901 = vst [vmem:[%s3829] ss:$9 sm:$0xff] %v3806
  %v3902 = vld [vmem:[#allocation1] sm:$0xff]
  %v3911 = vunpack.c.l.b16 %v3808
  %v3912 = vunpack.c.l.b16 %v3809
  %v3913 = vunpack.c.l.b16 %v3810
  %v3914 = vunpack.c.l.b16 %v3811
  %v3915 = vunpack.c.l.b16 %v3812
  %v3916 = vunpack.c.l.b16 %v3813
  %v3917 = vunpack.c.l.b16 %v3814
  %v3918 = vunpack.c.l.b16 %v3815
  %v3919 = vpack.c.b16 %v3912, %v3911
  %v3920 = vpack.c.b16 %v3914, %v3913
  %v3921 = vpack.c.b16 %v3916, %v3915
  %v3922 = vpack.c.b16 %v3918, %v3917
  %v3927 = vsel %vm2579, %v3831, 0
  %v3929 = vsel %vm2579, %v3840, 0
  %v3931 = vsel %vm2579, %v3849, 0
  %v3933 = vsel %vm2579, %v3862, 0
  %v3935 = vsel %vm2579, %v3871, 0
  %v3937 = vsel %vm2579, %v3880, 0
  %v3939 = vsel %vm2579, %v3889, 0
  %v3941 = vsel %vm2579, %v3902, 0
  %3943 = vmatpush.bf16.msra.mxu0 0
  %3944 = vmatpush.bf16.msra.mxu0 0
  %3945 = vmatpush.bf16.msra.mxu0 0
  %3946 = vmatpush.bf16.msra.mxu0 0
  %3947 = vmatpush.bf16.msra.mxu0 %v3922
  %3948 = vmatpush.bf16.msra.mxu0 %v3921
  %3949 = vmatpush.bf16.msra.mxu0 %v3920
  %3950 = vmatpush.bf16.msra.mxu0 %v3919
  %3951 = vmatmul.bf16.gmra.mxu0 %v3927
  %v3952 = vpop.f32.mrf.mxu0
  %v3953 = vadd.f32 0.0, %v3952
  %v3954 = vpop.f32.mrf.mxu0
  %v3955 = vadd.f32 0.0, %v3954
  %3956 = vmatmul.bf16.gmra.mxu0 %v3929
  %v3957 = vpop.f32.mrf.mxu0
  %v3958 = vadd.f32 0.0, %v3957
  %v3959 = vpop.f32.mrf.mxu0
  %v3960 = vadd.f32 0.0, %v3959
  %3961 = vmatmul.bf16.gmra.mxu0 %v3931
  %v3962 = vpop.f32.mrf.mxu0
  %v3963 = vadd.f32 0.0, %v3962
  %v3964 = vpop.f32.mrf.mxu0
  %v3965 = vadd.f32 0.0, %v3964
  %3966 = vmatmul.bf16.gmra.mxu0 %v3933
  %v3967 = vpop.f32.mrf.mxu0
  %v3968 = vadd.f32 0.0, %v3967
  %v3969 = vpop.f32.mrf.mxu0
  %v3970 = vadd.f32 0.0, %v3969
  %3971 = vmatmul.bf16.gmra.mxu0 %v3935
  %v3972 = vpop.f32.mrf.mxu0
  %v3973 = vadd.f32 0.0, %v3972
  %v3974 = vpop.f32.mrf.mxu0
  %v3975 = vadd.f32 0.0, %v3974
  %3976 = vmatmul.bf16.gmra.mxu0 %v3937
  %v3977 = vpop.f32.mrf.mxu0
  %v3978 = vadd.f32 0.0, %v3977
  %v3979 = vpop.f32.mrf.mxu0
  %v3980 = vadd.f32 0.0, %v3979
  %3981 = vmatmul.bf16.gmra.mxu0 %v3939
  %v3982 = vpop.f32.mrf.mxu0
  %v3983 = vadd.f32 0.0, %v3982
  %v3984 = vpop.f32.mrf.mxu0
  %v3985 = vadd.f32 0.0, %v3984
  %3986 = vmatmul.bf16.gmra.mxu0 %v3941
  %v3987 = vpop.f32.mrf.mxu0
  %v3988 = vadd.f32 0.0, %v3987
  %v3989 = vpop.f32.mrf.mxu0
  %v3990 = vadd.f32 0.0, %v3989
  %3991 = vdwg.mxu0
  %v3992 = vadd.f32 %v3734, %v3953
  %v3993 = vadd.f32 %v3735, %v3955
  %v3994 = vadd.f32 %v3736, %v3958
  %v3995 = vadd.f32 %v3737, %v3960
  %v3996 = vadd.f32 %v3738, %v3963
  %v3997 = vadd.f32 %v3739, %v3965
  %v3998 = vadd.f32 %v3740, %v3968
  %v3999 = vadd.f32 %v3741, %v3970
  %v4000 = vadd.f32 %v3742, %v3973
  %v4001 = vadd.f32 %v3743, %v3975
  %v4002 = vadd.f32 %v3744, %v3978
  %v4003 = vadd.f32 %v3745, %v3980
  %v4004 = vadd.f32 %v3746, %v3983
  %v4005 = vadd.f32 %v3747, %v3985
  %v4006 = vadd.f32 %v3748, %v3988
  %v4007 = vadd.f32 %v3749, %v3990
  %v4008 = vshrl.u32 %v2248, 16
  %v4010 = vrot.slane %v4008, 7
  %v4011 = vrot.slane %v4010, 1
  %v4012 = vshll.u32 %v2251, 16
  %v4014 = vsel %vm3032, %v4011, %v4012
  %v4015 = vshrl.u32 %v2251, 16
  %v4017 = vrot.slane %v4015, 7
  %v4018 = vrot.slane %v4017, 1
  %v4019 = vshll.u32 %v2254, 16
  %v4021 = vsel %vm3032, %v4018, %v4019
  %v4022 = vshrl.u32 %v2254, 16
  %v4024 = vrot.slane %v4022, 7
  %v4025 = vrot.slane %v4024, 1
  %v4026 = vshll.u32 %v2257, 16
  %v4028 = vsel %vm3032, %v4025, %v4026
  %v4029 = vshrl.u32 %v2257, 16
  %v4031 = vrot.slane %v4029, 7
  %v4032 = vrot.slane %v4031, 1
  %v4034 = vshll.u32 %v2260, 16
  %v4036 = vsel %vm3032, %v4032, %v4034
  %v4037 = vshrl.u32 %v2398, 16
  %v4039 = vrot.slane %v4037, 7
  %v4040 = vrot.slane %v4039, 1
  %v4041 = vshll.u32 %v2401, 16
  %v4043 = vsel %vm3032, %v4040, %v4041
  %v4044 = vshrl.u32 %v2401, 16
  %v4046 = vrot.slane %v4044, 7
  %v4047 = vrot.slane %v4046, 1
  %v4048 = vshll.u32 %v2404, 16
  %v4050 = vsel %vm3032, %v4047, %v4048
  %v4051 = vshrl.u32 %v2404, 16
  %v4053 = vrot.slane %v4051, 7
  %v4054 = vrot.slane %v4053, 1
  %v4055 = vshll.u32 %v2407, 16
  %v4057 = vsel %vm3032, %v4054, %v4055
  %v4058 = vshrl.u32 %v2407, 16
  %v4060 = vrot.slane %v4058, 7
  %v4061 = vrot.slane %v4060, 1
  %v4063 = vshll.u32 %v2410, 16
  %v4065 = vsel %vm3032, %v4061, %v4063
  %s4066 = scalar_lea.vmem %s2, 224
  %v4067 = vld [vmem:[%s4066] sm:$0xf]
  %v4068 = vld [vmem:[%s4066 + $0x4] sm:$0xf]
  %v4069 = vld [vmem:[%s4066 + $0x8] sm:$0xf]
  %v4070 = vld [vmem:[%s4066 + $0xc] sm:$0xf]
  %v4071 = vld [vmem:[%s4066 + $0x10] sm:$0xf]
  %v4072 = vld [vmem:[%s4066 + $0x14] sm:$0xf]
  %v4073 = vld [vmem:[%s4066 + $0x18] sm:$0xf]
  %v4074 = vld [vmem:[%s4066 + $0x1c] sm:$0xf]
  %4075 = vst [vmem:[#allocation1] ss:$9 sm:$0xff] %v3096
  %s4076 = scalar_lea.vmem [#allocation1], 1
  %4077 = vst [vmem:[%s4076] ss:$9 sm:$0xff] %v3103
  %s4078 = scalar_lea.vmem [#allocation1], 2
  %4079 = vst [vmem:[%s4078] ss:$9 sm:$0xff] %v3110
  %s4080 = scalar_lea.vmem [#allocation1], 3
  %4081 = vst [vmem:[%s4080] ss:$9 sm:$0xff] %v3118
  %s4082 = scalar_lea.vmem [#allocation1], 4
  %4083 = vst [vmem:[%s4082] ss:$9 sm:$0xff] %v3125
  %s4084 = scalar_lea.vmem [#allocation1], 5
  %4085 = vst [vmem:[%s4084] ss:$9 sm:$0xff] %v3132
  %s4086 = scalar_lea.vmem [#allocation1], 6
  %4087 = vst [vmem:[%s4086] ss:$9 sm:$0xff] %v3139
  %s4088 = scalar_lea.vmem [#allocation1], 7
  %4089 = vst [vmem:[%s4088] ss:$9 sm:$0xff] %v3147
  %v4090 = vld [vmem:[#allocation1] sm:$0xff]
  %4091 = vst [vmem:[#allocation1] ss:$9 sm:$0xff] %v3154
  %4092 = vst [vmem:[%s4076] ss:$9 sm:$0xff] %v3161
  %4093 = vst [vmem:[%s4078] ss:$9 sm:$0xff] %v3168
  %4094 = vst [vmem:[%s4080] ss:$9 sm:$0xff] %v3175
  %4095 = vst [vmem:[%s4082] ss:$9 sm:$0xff] %v3182
  %4096 = vst [vmem:[%s4084] ss:$9 sm:$0xff] %v3189
  %4097 = vst [vmem:[%s4086] ss:$9 sm:$0xff] %v3196
  %4098 = vst [vmem:[%s4088] ss:$9 sm:$0xff] %v3204
  %v4099 = vld [vmem:[#allocation1] sm:$0xff]
  %4100 = vst [vmem:[#allocation1] ss:$9 sm:$0xff] %v3211
  %4101 = vst [vmem:[%s4076] ss:$9 sm:$0xff] %v3218
  %4102 = vst [vmem:[%s4078] ss:$9 sm:$0xff] %v3225
  %4103 = vst [vmem:[%s4080] ss:$9 sm:$0xff] %v3233
  %4104 = vst [vmem:[%s4082] ss:$9 sm:$0xff] %v3240
  %4105 = vst [vmem:[%s4084] ss:$9 sm:$0xff] %v3247
  %4106 = vst [vmem:[%s4086] ss:$9 sm:$0xff] %v3254
  %4107 = vst [vmem:[%s4088] ss:$9 sm:$0xff] %v3262
  %v4108 = vld [vmem:[#allocation1] sm:$0xff]
  %4109 = vst [vmem:[#allocation1] ss:$9 sm:$0xff] %v3756
  %4110 = vst [vmem:[%s4076] ss:$9 sm:$0xff] %v3763
  %4111 = vst [vmem:[%s4078] ss:$9 sm:$0xff] %v3770
  %4112 = vst [vmem:[%s4080] ss:$9 sm:$0xff] %v3777
  %4114 = vst [vmem:[%s4082] ss:$9 sm:$0xff] %v4014
  %4116 = vst [vmem:[%s4084] ss:$9 sm:$0xff] %v4021
  %4118 = vst [vmem:[%s4086] ss:$9 sm:$0xff] %v4028
  %4120 = vst [vmem:[%s4088] ss:$9 sm:$0xff] %v4036
  %v4121 = vld [vmem:[#allocation1] sm:$0xff]
  %4122 = vst [vmem:[#allocation1] ss:$9 sm:$0xff] %v3327
  %4123 = vst [vmem:[%s4076] ss:$9 sm:$0xff] %v3334
  %4124 = vst [vmem:[%s4078] ss:$9 sm:$0xff] %v3341
  %4125 = vst [vmem:[%s4080] ss:$9 sm:$0xff] %v3348
  %4126 = vst [vmem:[%s4082] ss:$9 sm:$0xff] %v3355
  %4127 = vst [vmem:[%s4084] ss:$9 sm:$0xff] %v3362
  %4128 = vst [vmem:[%s4086] ss:$9 sm:$0xff] %v3369
  %4129 = vst [vmem:[%s4088] ss:$9 sm:$0xff] %v3377
  %v4130 = vld [vmem:[#allocation1] sm:$0xff]
  %4131 = vst [vmem:[#allocation1] ss:$9 sm:$0xff] %v3384
  %4132 = vst [vmem:[%s4076] ss:$9 sm:$0xff] %v3391
  %4133 = vst [vmem:[%s4078] ss:$9 sm:$0xff] %v3398
  %4134 = vst [vmem:[%s4080] ss:$9 sm:$0xff] %v3406
  %4135 = vst [vmem:[%s4082] ss:$9 sm:$0xff] %v3413
  %4136 = vst [vmem:[%s4084] ss:$9 sm:$0xff] %v3420
  %4137 = vst [vmem:[%s4086] ss:$9 sm:$0xff] %v3427
  %4138 = vst [vmem:[%s4088] ss:$9 sm:$0xff] %v3435
  %v4139 = vld [vmem:[#allocation1] sm:$0xff]
  %4140 = vst [vmem:[#allocation1] ss:$9 sm:$0xff] %v3442
  %4141 = vst [vmem:[%s4076] ss:$9 sm:$0xff] %v3449
  %4142 = vst [vmem:[%s4078] ss:$9 sm:$0xff] %v3456
  %4143 = vst [vmem:[%s4080] ss:$9 sm:$0xff] %v3463
  %4144 = vst [vmem:[%s4082] ss:$9 sm:$0xff] %v3470
  %4145 = vst [vmem:[%s4084] ss:$9 sm:$0xff] %v3477
  %4146 = vst [vmem:[%s4086] ss:$9 sm:$0xff] %v3484
  %4147 = vst [vmem:[%s4088] ss:$9 sm:$0xff] %v3492
  %v4148 = vld [vmem:[#allocation1] sm:$0xff]
  %4149 = vst [vmem:[#allocation1] ss:$9 sm:$0xff] %v3784
  %4150 = vst [vmem:[%s4076] ss:$9 sm:$0xff] %v3791
  %4151 = vst [vmem:[%s4078] ss:$9 sm:$0xff] %v3798
  %4152 = vst [vmem:[%s4080] ss:$9 sm:$0xff] %v3806
  %4154 = vst [vmem:[%s4082] ss:$9 sm:$0xff] %v4043
  %4156 = vst [vmem:[%s4084] ss:$9 sm:$0xff] %v4050
  %4158 = vst [vmem:[%s4086] ss:$9 sm:$0xff] %v4057
  %4160 = vst [vmem:[%s4088] ss:$9 sm:$0xff] %v4065
  %v4161 = vld [vmem:[#allocation1] sm:$0xff]
  %v4170 = vunpack.c.l.b16 %v4067
  %v4171 = vunpack.c.l.b16 %v4068
  %v4172 = vunpack.c.l.b16 %v4069
  %v4173 = vunpack.c.l.b16 %v4070
  %v4174 = vunpack.c.l.b16 %v4071
  %v4175 = vunpack.c.l.b16 %v4072
  %v4176 = vunpack.c.l.b16 %v4073
  %v4177 = vunpack.c.l.b16 %v4074
  %v4178 = vpack.c.b16 %v4171, %v4170
  %v4179 = vpack.c.b16 %v4173, %v4172
  %v4180 = vpack.c.b16 %v4175, %v4174
  %v4181 = vpack.c.b16 %v4177, %v4176
  %v4186 = vsel %vm2579, %v4090, 0
  %v4188 = vsel %vm2579, %v4099, 0
  %v4190 = vsel %vm2579, %v4108, 0
  %v4192 = vsel %vm2579, %v4121, 0
  %v4194 = vsel %vm2579, %v4130, 0
  %v4196 = vsel %vm2579, %v4139, 0
  %v4198 = vsel %vm2579, %v4148, 0
  %v4200 = vsel %vm2579, %v4161, 0
  %4202 = vmatpush.bf16.msra.mxu0 0
  %4203 = vmatpush.bf16.msra.mxu0 0
  %4204 = vmatpush.bf16.msra.mxu0 0
  %4205 = vmatpush.bf16.msra.mxu0 0
  %4206 = vmatpush.bf16.msra.mxu0 %v4181
  %4207 = vmatpush.bf16.msra.mxu0 %v4180
  %4208 = vmatpush.bf16.msra.mxu0 %v4179
  %4209 = vmatpush.bf16.msra.mxu0 %v4178
  %4210 = vmatmul.bf16.gmra.mxu0 %v4186
  %v4211 = vpop.f32.mrf.mxu0
  %v4212 = vadd.f32 0.0, %v4211
  %v4213 = vpop.f32.mrf.mxu0
  %v4214 = vadd.f32 0.0, %v4213
  %4215 = vmatmul.bf16.gmra.mxu0 %v4188
  %v4216 = vpop.f32.mrf.mxu0
  %v4217 = vadd.f32 0.0, %v4216
  %v4218 = vpop.f32.mrf.mxu0
  %v4219 = vadd.f32 0.0, %v4218
  %4220 = vmatmul.bf16.gmra.mxu0 %v4190
  %v4221 = vpop.f32.mrf.mxu0
  %v4222 = vadd.f32 0.0, %v4221
  %v4223 = vpop.f32.mrf.mxu0
  %v4224 = vadd.f32 0.0, %v4223
  %4225 = vmatmul.bf16.gmra.mxu0 %v4192
  %v4226 = vpop.f32.mrf.mxu0
  %v4227 = vadd.f32 0.0, %v4226
  %v4228 = vpop.f32.mrf.mxu0
  %v4229 = vadd.f32 0.0, %v4228
  %4230 = vmatmul.bf16.gmra.mxu0 %v4194
  %v4231 = vpop.f32.mrf.mxu0
  %v4232 = vadd.f32 0.0, %v4231
  %v4233 = vpop.f32.mrf.mxu0
  %v4234 = vadd.f32 0.0, %v4233
  %4235 = vmatmul.bf16.gmra.mxu0 %v4196
  %v4236 = vpop.f32.mrf.mxu0
  %v4237 = vadd.f32 0.0, %v4236
  %v4238 = vpop.f32.mrf.mxu0
  %v4239 = vadd.f32 0.0, %v4238
  %4240 = vmatmul.bf16.gmra.mxu0 %v4198
  %v4241 = vpop.f32.mrf.mxu0
  %v4242 = vadd.f32 0.0, %v4241
  %v4243 = vpop.f32.mrf.mxu0
  %v4244 = vadd.f32 0.0, %v4243
  %4245 = vmatmul.bf16.gmra.mxu0 %v4200
  %v4246 = vpop.f32.mrf.mxu0
  %v4247 = vadd.f32 0.0, %v4246
  %v4248 = vpop.f32.mrf.mxu0
  %v4249 = vadd.f32 0.0, %v4248
  %4250 = vdwg.mxu0
  %v4251 = vadd.f32 %v3992, %v4212
  %v4252 = vadd.f32 %v3993, %v4214
  %v4253 = vadd.f32 %v3994, %v4217
  %v4254 = vadd.f32 %v3995, %v4219
  %v4255 = vadd.f32 %v3996, %v4222
  %v4256 = vadd.f32 %v3997, %v4224
  %v4257 = vadd.f32 %v3998, %v4227
  %v4258 = vadd.f32 %v3999, %v4229
  %v4259 = vadd.f32 %v4000, %v4232
  %v4260 = vadd.f32 %v4001, %v4234
  %v4261 = vadd.f32 %v4002, %v4237
  %v4262 = vadd.f32 %v4003, %v4239
  %v4263 = vadd.f32 %v4004, %v4242
  %v4264 = vadd.f32 %v4005, %v4244
  %v4265 = vadd.f32 %v4006, %v4247
  %v4266 = vadd.f32 %v4007, %v4249
  %s4267 = scalar_lea.vmem %s2, 64
  %v4268 = vld [vmem:[%s4267] sm:$0xf]
  %v4269 = vld [vmem:[%s4267 + $0x4] sm:$0xf]
  %v4270 = vld [vmem:[%s4267 + $0x8] sm:$0xf]
  %v4271 = vld [vmem:[%s4267 + $0xc] sm:$0xf]
  %v4272 = vld [vmem:[%s4267 + $0x10] sm:$0xf]
  %v4273 = vld [vmem:[%s4267 + $0x14] sm:$0xf]
  %v4274 = vld [vmem:[%s4267 + $0x18] sm:$0xf]
  %v4275 = vld [vmem:[%s4267 + $0x1c] sm:$0xf]
  %4276 = vst [vmem:[#allocation1] ss:$9 sm:$0xff] %v2114
  %s4277 = scalar_lea.vmem [#allocation1], 1
  %4278 = vst [vmem:[%s4277] ss:$9 sm:$0xff] %v2118
  %s4279 = scalar_lea.vmem [#allocation1], 2
  %4280 = vst [vmem:[%s4279] ss:$9 sm:$0xff] %v2122
  %s4281 = scalar_lea.vmem [#allocation1], 3
  %4282 = vst [vmem:[%s4281] ss:$9 sm:$0xff] %v2125
  %s4283 = scalar_lea.vmem [#allocation1], 4
  %4284 = vst [vmem:[%s4283] ss:$9 sm:$0xff] %v2131
  %s4285 = scalar_lea.vmem [#allocation1], 5
  %4286 = vst [vmem:[%s4285] ss:$9 sm:$0xff] %v2134
  %s4287 = scalar_lea.vmem [#allocation1], 6
  %4288 = vst [vmem:[%s4287] ss:$9 sm:$0xff] %v2137
  %s4289 = scalar_lea.vmem [#allocation1], 7
  %4290 = vst [vmem:[%s4289] ss:$9 sm:$0xff] %v2140
  %v4291 = vld [vmem:[#allocation1] sm:$0xff]
  %4292 = vst [vmem:[#allocation1] ss:$9 sm:$0xff] %v2146
  %4293 = vst [vmem:[%s4277] ss:$9 sm:$0xff] %v2149
  %4294 = vst [vmem:[%s4279] ss:$9 sm:$0xff] %v2152
  %4295 = vst [vmem:[%s4281] ss:$9 sm:$0xff] %v2155
  %4296 = vst [vmem:[%s4283] ss:$9 sm:$0xff] %v2161
  %4297 = vst [vmem:[%s4285] ss:$9 sm:$0xff] %v2164
  %4298 = vst [vmem:[%s4287] ss:$9 sm:$0xff] %v2167
  %4299 = vst [vmem:[%s4289] ss:$9 sm:$0xff] %v2170
  %v4300 = vld [vmem:[#allocation1] sm:$0xff]
  %4301 = vst [vmem:[#allocation1] ss:$9 sm:$0xff] %v2176
  %4302 = vst [vmem:[%s4277] ss:$9 sm:$0xff] %v2179
  %4303 = vst [vmem:[%s4279] ss:$9 sm:$0xff] %v2182
  %4304 = vst [vmem:[%s4281] ss:$9 sm:$0xff] %v2185
  %4305 = vst [vmem:[%s4283] ss:$9 sm:$0xff] %v2191
  %4306 = vst [vmem:[%s4285] ss:$9 sm:$0xff] %v2194
  %4307 = vst [vmem:[%s4287] ss:$9 sm:$0xff] %v2197
  %4308 = vst [vmem:[%s4289] ss:$9 sm:$0xff] %v2200
  %v4309 = vld [vmem:[#allocation1] sm:$0xff]
  %4310 = vst [vmem:[#allocation1] ss:$9 sm:$0xff] %v2206
  %4311 = vst [vmem:[%s4277] ss:$9 sm:$0xff] %v2209
  %4312 = vst [vmem:[%s4279] ss:$9 sm:$0xff] %v2212
  %4313 = vst [vmem:[%s4281] ss:$9 sm:$0xff] %v2215
  %4314 = vst [vmem:[%s4283] ss:$9 sm:$0xff] %v2221
  %4315 = vst [vmem:[%s4285] ss:$9 sm:$0xff] %v2224
  %4316 = vst [vmem:[%s4287] ss:$9 sm:$0xff] %v2227
  %4317 = vst [vmem:[%s4289] ss:$9 sm:$0xff] %v2230
  %v4318 = vld [vmem:[#allocation1] sm:$0xff]
  %4319 = vst [vmem:[#allocation1] ss:$9 sm:$0xff] %v2266
  %4320 = vst [vmem:[%s4277] ss:$9 sm:$0xff] %v2269
  %4321 = vst [vmem:[%s4279] ss:$9 sm:$0xff] %v2272
  %4322 = vst [vmem:[%s4281] ss:$9 sm:$0xff] %v2275
  %4323 = vst [vmem:[%s4283] ss:$9 sm:$0xff] %v2281
  %4324 = vst [vmem:[%s4285] ss:$9 sm:$0xff] %v2284
  %4325 = vst [vmem:[%s4287] ss:$9 sm:$0xff] %v2287
  %4326 = vst [vmem:[%s4289] ss:$9 sm:$0xff] %v2290
  %v4327 = vld [vmem:[#allocation1] sm:$0xff]
  %4328 = vst [vmem:[#allocation1] ss:$9 sm:$0xff] %v2296
  %4329 = vst [vmem:[%s4277] ss:$9 sm:$0xff] %v2299
  %4330 = vst [vmem:[%s4279] ss:$9 sm:$0xff] %v2302
  %4331 = vst [vmem:[%s4281] ss:$9 sm:$0xff] %v2305
  %4332 = vst [vmem:[%s4283] ss:$9 sm:$0xff] %v2311
  %4333 = vst [vmem:[%s4285] ss:$9 sm:$0xff] %v2314
  %4334 = vst [vmem:[%s4287] ss:$9 sm:$0xff] %v2317
  %4335 = vst [vmem:[%s4289] ss:$9 sm:$0xff] %v2320
  %v4336 = vld [vmem:[#allocation1] sm:$0xff]
  %4337 = vst [vmem:[#allocation1] ss:$9 sm:$0xff] %v2326
  %4338 = vst [vmem:[%s4277] ss:$9 sm:$0xff] %v2329
  %4339 = vst [vmem:[%s4279] ss:$9 sm:$0xff] %v2332
  %4340 = vst [vmem:[%s4281] ss:$9 sm:$0xff] %v2335
  %4341 = vst [vmem:[%s4283] ss:$9 sm:$0xff] %v2341
  %4342 = vst [vmem:[%s4285] ss:$9 sm:$0xff] %v2344
  %4343 = vst [vmem:[%s4287] ss:$9 sm:$0xff] %v2347
  %4344 = vst [vmem:[%s4289] ss:$9 sm:$0xff] %v2350
  %v4345 = vld [vmem:[#allocation1] sm:$0xff]
  %4346 = vst [vmem:[#allocation1] ss:$9 sm:$0xff] %v2356
  %4347 = vst [vmem:[%s4277] ss:$9 sm:$0xff] %v2359
  %4348 = vst [vmem:[%s4279] ss:$9 sm:$0xff] %v2362
  %4349 = vst [vmem:[%s4281] ss:$9 sm:$0xff] %v2365
  %4350 = vst [vmem:[%s4283] ss:$9 sm:$0xff] %v2371
  %4351 = vst [vmem:[%s4285] ss:$9 sm:$0xff] %v2374
  %4352 = vst [vmem:[%s4287] ss:$9 sm:$0xff] %v2377
  %4353 = vst [vmem:[%s4289] ss:$9 sm:$0xff] %v2380
  %v4354 = vld [vmem:[#allocation1] sm:$0xff]
  %v4363 = vunpack.c.l.b16 %v4268
  %v4364 = vunpack.c.l.b16 %v4269
  %v4365 = vunpack.c.l.b16 %v4270
  %v4366 = vunpack.c.l.b16 %v4271
  %v4367 = vunpack.c.l.b16 %v4272
  %v4368 = vunpack.c.l.b16 %v4273
  %v4369 = vunpack.c.l.b16 %v4274
  %v4370 = vunpack.c.l.b16 %v4275
  %v4371 = vpack.c.b16 %v4364, %v4363
  %v4372 = vpack.c.b16 %v4366, %v4365
  %v4373 = vpack.c.b16 %v4368, %v4367
  %v4374 = vpack.c.b16 %v4370, %v4369
  %v4379 = vsel %vm2579, %v4291, 0
  %v4381 = vsel %vm2579, %v4300, 0
  %v4383 = vsel %vm2579, %v4309, 0
  %v4385 = vsel %vm2579, %v4318, 0
  %v4387 = vsel %vm2579, %v4327, 0
  %v4389 = vsel %vm2579, %v4336, 0
  %v4391 = vsel %vm2579, %v4345, 0
  %v4393 = vsel %vm2579, %v4354, 0
  %4395 = vmatpush.bf16.msra.mxu0 0
  %4396 = vmatpush.bf16.msra.mxu0 0
  %4397 = vmatpush.bf16.msra.mxu0 0
  %4398 = vmatpush.bf16.msra.mxu0 0
  %4399 = vmatpush.bf16.msra.mxu0 %v4374
  %4400 = vmatpush.bf16.msra.mxu0 %v4373
  %4401 = vmatpush.bf16.msra.mxu0 %v4372
  %4402 = vmatpush.bf16.msra.mxu0 %v4371
  %4403 = vmatmul.bf16.gmra.mxu0 %v4379
  %v4404 = vpop.f32.mrf.mxu0
  %v4405 = vadd.f32 0.0, %v4404
  %v4406 = vpop.f32.mrf.mxu0
  %v4407 = vadd.f32 0.0, %v4406
  %4408 = vmatmul.bf16.gmra.mxu0 %v4381
  %v4409 = vpop.f32.mrf.mxu0
  %v4410 = vadd.f32 0.0, %v4409
  %v4411 = vpop.f32.mrf.mxu0
  %v4412 = vadd.f32 0.0, %v4411
  %4413 = vmatmul.bf16.gmra.mxu0 %v4383
  %v4414 = vpop.f32.mrf.mxu0
  %v4415 = vadd.f32 0.0, %v4414
  %v4416 = vpop.f32.mrf.mxu0
  %v4417 = vadd.f32 0.0, %v4416
  %4418 = vmatmul.bf16.gmra.mxu0 %v4385
  %v4419 = vpop.f32.mrf.mxu0
  %v4420 = vadd.f32 0.0, %v4419
  %v4421 = vpop.f32.mrf.mxu0
  %v4422 = vadd.f32 0.0, %v4421
  %4423 = vmatmul.bf16.gmra.mxu0 %v4387
  %v4424 = vpop.f32.mrf.mxu0
  %v4425 = vadd.f32 0.0, %v4424
  %v4426 = vpop.f32.mrf.mxu0
  %v4427 = vadd.f32 0.0, %v4426
  %4428 = vmatmul.bf16.gmra.mxu0 %v4389
  %v4429 = vpop.f32.mrf.mxu0
  %v4430 = vadd.f32 0.0, %v4429
  %v4431 = vpop.f32.mrf.mxu0
  %v4432 = vadd.f32 0.0, %v4431
  %4433 = vmatmul.bf16.gmra.mxu0 %v4391
  %v4434 = vpop.f32.mrf.mxu0
  %v4435 = vadd.f32 0.0, %v4434
  %v4436 = vpop.f32.mrf.mxu0
  %v4437 = vadd.f32 0.0, %v4436
  %4438 = vmatmul.bf16.gmra.mxu0 %v4393
  %v4439 = vpop.f32.mrf.mxu0
  %v4440 = vadd.f32 0.0, %v4439
  %v4441 = vpop.f32.mrf.mxu0
  %v4442 = vadd.f32 0.0, %v4441
  %4443 = vdwg.mxu0
  %v4444 = vadd.f32 %v4251, %v4405
  %v4445 = vadd.f32 %v4252, %v4407
  %v4446 = vadd.f32 %v4253, %v4410
  %v4447 = vadd.f32 %v4254, %v4412
  %v4448 = vadd.f32 %v4255, %v4415
  %v4449 = vadd.f32 %v4256, %v4417
  %v4450 = vadd.f32 %v4257, %v4420
  %v4451 = vadd.f32 %v4258, %v4422
  %v4452 = vadd.f32 %v4259, %v4425
  %v4453 = vadd.f32 %v4260, %v4427
  %v4454 = vadd.f32 %v4261, %v4430
  %v4455 = vadd.f32 %v4262, %v4432
  %v4456 = vadd.f32 %v4263, %v4435
  %v4457 = vadd.f32 %v4264, %v4437
  %v4458 = vadd.f32 %v4265, %v4440
  %v4459 = vadd.f32 %v4266, %v4442
  %s4460 = scalar_lea.vmem %s2, 160
  %v4461 = vld [vmem:[%s4460] sm:$0xf]
  %v4462 = vld [vmem:[%s4460 + $0x4] sm:$0xf]
  %v4463 = vld [vmem:[%s4460 + $0x8] sm:$0xf]
  %v4464 = vld [vmem:[%s4460 + $0xc] sm:$0xf]
  %v4465 = vld [vmem:[%s4460 + $0x10] sm:$0xf]
  %v4466 = vld [vmem:[%s4460 + $0x14] sm:$0xf]
  %v4467 = vld [vmem:[%s4460 + $0x18] sm:$0xf]
  %v4468 = vld [vmem:[%s4460 + $0x1c] sm:$0xf]
  %4469 = vst [vmem:[#allocation1] ss:$9 sm:$0xff] %v2131
  %s4470 = scalar_lea.vmem [#allocation1], 1
  %4471 = vst [vmem:[%s4470] ss:$9 sm:$0xff] %v2134
  %s4472 = scalar_lea.vmem [#allocation1], 2
  %4473 = vst [vmem:[%s4472] ss:$9 sm:$0xff] %v2137
  %s4474 = scalar_lea.vmem [#allocation1], 3
  %4475 = vst [vmem:[%s4474] ss:$9 sm:$0xff] %v2140
  %s4476 = scalar_lea.vmem [#allocation1], 4
  %4477 = vst [vmem:[%s4476] ss:$9 sm:$0xff] %v2146
  %s4478 = scalar_lea.vmem [#allocation1], 5
  %4479 = vst [vmem:[%s4478] ss:$9 sm:$0xff] %v2149
  %s4480 = scalar_lea.vmem [#allocation1], 6
  %4481 = vst [vmem:[%s4480] ss:$9 sm:$0xff] %v2152
  %s4482 = scalar_lea.vmem [#allocation1], 7
  %4483 = vst [vmem:[%s4482] ss:$9 sm:$0xff] %v2155
  %v4484 = vld [vmem:[#allocation1] sm:$0xff]
  %4485 = vst [vmem:[#allocation1] ss:$9 sm:$0xff] %v2161
  %4486 = vst [vmem:[%s4470] ss:$9 sm:$0xff] %v2164
  %4487 = vst [vmem:[%s4472] ss:$9 sm:$0xff] %v2167
  %4488 = vst [vmem:[%s4474] ss:$9 sm:$0xff] %v2170
  %4489 = vst [vmem:[%s4476] ss:$9 sm:$0xff] %v2176
  %4490 = vst [vmem:[%s4478] ss:$9 sm:$0xff] %v2179
  %4491 = vst [vmem:[%s4480] ss:$9 sm:$0xff] %v2182
  %4492 = vst [vmem:[%s4482] ss:$9 sm:$0xff] %v2185
  %v4493 = vld [vmem:[#allocation1] sm:$0xff]
  %4494 = vst [vmem:[#allocation1] ss:$9 sm:$0xff] %v2191
  %4495 = vst [vmem:[%s4470] ss:$9 sm:$0xff] %v2194
  %4496 = vst [vmem:[%s4472] ss:$9 sm:$0xff] %v2197
  %4497 = vst [vmem:[%s4474] ss:$9 sm:$0xff] %v2200
  %4498 = vst [vmem:[%s4476] ss:$9 sm:$0xff] %v2206
  %4499 = vst [vmem:[%s4478] ss:$9 sm:$0xff] %v2209
  %4500 = vst [vmem:[%s4480] ss:$9 sm:$0xff] %v2212
  %4501 = vst [vmem:[%s4482] ss:$9 sm:$0xff] %v2215
  %v4502 = vld [vmem:[#allocation1] sm:$0xff]
  %4503 = vst [vmem:[#allocation1] ss:$9 sm:$0xff] %v2221
  %4504 = vst [vmem:[%s4470] ss:$9 sm:$0xff] %v2224
  %4505 = vst [vmem:[%s4472] ss:$9 sm:$0xff] %v2227
  %4506 = vst [vmem:[%s4474] ss:$9 sm:$0xff] %v2230
  %4507 = vst [vmem:[%s4476] ss:$9 sm:$0xff] %v2236
  %4508 = vst [vmem:[%s4478] ss:$9 sm:$0xff] %v2239
  %4509 = vst [vmem:[%s4480] ss:$9 sm:$0xff] %v2242
  %4510 = vst [vmem:[%s4482] ss:$9 sm:$0xff] %v2245
  %v4511 = vld [vmem:[#allocation1] sm:$0xff]
  %4512 = vst [vmem:[#allocation1] ss:$9 sm:$0xff] %v2281
  %4513 = vst [vmem:[%s4470] ss:$9 sm:$0xff] %v2284
  %4514 = vst [vmem:[%s4472] ss:$9 sm:$0xff] %v2287
  %4515 = vst [vmem:[%s4474] ss:$9 sm:$0xff] %v2290
  %4516 = vst [vmem:[%s4476] ss:$9 sm:$0xff] %v2296
  %4517 = vst [vmem:[%s4478] ss:$9 sm:$0xff] %v2299
  %4518 = vst [vmem:[%s4480] ss:$9 sm:$0xff] %v2302
  %4519 = vst [vmem:[%s4482] ss:$9 sm:$0xff] %v2305
  %v4520 = vld [vmem:[#allocation1] sm:$0xff]
  %4521 = vst [vmem:[#allocation1] ss:$9 sm:$0xff] %v2311
  %4522 = vst [vmem:[%s4470] ss:$9 sm:$0xff] %v2314
  %4523 = vst [vmem:[%s4472] ss:$9 sm:$0xff] %v2317
  %4524 = vst [vmem:[%s4474] ss:$9 sm:$0xff] %v2320
  %4525 = vst [vmem:[%s4476] ss:$9 sm:$0xff] %v2326
  %4526 = vst [vmem:[%s4478] ss:$9 sm:$0xff] %v2329
  %4527 = vst [vmem:[%s4480] ss:$9 sm:$0xff] %v2332
  %4528 = vst [vmem:[%s4482] ss:$9 sm:$0xff] %v2335
  %v4529 = vld [vmem:[#allocation1] sm:$0xff]
  %4530 = vst [vmem:[#allocation1] ss:$9 sm:$0xff] %v2341
  %4531 = vst [vmem:[%s4470] ss:$9 sm:$0xff] %v2344
  %4532 = vst [vmem:[%s4472] ss:$9 sm:$0xff] %v2347
  %4533 = vst [vmem:[%s4474] ss:$9 sm:$0xff] %v2350
  %4534 = vst [vmem:[%s4476] ss:$9 sm:$0xff] %v2356
  %4535 = vst [vmem:[%s4478] ss:$9 sm:$0xff] %v2359
  %4536 = vst [vmem:[%s4480] ss:$9 sm:$0xff] %v2362
  %4537 = vst [vmem:[%s4482] ss:$9 sm:$0xff] %v2365
  %v4538 = vld [vmem:[#allocation1] sm:$0xff]
  %4539 = vst [vmem:[#allocation1] ss:$9 sm:$0xff] %v2371
  %4540 = vst [vmem:[%s4470] ss:$9 sm:$0xff] %v2374
  %4541 = vst [vmem:[%s4472] ss:$9 sm:$0xff] %v2377
  %4542 = vst [vmem:[%s4474] ss:$9 sm:$0xff] %v2380
  %4543 = vst [vmem:[%s4476] ss:$9 sm:$0xff] %v2386
  %4544 = vst [vmem:[%s4478] ss:$9 sm:$0xff] %v2389
  %4545 = vst [vmem:[%s4480] ss:$9 sm:$0xff] %v2392
  %4546 = vst [vmem:[%s4482] ss:$9 sm:$0xff] %v2395
  %v4547 = vld [vmem:[#allocation1] sm:$0xff]
  %v4556 = vunpack.c.l.b16 %v4461
  %v4557 = vunpack.c.l.b16 %v4462
  %v4558 = vunpack.c.l.b16 %v4463
  %v4559 = vunpack.c.l.b16 %v4464
  %v4560 = vunpack.c.l.b16 %v4465
  %v4561 = vunpack.c.l.b16 %v4466
  %v4562 = vunpack.c.l.b16 %v4467
  %v4563 = vunpack.c.l.b16 %v4468
  %v4564 = vpack.c.b16 %v4557, %v4556
  %v4565 = vpack.c.b16 %v4559, %v4558
  %v4566 = vpack.c.b16 %v4561, %v4560
  %v4567 = vpack.c.b16 %v4563, %v4562
  %v4572 = vsel %vm2579, %v4484, 0
  %v4574 = vsel %vm2579, %v4493, 0
  %v4576 = vsel %vm2579, %v4502, 0
  %v4578 = vsel %vm2579, %v4511, 0
  %v4580 = vsel %vm2579, %v4520, 0
  %v4582 = vsel %vm2579, %v4529, 0
  %v4584 = vsel %vm2579, %v4538, 0
  %v4586 = vsel %vm2579, %v4547, 0
  %4588 = vmatpush.bf16.msra.mxu0 0
  %4589 = vmatpush.bf16.msra.mxu0 0
  %4590 = vmatpush.bf16.msra.mxu0 0
  %4591 = vmatpush.bf16.msra.mxu0 0
  %4592 = vmatpush.bf16.msra.mxu0 %v4567
  %4593 = vmatpush.bf16.msra.mxu0 %v4566
  %4594 = vmatpush.bf16.msra.mxu0 %v4565
  %4595 = vmatpush.bf16.msra.mxu0 %v4564
  %4596 = vmatmul.bf16.gmra.mxu0 %v4572
  %v4597 = vpop.f32.mrf.mxu0
  %v4598 = vadd.f32 0.0, %v4597
  %v4599 = vpop.f32.mrf.mxu0
  %v4600 = vadd.f32 0.0, %v4599
  %4601 = vmatmul.bf16.gmra.mxu0 %v4574
  %v4602 = vpop.f32.mrf.mxu0
  %v4603 = vadd.f32 0.0, %v4602
  %v4604 = vpop.f32.mrf.mxu0
  %v4605 = vadd.f32 0.0, %v4604
  %4606 = vmatmul.bf16.gmra.mxu0 %v4576
  %v4607 = vpop.f32.mrf.mxu0
  %v4608 = vadd.f32 0.0, %v4607
  %v4609 = vpop.f32.mrf.mxu0
  %v4610 = vadd.f32 0.0, %v4609
  %4611 = vmatmul.bf16.gmra.mxu0 %v4578
  %v4612 = vpop.f32.mrf.mxu0
  %v4613 = vadd.f32 0.0, %v4612
  %v4614 = vpop.f32.mrf.mxu0
  %v4615 = vadd.f32 0.0, %v4614
  %4616 = vmatmul.bf16.gmra.mxu0 %v4580
  %v4617 = vpop.f32.mrf.mxu0
  %v4618 = vadd.f32 0.0, %v4617
  %v4619 = vpop.f32.mrf.mxu0
  %v4620 = vadd.f32 0.0, %v4619
  %4621 = vmatmul.bf16.gmra.mxu0 %v4582
  %v4622 = vpop.f32.mrf.mxu0
  %v4623 = vadd.f32 0.0, %v4622
  %v4624 = vpop.f32.mrf.mxu0
  %v4625 = vadd.f32 0.0, %v4624
  %4626 = vmatmul.bf16.gmra.mxu0 %v4584
  %v4627 = vpop.f32.mrf.mxu0
  %v4628 = vadd.f32 0.0, %v4627
  %v4629 = vpop.f32.mrf.mxu0
  %v4630 = vadd.f32 0.0, %v4629
  %4631 = vmatmul.bf16.gmra.mxu0 %v4586
  %v4632 = vpop.f32.mrf.mxu0
  %v4633 = vadd.f32 0.0, %v4632
  %v4634 = vpop.f32.mrf.mxu0
  %v4635 = vadd.f32 0.0, %v4634
  %4636 = vdwg.mxu0
  %v4637 = vadd.f32 %v4444, %v4598
  %v4638 = vadd.f32 %v4445, %v4600
  %v4639 = vadd.f32 %v4446, %v4603
  %v4640 = vadd.f32 %v4447, %v4605
  %v4641 = vadd.f32 %v4448, %v4608
  %v4642 = vadd.f32 %v4449, %v4610
  %v4643 = vadd.f32 %v4450, %v4613
  %v4644 = vadd.f32 %v4451, %v4615
  %v4645 = vadd.f32 %v4452, %v4618
  %v4646 = vadd.f32 %v4453, %v4620
  %v4647 = vadd.f32 %v4454, %v4623
  %v4648 = vadd.f32 %v4455, %v4625
  %v4649 = vadd.f32 %v4456, %v4628
  %v4650 = vadd.f32 %v4457, %v4630
  %v4651 = vadd.f32 %v4458, %v4633
  %v4652 = vadd.f32 %v4459, %v4635
  %s4653 = scalar_lea.vmem %s2, 256
  %v4654 = vld [vmem:[%s4653] sm:$0xf]
  %v4655 = vld [vmem:[%s4653 + $0x4] sm:$0xf]
  %v4656 = vld [vmem:[%s4653 + $0x8] sm:$0xf]
  %v4657 = vld [vmem:[%s4653 + $0xc] sm:$0xf]
  %v4658 = vld [vmem:[%s4653 + $0x10] sm:$0xf]
  %v4659 = vld [vmem:[%s4653 + $0x14] sm:$0xf]
  %v4660 = vld [vmem:[%s4653 + $0x18] sm:$0xf]
  %v4661 = vld [vmem:[%s4653 + $0x1c] sm:$0xf]
  %4662 = vst [vmem:[#allocation1] ss:$9 sm:$0xff] %v2146
  %s4663 = scalar_lea.vmem [#allocation1], 1
  %4664 = vst [vmem:[%s4663] ss:$9 sm:$0xff] %v2149
  %s4665 = scalar_lea.vmem [#allocation1], 2
  %4666 = vst [vmem:[%s4665] ss:$9 sm:$0xff] %v2152
  %s4667 = scalar_lea.vmem [#allocation1], 3
  %4668 = vst [vmem:[%s4667] ss:$9 sm:$0xff] %v2155
  %s4669 = scalar_lea.vmem [#allocation1], 4
  %4670 = vst [vmem:[%s4669] ss:$9 sm:$0xff] %v2161
  %s4671 = scalar_lea.vmem [#allocation1], 5
  %4672 = vst [vmem:[%s4671] ss:$9 sm:$0xff] %v2164
  %s4673 = scalar_lea.vmem [#allocation1], 6
  %4674 = vst [vmem:[%s4673] ss:$9 sm:$0xff] %v2167
  %s4675 = scalar_lea.vmem [#allocation1], 7
  %4676 = vst [vmem:[%s4675] ss:$9 sm:$0xff] %v2170
  %v4677 = vld [vmem:[#allocation1] sm:$0xff]
  %4678 = vst [vmem:[#allocation1] ss:$9 sm:$0xff] %v2176
  %4679 = vst [vmem:[%s4663] ss:$9 sm:$0xff] %v2179
  %4680 = vst [vmem:[%s4665] ss:$9 sm:$0xff] %v2182
  %4681 = vst [vmem:[%s4667] ss:$9 sm:$0xff] %v2185
  %4682 = vst [vmem:[%s4669] ss:$9 sm:$0xff] %v2191
  %4683 = vst [vmem:[%s4671] ss:$9 sm:$0xff] %v2194
  %4684 = vst [vmem:[%s4673] ss:$9 sm:$0xff] %v2197
  %4685 = vst [vmem:[%s4675] ss:$9 sm:$0xff] %v2200
  %v4686 = vld [vmem:[#allocation1] sm:$0xff]
  %4687 = vst [vmem:[#allocation1] ss:$9 sm:$0xff] %v2206
  %4688 = vst [vmem:[%s4663] ss:$9 sm:$0xff] %v2209
  %4689 = vst [vmem:[%s4665] ss:$9 sm:$0xff] %v2212
  %4690 = vst [vmem:[%s4667] ss:$9 sm:$0xff] %v2215
  %4691 = vst [vmem:[%s4669] ss:$9 sm:$0xff] %v2221
  %4692 = vst [vmem:[%s4671] ss:$9 sm:$0xff] %v2224
  %4693 = vst [vmem:[%s4673] ss:$9 sm:$0xff] %v2227
  %4694 = vst [vmem:[%s4675] ss:$9 sm:$0xff] %v2230
  %v4695 = vld [vmem:[#allocation1] sm:$0xff]
  %4696 = vst [vmem:[#allocation1] ss:$9 sm:$0xff] %v2236
  %4697 = vst [vmem:[%s4663] ss:$9 sm:$0xff] %v2239
  %4698 = vst [vmem:[%s4665] ss:$9 sm:$0xff] %v2242
  %4699 = vst [vmem:[%s4667] ss:$9 sm:$0xff] %v2245
  %4700 = vst [vmem:[%s4669] ss:$9 sm:$0xff] %v2251
  %4701 = vst [vmem:[%s4671] ss:$9 sm:$0xff] %v2254
  %4702 = vst [vmem:[%s4673] ss:$9 sm:$0xff] %v2257
  %4703 = vst [vmem:[%s4675] ss:$9 sm:$0xff] %v2260
  %v4704 = vld [vmem:[#allocation1] sm:$0xff]
  %4705 = vst [vmem:[#allocation1] ss:$9 sm:$0xff] %v2296
  %4706 = vst [vmem:[%s4663] ss:$9 sm:$0xff] %v2299
  %4707 = vst [vmem:[%s4665] ss:$9 sm:$0xff] %v2302
  %4708 = vst [vmem:[%s4667] ss:$9 sm:$0xff] %v2305
  %4709 = vst [vmem:[%s4669] ss:$9 sm:$0xff] %v2311
  %4710 = vst [vmem:[%s4671] ss:$9 sm:$0xff] %v2314
  %4711 = vst [vmem:[%s4673] ss:$9 sm:$0xff] %v2317
  %4712 = vst [vmem:[%s4675] ss:$9 sm:$0xff] %v2320
  %v4713 = vld [vmem:[#allocation1] sm:$0xff]
  %4714 = vst [vmem:[#allocation1] ss:$9 sm:$0xff] %v2326
  %4715 = vst [vmem:[%s4663] ss:$9 sm:$0xff] %v2329
  %4716 = vst [vmem:[%s4665] ss:$9 sm:$0xff] %v2332
  %4717 = vst [vmem:[%s4667] ss:$9 sm:$0xff] %v2335
  %4718 = vst [vmem:[%s4669] ss:$9 sm:$0xff] %v2341
  %4719 = vst [vmem:[%s4671] ss:$9 sm:$0xff] %v2344
  %4720 = vst [vmem:[%s4673] ss:$9 sm:$0xff] %v2347
  %4721 = vst [vmem:[%s4675] ss:$9 sm:$0xff] %v2350
  %v4722 = vld [vmem:[#allocation1] sm:$0xff]
  %4723 = vst [vmem:[#allocation1] ss:$9 sm:$0xff] %v2356
  %4724 = vst [vmem:[%s4663] ss:$9 sm:$0xff] %v2359
  %4725 = vst [vmem:[%s4665] ss:$9 sm:$0xff] %v2362
  %4726 = vst [vmem:[%s4667] ss:$9 sm:$0xff] %v2365
  %4727 = vst [vmem:[%s4669] ss:$9 sm:$0xff] %v2371
  %4728 = vst [vmem:[%s4671] ss:$9 sm:$0xff] %v2374
  %4729 = vst [vmem:[%s4673] ss:$9 sm:$0xff] %v2377
  %4730 = vst [vmem:[%s4675] ss:$9 sm:$0xff] %v2380
  %v4731 = vld [vmem:[#allocation1] sm:$0xff]
  %4732 = vst [vmem:[#allocation1] ss:$9 sm:$0xff] %v2386
  %4733 = vst [vmem:[%s4663] ss:$9 sm:$0xff] %v2389
  %4734 = vst [vmem:[%s4665] ss:$9 sm:$0xff] %v2392
  %4735 = vst [vmem:[%s4667] ss:$9 sm:$0xff] %v2395
  %4736 = vst [vmem:[%s4669] ss:$9 sm:$0xff] %v2401
  %4737 = vst [vmem:[%s4671] ss:$9 sm:$0xff] %v2404
  %4738 = vst [vmem:[%s4673] ss:$9 sm:$0xff] %v2407
  %4739 = vst [vmem:[%s4675] ss:$9 sm:$0xff] %v2410
  %v4740 = vld [vmem:[#allocation1] sm:$0xff]
  %v4749 = vunpack.c.l.b16 %v4654
  %v4750 = vunpack.c.l.b16 %v4655
  %v4751 = vunpack.c.l.b16 %v4656
  %v4752 = vunpack.c.l.b16 %v4657
  %v4753 = vunpack.c.l.b16 %v4658
  %v4754 = vunpack.c.l.b16 %v4659
  %v4755 = vunpack.c.l.b16 %v4660
  %v4756 = vunpack.c.l.b16 %v4661
  %v4757 = vpack.c.b16 %v4750, %v4749
  %v4758 = vpack.c.b16 %v4752, %v4751
  %v4759 = vpack.c.b16 %v4754, %v4753
  %v4760 = vpack.c.b16 %v4756, %v4755
  %v4765 = vsel %vm2579, %v4677, 0
  %v4767 = vsel %vm2579, %v4686, 0
  %v4769 = vsel %vm2579, %v4695, 0
  %v4771 = vsel %vm2579, %v4704, 0
  %v4773 = vsel %vm2579, %v4713, 0
  %v4775 = vsel %vm2579, %v4722, 0
  %v4777 = vsel %vm2579, %v4731, 0
  %v4779 = vsel %vm2579, %v4740, 0
  %4781 = vmatpush.bf16.msra.mxu0 0
  %4782 = vmatpush.bf16.msra.mxu0 0
  %4783 = vmatpush.bf16.msra.mxu0 0
  %4784 = vmatpush.bf16.msra.mxu0 0
  %4785 = vmatpush.bf16.msra.mxu0 %v4760
  %4786 = vmatpush.bf16.msra.mxu0 %v4759
  %4787 = vmatpush.bf16.msra.mxu0 %v4758
  %4788 = vmatpush.bf16.msra.mxu0 %v4757
  %4789 = vmatmul.bf16.gmra.mxu0 %v4765
  %v4790 = vpop.f32.mrf.mxu0
  %v4791 = vadd.f32 0.0, %v4790
  %v4792 = vpop.f32.mrf.mxu0
  %v4793 = vadd.f32 0.0, %v4792
  %4794 = vmatmul.bf16.gmra.mxu0 %v4767
  %v4795 = vpop.f32.mrf.mxu0
  %v4796 = vadd.f32 0.0, %v4795
  %v4797 = vpop.f32.mrf.mxu0
  %v4798 = vadd.f32 0.0, %v4797
  %4799 = vmatmul.bf16.gmra.mxu0 %v4769
  %v4800 = vpop.f32.mrf.mxu0
  %v4801 = vadd.f32 0.0, %v4800
  %v4802 = vpop.f32.mrf.mxu0
  %v4803 = vadd.f32 0.0, %v4802
  %4804 = vmatmul.bf16.gmra.mxu0 %v4771
  %v4805 = vpop.f32.mrf.mxu0
  %v4806 = vadd.f32 0.0, %v4805
  %v4807 = vpop.f32.mrf.mxu0
  %v4808 = vadd.f32 0.0, %v4807
  %4809 = vmatmul.bf16.gmra.mxu0 %v4773
  %v4810 = vpop.f32.mrf.mxu0
  %v4811 = vadd.f32 0.0, %v4810
  %v4812 = vpop.f32.mrf.mxu0
  %v4813 = vadd.f32 0.0, %v4812
  %4814 = vmatmul.bf16.gmra.mxu0 %v4775
  %v4815 = vpop.f32.mrf.mxu0
  %v4816 = vadd.f32 0.0, %v4815
  %v4817 = vpop.f32.mrf.mxu0
  %v4818 = vadd.f32 0.0, %v4817
  %4819 = vmatmul.bf16.gmra.mxu0 %v4777
  %v4820 = vpop.f32.mrf.mxu0
  %v4821 = vadd.f32 0.0, %v4820
  %v4822 = vpop.f32.mrf.mxu0
  %v4823 = vadd.f32 0.0, %v4822
  %4824 = vmatmul.bf16.gmra.mxu0 %v4779
  %v4825 = vpop.f32.mrf.mxu0
  %v4826 = vadd.f32 0.0, %v4825
  %v4827 = vpop.f32.mrf.mxu0
  %v4828 = vadd.f32 0.0, %v4827
  %4829 = vdwg.mxu0
  %v4830 = vadd.f32 %v4637, %v4791
  %v4831 = vadd.f32 %v4638, %v4793
  %v4832 = vadd.f32 %v4639, %v4796
  %v4833 = vadd.f32 %v4640, %v4798
  %v4834 = vadd.f32 %v4641, %v4801
  %v4835 = vadd.f32 %v4642, %v4803
  %v4836 = vadd.f32 %v4643, %v4806
  %v4837 = vadd.f32 %v4644, %v4808
  %v4838 = vadd.f32 %v4645, %v4811
  %v4839 = vadd.f32 %v4646, %v4813
  %v4840 = vadd.f32 %v4647, %v4816
  %v4841 = vadd.f32 %v4648, %v4818
  %v4842 = vadd.f32 %v4649, %v4821
  %v4843 = vadd.f32 %v4650, %v4823
  %v4844 = vadd.f32 %v4651, %v4826
  %v4845 = vadd.f32 %v4652, %v4828
  %4846 = vst [vmem:[%s3] sm:$0xff] %v4830
  %4847 = vst [vmem:[%s3 + $0x8] sm:$0xff] %v4831
  %4848 = vst [vmem:[%s3 + $0x10] sm:$0xff] %v4832
  %4849 = vst [vmem:[%s3 + $0x18] sm:$0xff] %v4833
  %4850 = vst [vmem:[%s3 + $0x20] sm:$0xff] %v4834
  %4851 = vst [vmem:[%s3 + $0x28] sm:$0xff] %v4835
  %4852 = vst [vmem:[%s3 + $0x30] sm:$0xff] %v4836
  %4853 = vst [vmem:[%s3 + $0x38] sm:$0xff] %v4837
  %4854 = vst [vmem:[%s3 + $0x40] sm:$0xff] %v4838
  %4855 = vst [vmem:[%s3 + $0x48] sm:$0xff] %v4839
  %4856 = vst [vmem:[%s3 + $0x50] sm:$0xff] %v4840
  %4857 = vst [vmem:[%s3 + $0x58] sm:$0xff] %v4841
  %4858 = vst [vmem:[%s3 + $0x60] sm:$0xff] %v4842
  %4859 = vst [vmem:[%s3 + $0x68] sm:$0xff] %v4843
  %4860 = vst [vmem:[%s3 + $0x70] sm:$0xff] %v4844
  %4861 = vst [vmem:[%s3 + $0x78] sm:$0xff] %v4845
  // Predicated region
  $region14: #{decoder_forward.1} parent=0 // pred_check
    _
  $region15: #{decoder_forward.1} parent=0 // pred_check_branch
    %4863 = sbr.rel (0) target = $region17
  $region16: #{decoder_forward.1} parent=0 // pred_region
    _
  $region17: #{decoder_forward.1} parent=0 // pred_fallthru
    _
  // Predicated region
  $region18: #{decoder_forward.1} parent=0 // pred_check
    _
  $region19: #{decoder_forward.1} parent=0 // pred_check_branch
    %4865 = sbr.rel (0) target = $region21
  $region20: #{decoder_forward.1} parent=0 // pred_region
    _
  $region21: #{decoder_forward.1} parent=0 // pred_fallthru
    _

</llo_original>
